<compile_context>
chip_gen: v6e
topology: v6e:2x2x1
jax: 0.10.0
libtpu: 0.0.40
codegen_flags: <defaults>
</compile_context>

<pallas_src>
import functools

import jax
import jax.numpy as jnp
from jax import lax
from jax.experimental import pallas as pl
from jax.experimental.pallas import tpu as pltpu


# ----------------------------------------------------------------------------
# Fused kernel: one batch element per grid step.
#   x_ref   : (1, Cin, M)          flattened sample, M = T*H*W (lane dim = M)
#   w1_ref  : (C1, 9*Cin)          spatial weights, K index = (dy*3+dx)*Cin + cin
#   w2_ref  : (3, Cout, C1)        temporal weights, tap-major
#   b_ref   : (Cout, 1)            conv2 bias
#   mask_ref: (9, M)               {0,1} border-validity mask per spatial tap
#   o_ref   : (1, Cout, M)         lane-dense output
#   xg_ref  : (Cin, M + 2*G)       lane-guarded copy of the sample      (VMEM)
#   im1_ref : (9*Cin, M)           spatial im2col buffer                (VMEM)
#   y1g_ref : (C1, M + 2*PAD)      temporally zero-guarded conv1 output (VMEM)
# ----------------------------------------------------------------------------
def fused_conv3d_kernel(x_ref, w1_ref, w2_ref, b_ref, mask_ref, o_ref,
                        xg_ref, im1_ref, y1g_ref, *, T, H, W, dilation, guard):
    Cin = x_ref.shape[1]
    C1 = w1_ref.shape[0]
    HW = H * W
    M = T * HW
    G = guard
    PAD = dilation * HW  # temporal zero-pad (whole frames -> lane-aligned here)

    # ---- stage 0: place sample in a lane-guarded buffer (zero guards) so every
    #      spatial tap is a plain, in-bounds lane slice.
    xg_ref[:, 0:G] = jnp.zeros((Cin, G), jnp.float32)
    xg_ref[:, G + M:G + M + G] = jnp.zeros((Cin, G), jnp.float32)
    xg_ref[:, G:G + M] = x_ref[0]

    # ---- stage 1: spatial (1,3,3) conv as im2col + one K = 9*Cin matmul.
    #      Tap (dy, dx) is the sample shifted by (dy-1)*W + (dx-1) flat indices,
    #      with out-of-image positions zeroed by the precomputed mask.
    for dy in range(3):
        for dx in range(3):
            p = dy * 3 + dx
            s = (dy - 1) * W + (dx - 1)
            tap = xg_ref[:, G + s:G + s + M]
            if p != 4:                       # centre tap is always fully valid
                tap = tap * mask_ref[p:p + 1, :]
            im1_ref[p * Cin:(p + 1) * Cin, :] = tap

    # y1 goes straight into a temporally zero-guarded buffer: frames
    # [-dilation, 0) and [T, T+dilation) are the conv2 zero padding.
    y1g_ref[:, 0:PAD] = jnp.zeros((C1, PAD), jnp.float32)
    y1g_ref[:, PAD + M:PAD + M + PAD] = jnp.zeros((C1, PAD), jnp.float32)
    y1g_ref[:, PAD:PAD + M] = jnp.dot(w1_ref[...], im1_ref[...],
                                      preferred_element_type=jnp.float32)

    # ---- stage 2: temporal (3,1,1) dilated conv as three lane-aligned shifted
    #      matmuls (K = C1 each) reading directly from the guarded buffer.
    y2 = jnp.dot(w2_ref[0], y1g_ref[:, 0:M],
                 preferred_element_type=jnp.float32)              # t - dilation
    y2 += jnp.dot(w2_ref[1], y1g_ref[:, PAD:PAD + M],
                  preferred_element_type=jnp.float32)             # t
    y2 += jnp.dot(w2_ref[2], y1g_ref[:, 2 * PAD:2 * PAD + M],
                  preferred_element_type=jnp.float32)             # t + dilation

    o_ref[0] = (y2 + b_ref[...]).astype(o_ref.dtype)              # lane-dense store


# ----------------------------------------------------------------------------
# Wrapper: Conv3DConfigurable.forward (separable=True, use_bias=True)
#   x : (N, Cin, T, H, W)   w1: (C1, Cin, 3, 3)   w2: (Cout, C1, 3)   b2: (Cout,)
# ----------------------------------------------------------------------------
def conv3d_configurable(x_ncthw, w1, w2, b2, dilation):
    N, Cin, T, H, W = x_ncthw.shape
    C1 = w1.shape[0]        # 2 * filters
    Cout = w2.shape[0]      # filters
    HW = H * W
    M = T * HW
    assert T > dilation, "temporal extent must exceed the dilation rate"
    G = ((W + 1 + 127) // 128) * 128   # lane guard covering the max spatial shift
    PAD = dilation * HW                # temporal guard (whole frames)

    # Native-layout input: only a (free) reshape, no transpose / pad HBM passes.
    x_flat = x_ncthw.reshape(N, Cin, M).astype(jnp.float32)

    # Weight matrices laid out to match the kernel's contraction orders.
    w1m = jnp.transpose(w1, (0, 2, 3, 1)).reshape(C1, 9 * Cin).astype(jnp.float32)
    w2m = jnp.transpose(w2, (2, 0, 1)).astype(jnp.float32)        # (3, Cout, C1)
    b2m = b2.reshape(Cout, 1).astype(jnp.float32)

    # Precomputed {0,1} border masks for the 9 spatial taps (tiny, reused by all n).
    hw = jnp.arange(M, dtype=jnp.int32) % HW
    hh, ww = hw // W, hw % W
    masks = jnp.stack([
        ((hh + dy - 1 >= 0) & (hh + dy - 1 < H) &
         (ww + dx - 1 >= 0) & (ww + dx - 1 < W))
        for dy in range(3) for dx in range(3)
    ]).astype(jnp.float32)                                         # (9, M)

    kernel = functools.partial(fused_conv3d_kernel,
                               T=T, H=H, W=W, dilation=dilation, guard=G)

    out = pl.pallas_call(
        kernel,
        out_shape=jax.ShapeDtypeStruct((N, Cout, M), jnp.float32),
        grid=(N,),
        in_specs=[
            pl.BlockSpec((1, Cin, M), lambda n: (n, 0, 0)),        # x (per sample)
            pl.BlockSpec((C1, 9 * Cin), lambda n: (0, 0)),         # w1m
            pl.BlockSpec((3, Cout, C1), lambda n: (0, 0, 0)),      # w2m (tap-major)
            pl.BlockSpec((Cout, 1), lambda n: (0, 0)),             # bias
            pl.BlockSpec((9, M), lambda n: (0, 0)),                # spatial masks
        ],
        out_specs=pl.BlockSpec((1, Cout, M), lambda n: (n, 0, 0)),
        scratch_shapes=[
            pltpu.VMEM((Cin, M + 2 * G), jnp.float32),             # guarded sample
            pltpu.VMEM((9 * Cin, M), jnp.float32),                 # spatial im2col
            pltpu.VMEM((C1, M + 2 * PAD), jnp.float32),            # guarded conv1 out
        ],
        compiler_params=pltpu.CompilerParams(
            dimension_semantics=("parallel",)),
    )(x_flat, w1m, w2m, b2m, masks)

    # Free reshape back to PyTorch's NCDHW output layout.
    return out.reshape(N, Cout, T, H, W)


# ----------------------------------------------------------------------------
# Pure-JAX reference (lax.conv_general_dilated) for correctness checking.
# ----------------------------------------------------------------------------
def reference(x_ncthw, w1, w2, b2, dilation):
    dn = lax.conv_dimension_numbers(x_ncthw.shape, (1, 1, 1, 1, 1),
                                    ("NCDHW", "OIDHW", "NCDHW"))
    y = lax.conv_general_dilated(
        x_ncthw, w1[:, :, None, :, :], window_strides=(1, 1, 1),
        padding=[(0, 0), (1, 1), (1, 1)],
        rhs_dilation=(1, 1, 1), dimension_numbers=dn)
    y = lax.conv_general_dilated(
        y, w2[:, :, :, None, None], window_strides=(1, 1, 1),
        padding=[(dilation, dilation), (0, 0), (0, 0)],
        rhs_dilation=(dilation, 1, 1), dimension_numbers=dn)
    return y + b2.reshape(1, -1, 1, 1, 1)


if __name__ == "__main__":
    # Module config: Conv3DConfigurable(in_filters=4, filters=8, dilation_rate=2,
    #                                   separable=True, use_bias=True)
    N, Cin, T, H, W = 2, 4, 8, 16, 16
    filters, dilation = 8, 2
    C1, Cout = 2 * filters, filters

    key = jax.random.PRNGKey(0)
    kx, k1, k2, kb = jax.random.split(key, 4)

    x = jax.random.normal(kx, (N, Cin, T, H, W), dtype=jnp.float32)
    # Deterministic, small-scale weight init (synthetic; PyTorch weight layouts).
    w1 = jax.random.normal(k1, (C1, Cin, 3, 3), dtype=jnp.float32) * 0.1   # conv1.weight (kT=1 squeezed)
    w2 = jax.random.normal(k2, (Cout, C1, 3), dtype=jnp.float32) * 0.1     # conv2.weight (kH=kW=1 squeezed)
    b2 = jax.random.normal(kb, (Cout,), dtype=jnp.float32) * 0.1           # conv2.bias

    out = conv3d_configurable(x, w1, w2, b2, dilation)
    out = jax.block_until_ready(out)

    ref = reference(x, w1, w2, b2, dilation)
    assert out.shape == (N, Cout, T, H, W), out.shape
    assert jnp.allclose(out, ref, rtol=1e-4, atol=1e-4), (
        float(jnp.max(jnp.abs(out - ref))))

    print("KERNEL_OK")
</pallas_src>

<mosaic_0001>
module attributes {stable_mosaic.version = 11 : i64} {
  func.func @fused_conv3d_kernel(%arg0: i32, %arg1: memref<1x4x2048xf32, #tpu.memory_space<vmem>>, %arg2: memref<16x36xf32, #tpu.memory_space<vmem>>, %arg3: memref<3x8x16xf32, #tpu.memory_space<vmem>>, %arg4: memref<8x1xf32, #tpu.memory_space<vmem>>, %arg5: memref<9x2048xf32, #tpu.memory_space<vmem>>, %arg6: memref<1x8x2048xf32, #tpu.memory_space<vmem>>, %arg7: memref<4x2304xf32, #tpu.memory_space<vmem>>, %arg8: memref<36x2048xf32, #tpu.memory_space<vmem>>, %arg9: memref<16x3072xf32, #tpu.memory_space<vmem>>) attributes {dimension_semantics = [#tpu.dimension_semantics<parallel>], iteration_bounds = array<i64: 2>, scalar_prefetch = 0 : i64, scratch_operands = 3 : i64, tpu.core_type = #tpu.core_type<tc>, window_params = [{transform_indices = @transform_0, window_bounds = array<i64: 1, 4, 2048>}, {pipeline_mode = #tpu.pipeline_mode<synchronous>, transform_indices = @transform_1, window_bounds = array<i64: 16, 36>}, {pipeline_mode = #tpu.pipeline_mode<synchronous>, transform_indices = @transform_2, window_bounds = array<i64: 3, 8, 16>}, {pipeline_mode = #tpu.pipeline_mode<synchronous>, transform_indices = @transform_3, window_bounds = array<i64: 8, 1>}, {pipeline_mode = #tpu.pipeline_mode<synchronous>, transform_indices = @transform_4, window_bounds = array<i64: 9, 2048>}, {transform_indices = @transform_5, window_bounds = array<i64: 1, 8, 2048>}]} {
    %cst = arith.constant 0.000000e+00 : f32
    %0 = vector.broadcast %cst : f32 to vector<4x128xf32>
    %c0 = arith.constant 0 : index
    %c0_0 = arith.constant 0 : index
    %1 = vector.load %arg7[%c0, %c0_0] : memref<4x2304xf32, #tpu.memory_space<vmem>>, vector<4x128xf32>
    tpu.vector_store %arg7[%c0, %c0_0], %0 {strides = array<i32>} : memref<4x2304xf32, #tpu.memory_space<vmem>>, vector<4x128xf32>,
    %cst_1 = arith.constant 0.000000e+00 : f32
    %2 = vector.broadcast %cst_1 : f32 to vector<4x128xf32>
    %c0_2 = arith.constant 0 : index
    %c2176 = arith.constant 2176 : index
    %3 = vector.load %arg7[%c0_2, %c2176] : memref<4x2304xf32, #tpu.memory_space<vmem>>, vector<4x128xf32>
    tpu.vector_store %arg7[%c0_2, %c2176], %2 {strides = array<i32>} : memref<4x2304xf32, #tpu.memory_space<vmem>>, vector<4x128xf32>,
    %c0_3 = arith.constant 0 : index
    %c0_4 = arith.constant 0 : index
    %c0_5 = arith.constant 0 : index
    %4 = vector.load %arg1[%c0_3, %c0_4, %c0_5] : memref<1x4x2048xf32, #tpu.memory_space<vmem>>, vector<1x4x2048xf32>
    %5 = vector.shape_cast %4 : vector<1x4x2048xf32> to vector<4x2048xf32>
    %c0_6 = arith.constant 0 : index
    %c128 = arith.constant 128 : index
    %6 = vector.load %arg7[%c0_6, %c128] : memref<4x2304xf32, #tpu.memory_space<vmem>>, vector<4x2048xf32>
    tpu.vector_store %arg7[%c0_6, %c128], %5 {strides = array<i32>} : memref<4x2304xf32, #tpu.memory_space<vmem>>, vector<4x2048xf32>,
    %c0_7 = arith.constant 0 : index
    %c111 = arith.constant 111 : index
    %7 = vector.load %arg7[%c0_7, %c111] : memref<4x2304xf32, #tpu.memory_space<vmem>>, vector<4x2048xf32>
    %c0_8 = arith.constant 0 : index
    %c0_9 = arith.constant 0 : index
    %8 = vector.load %arg5[%c0_8, %c0_9] : memref<9x2048xf32, #tpu.memory_space<vmem>>, vector<1x2048xf32>
    %9 = vector.broadcast %8 : vector<1x2048xf32> to vector<4x2048xf32>
    %10 = arith.mulf %7, %9 : vector<4x2048xf32>
    %c0_10 = arith.constant 0 : index
    %c0_11 = arith.constant 0 : index
    %11 = vector.load %arg8[%c0_10, %c0_11] : memref<36x2048xf32, #tpu.memory_space<vmem>>, vector<4x2048xf32>
    tpu.vector_store %arg8[%c0_10, %c0_11], %10 {strides = array<i32>} : memref<36x2048xf32, #tpu.memory_space<vmem>>, vector<4x2048xf32>,
    %c0_12 = arith.constant 0 : index
    %c112 = arith.constant 112 : index
    %12 = vector.load %arg7[%c0_12, %c112] : memref<4x2304xf32, #tpu.memory_space<vmem>>, vector<4x2048xf32>
    %c1 = arith.constant 1 : index
    %c0_13 = arith.constant 0 : index
    %13 = vector.load %arg5[%c1, %c0_13] : memref<9x2048xf32, #tpu.memory_space<vmem>>, vector<1x2048xf32>
    %14 = vector.broadcast %13 : vector<1x2048xf32> to vector<4x2048xf32>
    %15 = arith.mulf %12, %14 : vector<4x2048xf32>
    %c4 = arith.constant 4 : index
    %c0_14 = arith.constant 0 : index
    %16 = vector.load %arg8[%c4, %c0_14] : memref<36x2048xf32, #tpu.memory_space<vmem>>, vector<4x2048xf32>
    tpu.vector_store %arg8[%c4, %c0_14], %15 {strides = array<i32>} : memref<36x2048xf32, #tpu.memory_space<vmem>>, vector<4x2048xf32>,
    %c0_15 = arith.constant 0 : index
    %c113 = arith.constant 113 : index
    %17 = vector.load %arg7[%c0_15, %c113] : memref<4x2304xf32, #tpu.memory_space<vmem>>, vector<4x2048xf32>
    %c2 = arith.constant 2 : index
    %c0_16 = arith.constant 0 : index
    %18 = vector.load %arg5[%c2, %c0_16] : memref<9x2048xf32, #tpu.memory_space<vmem>>, vector<1x2048xf32>
    %19 = vector.broadcast %18 : vector<1x2048xf32> to vector<4x2048xf32>
    %20 = arith.mulf %17, %19 : vector<4x2048xf32>
    %c8 = arith.constant 8 : index
    %c0_17 = arith.constant 0 : index
    %21 = vector.load %arg8[%c8, %c0_17] : memref<36x2048xf32, #tpu.memory_space<vmem>>, vector<4x2048xf32>
    tpu.vector_store %arg8[%c8, %c0_17], %20 {strides = array<i32>} : memref<36x2048xf32, #tpu.memory_space<vmem>>, vector<4x2048xf32>,
    %c0_18 = arith.constant 0 : index
    %c127 = arith.constant 127 : index
    %22 = vector.load %arg7[%c0_18, %c127] : memref<4x2304xf32, #tpu.memory_space<vmem>>, vector<4x2048xf32>
    %c3 = arith.constant 3 : index
    %c0_19 = arith.constant 0 : index
    %23 = vector.load %arg5[%c3, %c0_19] : memref<9x2048xf32, #tpu.memory_space<vmem>>, vector<1x2048xf32>
    %24 = vector.broadcast %23 : vector<1x2048xf32> to vector<4x2048xf32>
    %25 = arith.mulf %22, %24 : vector<4x2048xf32>
    %c12 = arith.constant 12 : index
    %c0_20 = arith.constant 0 : index
    %26 = vector.load %arg8[%c12, %c0_20] : memref<36x2048xf32, #tpu.memory_space<vmem>>, vector<4x2048xf32>
    tpu.vector_store %arg8[%c12, %c0_20], %25 {strides = array<i32>} : memref<36x2048xf32, #tpu.memory_space<vmem>>, vector<4x2048xf32>,
    %c0_21 = arith.constant 0 : index
    %c128_22 = arith.constant 128 : index
    %27 = vector.load %arg7[%c0_21, %c128_22] : memref<4x2304xf32, #tpu.memory_space<vmem>>, vector<4x2048xf32>
    %c16 = arith.constant 16 : index
    %c0_23 = arith.constant 0 : index
    %28 = vector.load %arg8[%c16, %c0_23] : memref<36x2048xf32, #tpu.memory_space<vmem>>, vector<4x2048xf32>
    tpu.vector_store %arg8[%c16, %c0_23], %27 {strides = array<i32>} : memref<36x2048xf32, #tpu.memory_space<vmem>>, vector<4x2048xf32>,
    %c0_24 = arith.constant 0 : index
    %c129 = arith.constant 129 : index
    %29 = vector.load %arg7[%c0_24, %c129] : memref<4x2304xf32, #tpu.memory_space<vmem>>, vector<4x2048xf32>
    %c5 = arith.constant 5 : index
    %c0_25 = arith.constant 0 : index
    %30 = vector.load %arg5[%c5, %c0_25] : memref<9x2048xf32, #tpu.memory_space<vmem>>, vector<1x2048xf32>
    %31 = vector.broadcast %30 : vector<1x2048xf32> to vector<4x2048xf32>
    %32 = arith.mulf %29, %31 : vector<4x2048xf32>
    %c20 = arith.constant 20 : index
    %c0_26 = arith.constant 0 : index
    %33 = vector.load %arg8[%c20, %c0_26] : memref<36x2048xf32, #tpu.memory_space<vmem>>, vector<4x2048xf32>
    tpu.vector_store %arg8[%c20, %c0_26], %32 {strides = array<i32>} : memref<36x2048xf32, #tpu.memory_space<vmem>>, vector<4x2048xf32>,
    %c0_27 = arith.constant 0 : index
    %c143 = arith.constant 143 : index
    %34 = vector.load %arg7[%c0_27, %c143] : memref<4x2304xf32, #tpu.memory_space<vmem>>, vector<4x2048xf32>
    %c6 = arith.constant 6 : index
    %c0_28 = arith.constant 0 : index
    %35 = vector.load %arg5[%c6, %c0_28] : memref<9x2048xf32, #tpu.memory_space<vmem>>, vector<1x2048xf32>
    %36 = vector.broadcast %35 : vector<1x2048xf32> to vector<4x2048xf32>
    %37 = arith.mulf %34, %36 : vector<4x2048xf32>
    %c24 = arith.constant 24 : index
    %c0_29 = arith.constant 0 : index
    %38 = vector.load %arg8[%c24, %c0_29] : memref<36x2048xf32, #tpu.memory_space<vmem>>, vector<4x2048xf32>
    tpu.vector_store %arg8[%c24, %c0_29], %37 {strides = array<i32>} : memref<36x2048xf32, #tpu.memory_space<vmem>>, vector<4x2048xf32>,
    %c0_30 = arith.constant 0 : index
    %c144 = arith.constant 144 : index
    %39 = vector.load %arg7[%c0_30, %c144] : memref<4x2304xf32, #tpu.memory_space<vmem>>, vector<4x2048xf32>
    %c7 = arith.constant 7 : index
    %c0_31 = arith.constant 0 : index
    %40 = vector.load %arg5[%c7, %c0_31] : memref<9x2048xf32, #tpu.memory_space<vmem>>, vector<1x2048xf32>
    %41 = vector.broadcast %40 : vector<1x2048xf32> to vector<4x2048xf32>
    %42 = arith.mulf %39, %41 : vector<4x2048xf32>
    %c28 = arith.constant 28 : index
    %c0_32 = arith.constant 0 : index
    %43 = vector.load %arg8[%c28, %c0_32] : memref<36x2048xf32, #tpu.memory_space<vmem>>, vector<4x2048xf32>
    tpu.vector_store %arg8[%c28, %c0_32], %42 {strides = array<i32>} : memref<36x2048xf32, #tpu.memory_space<vmem>>, vector<4x2048xf32>,
    %c0_33 = arith.constant 0 : index
    %c145 = arith.constant 145 : index
    %44 = vector.load %arg7[%c0_33, %c145] : memref<4x2304xf32, #tpu.memory_space<vmem>>, vector<4x2048xf32>
    %c8_34 = arith.constant 8 : index
    %c0_35 = arith.constant 0 : index
    %45 = vector.load %arg5[%c8_34, %c0_35] : memref<9x2048xf32, #tpu.memory_space<vmem>>, vector<1x2048xf32>
    %46 = vector.broadcast %45 : vector<1x2048xf32> to vector<4x2048xf32>
    %47 = arith.mulf %44, %46 : vector<4x2048xf32>
    %c32 = arith.constant 32 : index
    %c0_36 = arith.constant 0 : index
    %48 = vector.load %arg8[%c32, %c0_36] : memref<36x2048xf32, #tpu.memory_space<vmem>>, vector<4x2048xf32>
    tpu.vector_store %arg8[%c32, %c0_36], %47 {strides = array<i32>} : memref<36x2048xf32, #tpu.memory_space<vmem>>, vector<4x2048xf32>,
    %cst_37 = arith.constant 0.000000e+00 : f32
    %49 = vector.broadcast %cst_37 : f32 to vector<16x512xf32>
    %c0_38 = arith.constant 0 : index
    %c0_39 = arith.constant 0 : index
    %50 = vector.load %arg9[%c0_38, %c0_39] : memref<16x3072xf32, #tpu.memory_space<vmem>>, vector<16x512xf32>
    tpu.vector_store %arg9[%c0_38, %c0_39], %49 {strides = array<i32>} : memref<16x3072xf32, #tpu.memory_space<vmem>>, vector<16x512xf32>,
    %cst_40 = arith.constant 0.000000e+00 : f32
    %51 = vector.broadcast %cst_40 : f32 to vector<16x512xf32>
    %c0_41 = arith.constant 0 : index
    %c2560 = arith.constant 2560 : index
    %52 = vector.load %arg9[%c0_41, %c2560] : memref<16x3072xf32, #tpu.memory_space<vmem>>, vector<16x512xf32>
    tpu.vector_store %arg9[%c0_41, %c2560], %51 {strides = array<i32>} : memref<16x3072xf32, #tpu.memory_space<vmem>>, vector<16x512xf32>,
    %c0_42 = arith.constant 0 : index
    %c0_43 = arith.constant 0 : index
    %53 = vector.load %arg2[%c0_42, %c0_43] : memref<16x36xf32, #tpu.memory_space<vmem>>, vector<16x36xf32>
    %c0_44 = arith.constant 0 : index
    %c0_45 = arith.constant 0 : index
    %54 = vector.load %arg8[%c0_44, %c0_45] : memref<36x2048xf32, #tpu.memory_space<vmem>>, vector<36x2048xf32>
    %cst_46 = arith.constant dense<0.000000e+00> : vector<16x2048xf32>
    %55 = tpu.matmul %53, %54, %cst_46 {dimension_numbers = #tpu.dot_dimension_numbers<[1], [0], [0], [1], [0, 0, 1, 1], [], []>} : vector<16x36xf32>, vector<36x2048xf32>, vector<16x2048xf32> -> vector<16x2048xf32>
    %c0_47 = arith.constant 0 : index
    %c512 = arith.constant 512 : index
    %56 = vector.load %arg9[%c0_47, %c512] : memref<16x3072xf32, #tpu.memory_space<vmem>>, vector<16x2048xf32>
    tpu.vector_store %arg9[%c0_47, %c512], %55 {strides = array<i32>} : memref<16x3072xf32, #tpu.memory_space<vmem>>, vector<16x2048xf32>,
    %c0_48 = arith.constant 0 : index
    %c0_49 = arith.constant 0 : index
    %c0_50 = arith.constant 0 : index
    %57 = vector.load %arg3[%c0_48, %c0_49, %c0_50] : memref<3x8x16xf32, #tpu.memory_space<vmem>>, vector<1x8x16xf32>
    %58 = vector.shape_cast %57 : vector<1x8x16xf32> to vector<8x16xf32>
    %c0_51 = arith.constant 0 : index
    %c0_52 = arith.constant 0 : index
    %59 = vector.load %arg9[%c0_51, %c0_52] : memref<16x3072xf32, #tpu.memory_space<vmem>>, vector<16x2048xf32>
    %cst_53 = arith.constant dense<0.000000e+00> : vector<8x2048xf32>
    %60 = tpu.matmul %58, %59, %cst_53 {dimension_numbers = #tpu.dot_dimension_numbers<[1], [0], [0], [1], [0, 0, 1, 1], [], []>} : vector<8x16xf32>, vector<16x2048xf32>, vector<8x2048xf32> -> vector<8x2048xf32>
    %c1_54 = arith.constant 1 : index
    %c0_55 = arith.constant 0 : index
    %c0_56 = arith.constant 0 : index
    %61 = vector.load %arg3[%c1_54, %c0_55, %c0_56] : memref<3x8x16xf32, #tpu.memory_space<vmem>>, vector<1x8x16xf32>
    %62 = vector.shape_cast %61 : vector<1x8x16xf32> to vector<8x16xf32>
    %c0_57 = arith.constant 0 : index
    %c512_58 = arith.constant 512 : index
    %63 = vector.load %arg9[%c0_57, %c512_58] : memref<16x3072xf32, #tpu.memory_space<vmem>>, vector<16x2048xf32>
    %cst_59 = arith.constant dense<0.000000e+00> : vector<8x2048xf32>
    %64 = tpu.matmul %62, %63, %cst_59 {dimension_numbers = #tpu.dot_dimension_numbers<[1], [0], [0], [1], [0, 0, 1, 1], [], []>} : vector<8x16xf32>, vector<16x2048xf32>, vector<8x2048xf32> -> vector<8x2048xf32>
    %65 = arith.addf %60, %64 : vector<8x2048xf32>
    %c2_60 = arith.constant 2 : index
    %c0_61 = arith.constant 0 : index
    %c0_62 = arith.constant 0 : index
    %66 = vector.load %arg3[%c2_60, %c0_61, %c0_62] : memref<3x8x16xf32, #tpu.memory_space<vmem>>, vector<1x8x16xf32>
    %67 = vector.shape_cast %66 : vector<1x8x16xf32> to vector<8x16xf32>
    %c0_63 = arith.constant 0 : index
    %c1024 = arith.constant 1024 : index
    %68 = vector.load %arg9[%c0_63, %c1024] : memref<16x3072xf32, #tpu.memory_space<vmem>>, vector<16x2048xf32>
    %cst_64 = arith.constant dense<0.000000e+00> : vector<8x2048xf32>
    %69 = tpu.matmul %67, %68, %cst_64 {dimension_numbers = #tpu.dot_dimension_numbers<[1], [0], [0], [1], [0, 0, 1, 1], [], []>} : vector<8x16xf32>, vector<16x2048xf32>, vector<8x2048xf32> -> vector<8x2048xf32>
    %70 = arith.addf %65, %69 : vector<8x2048xf32>
    %c0_65 = arith.constant 0 : index
    %c0_66 = arith.constant 0 : index
    %71 = vector.load %arg4[%c0_65, %c0_66] : memref<8x1xf32, #tpu.memory_space<vmem>>, vector<8x1xf32>
    %72 = vector.broadcast %71 : vector<8x1xf32> to vector<8x2048xf32>
    %73 = arith.addf %70, %72 : vector<8x2048xf32>
    %c0_67 = arith.constant 0 : index
    %c0_68 = arith.constant 0 : index
    %c0_69 = arith.constant 0 : index
    %74 = vector.load %arg6[%c0_67, %c0_68, %c0_69] : memref<1x8x2048xf32, #tpu.memory_space<vmem>>, vector<1x8x2048xf32>
    %75 = vector.shape_cast %74 : vector<1x8x2048xf32> to vector<8x2048xf32>
    %76 = vector.shape_cast %73 : vector<8x2048xf32> to vector<1x8x2048xf32>
    tpu.vector_store %arg6[%c0_67, %c0_68, %c0_69], %76 {strides = array<i32>} : memref<1x8x2048xf32, #tpu.memory_space<vmem>>, vector<1x8x2048xf32>,
    return
  }
  func.func @transform_0(%arg0: i32) -> (i32, i32, i32) {
    %c0_i32 = arith.constant 0 : i32
    %c0_i32_0 = arith.constant 0 : i32
    %c0_i32_1 = arith.constant 0 : i32
    return %arg0, %c0_i32, %c0_i32_0 : i32, i32, i32
  }
  func.func @transform_1(%arg0: i32) -> (i32, i32) {
    %c0_i32 = arith.constant 0 : i32
    %c0_i32_0 = arith.constant 0 : i32
    %c0_i32_1 = arith.constant 0 : i32
    return %c0_i32, %c0_i32_0 : i32, i32
  }
  func.func @transform_2(%arg0: i32) -> (i32, i32, i32) {
    %c0_i32 = arith.constant 0 : i32
    %c0_i32_0 = arith.constant 0 : i32
    %c0_i32_1 = arith.constant 0 : i32
    %c0_i32_2 = arith.constant 0 : i32
    return %c0_i32, %c0_i32_0, %c0_i32_1 : i32, i32, i32
  }
  func.func @transform_3(%arg0: i32) -> (i32, i32) {
    %c0_i32 = arith.constant 0 : i32
    %c0_i32_0 = arith.constant 0 : i32
    %c0_i32_1 = arith.constant 0 : i32
    return %c0_i32, %c0_i32_0 : i32, i32
  }
  func.func @transform_4(%arg0: i32) -> (i32, i32) {
    %c0_i32 = arith.constant 0 : i32
    %c0_i32_0 = arith.constant 0 : i32
    %c0_i32_1 = arith.constant 0 : i32
    return %c0_i32, %c0_i32_0 : i32, i32
  }
  func.func @transform_5(%arg0: i32) -> (i32, i32, i32) {
    %c0_i32 = arith.constant 0 : i32
    %c0_i32_0 = arith.constant 0 : i32
    %c0_i32_1 = arith.constant 0 : i32
    return %arg0, %c0_i32, %c0_i32_0 : i32, i32, i32
  }
}

</mosaic_0001>

<llo_original>
// kernel: tpu_custom_call.1
$region0: #{tpu_custom_call.1}
  #allocation0 [shape = 'u32[]', space=smem, size = 0x4, offset = 0x4, fixed_abs, tag = 'smem constant byte address 0x4 - core index']
  #allocation1 [shape = 'u32[144,128]{1,0:T(1,128)}', space=vmem, size = 0x12000, scoped, tag = 'internal scratch']
  #allocation2 [shape = 'f32[4,2304]{1,0:T(4,128)}', space=vmem, size = 0x9000, scoped, tag = 'scratch operand']
  #allocation3 [shape = 'f32[36,2048]{1,0:T(8,128)}', space=vmem, size = 0x50000, scoped, tag = 'scratch operand']
  #allocation4 [shape = 'f32[16,3072]{1,0:T(8,128)}', space=vmem, size = 0x30000, scoped, tag = 'scratch operand']
  %s0 = inlined_call_operand.hbm [shape: f32[2,4,2048], index: 0, kind: input, shape index: {}]
  %s1 = inlined_call_operand.hbm [shape: f32[16,36], index: 1, kind: input, shape index: {}]
  %s2 = inlined_call_operand.hbm [shape: f32[3,8,16], index: 2, kind: input, shape index: {}]
  %s3 = inlined_call_operand.vmem [shape: f32[8,1], index: 3, kind: input, shape index: {}]
  %s4 = inlined_call_operand.hbm [shape: f32[9,2048], index: 4, kind: input, shape index: {}]
  %s5 = inlined_call_operand.hbm [shape: f32[2,8,2048], index: 5, kind: output, shape index: {}]
  %s6 = sld [smem:[#allocation0]]
  $region69: #{tpu_custom_call.1} parent=0
    _
  %s8 = ssub.s32 1, %s6
  %s9 = scalar_select 0, %s8, %s6
  $region1: #{tpu_custom_call.1} parent=0
    #allocation5 [shape = 'u8[65536]{0}', space=vmem, size = 0x10000, scoped, tag = 'input window, operand 0']
    #allocation6 [shape = 's32[2]{0}', space=sflag, size = 0x8, scoped, tag = 'scoped memory for tpu_custom_call.1']
    #allocation7 [shape = 's32[2]{0}', space=sflag, size = 0x8, scoped, tag = 'scoped memory for tpu_custom_call.1']
    #allocation8 [shape = 'u8[8192]{0}', space=vmem, size = 0x2000, scoped, tag = 'input window, operand 1, single buffered']
    #allocation9 [shape = 's32[1]{0}', space=sflag, size = 0x4, scoped, tag = 'scoped memory for tpu_custom_call.1']
    #allocation10 [shape = 'u8[12288]{0}', space=vmem, size = 0x3000, scoped, tag = 'input window, operand 2, single buffered']
    #allocation11 [shape = 'u8[131072]{0}', space=vmem, size = 0x20000, scoped, tag = 'input window, operand 4, single buffered']
    #allocation12 [shape = 's32[1]{0}', space=sflag, size = 0x4, scoped, tag = 'scoped memory for tpu_custom_call.1']
    #allocation13 [shape = 'u8[131072]{0}', space=vmem, size = 0x20000, scoped, tag = 'output window, operand 0']
    %10 = vsyncpa [#allocation6], 0
    %s11 = scalar_lea.sflag [#allocation6], 1
    %12 = vsyncpa %s11, 0
    %13 = vsyncpa [#allocation9], 0
    %14 = vsyncpa [#allocation12], 0
    %15 = vsyncpa [#allocation7], 0
    %s16 = scalar_lea.sflag [#allocation7], 1
    %17 = vsyncpa %s16, 0
    loop: start=0, step=1, limit=4
    $region2: #{tpu_custom_call.1} parent=1 // loop_pre_header
      _
    $region3: #{tpu_custom_call.1} parent=1 // loop_header
      %s19 = sphi 0, %s23
      %p20 = scmp.ge.s32.totalorder %s19, 4
      %s29 = sphi 0, %s31
      %s32 = sphi 0, %s29
      %s33 = sphi 0, %s32
      %s49 = sphi 0, %s33
      %s53 = sphi 0, %s53
      %s55 = sphi 0, %s53
      %s56 = sphi 0, %s55
      %s70 = sphi 0, %s56
      %s74 = sphi 0, %s74
      %s76 = sphi 0, %s74
      %s77 = sphi 0, %s76
      %s91 = sphi 0, %s77
      %s95 = sphi 0, %s95
      %s97 = sphi 0, %s95
      %s98 = sphi 0, %s97
      %s112 = sphi 0, %s98
      %s116 = sphi 0, %s116
      %s118 = sphi 0, %s116
      %s119 = sphi 0, %s118
      %s133 = sphi 0, %s119
      %s139 = sphi 0, %s141
      %s142 = sphi 0, %s139
      %s143 = sphi 0, %s142
      %s159 = sphi 0, %s143
    $region4: #{tpu_custom_call.1} parent=1 // loop_header_branch
      %22 = sbr.rel (%p20) target = $region8
    $region5: #{tpu_custom_call.1} parent=1 // loop_body
      %s24 = ssub.s32 %s19, 1
      %s25 = ssub.s32 %s19, 2
      %s26 = sadd.s32 %s19, 1
      %s27 = ssub.s32 %s19, %s26
      %p28 = scmp.eq.s32.totalorder %s27, 0
      %s30 = sadd.s32 %s29, 1
      %s31 = scalar_select %p28, %s29, %s30
      %p34 = pneg %p28
      %p35 = scmp.eq.s32.totalorder %s19, 1
      %p36 = por %p34, %p35
      %p37 = scmp.ne.s32.totalorder %s29, %s32
      %p38 = scmp.eq.s32.totalorder %s19, 0
      %p39 = por %p37, %p38
      %p40 = scmp.ne.s32.totalorder %s29, %s32
      %p41 = scmp.eq.s32.totalorder %s24, 1
      %p42 = por %p40, %p41
      %p43 = scmp.ne.s32.totalorder %s32, %s33
      %p44 = scmp.eq.s32.totalorder %s24, 0
      %p45 = por %p43, %p44
      %p46 = scmp.ne.s32.totalorder %s32, %s33
      %p47 = scmp.eq.s32.totalorder %s25, 1
      %p48 = por %p46, %p47
      %p50 = scmp.ne.s32.totalorder %s33, %s49
      %p51 = scmp.eq.s32.totalorder %s25, 0
      %p52 = por %p50, %p51
      %s54 = sadd.s32 %s53, 1
      %p57 = scmp.eq.s32.totalorder %s19, 1
      %p58 = scmp.ne.s32.totalorder %s53, %s55
      %p59 = scmp.eq.s32.totalorder %s19, 0
      %p60 = por %p58, %p59
      %p61 = scmp.ne.s32.totalorder %s53, %s55
      %p62 = scmp.eq.s32.totalorder %s24, 1
      %p63 = por %p61, %p62
      %p64 = scmp.ne.s32.totalorder %s55, %s56
      %p65 = scmp.eq.s32.totalorder %s24, 0
      %p66 = por %p64, %p65
      %p67 = scmp.ne.s32.totalorder %s55, %s56
      %p68 = scmp.eq.s32.totalorder %s25, 1
      %p69 = por %p67, %p68
      %p71 = scmp.ne.s32.totalorder %s56, %s70
      %p72 = scmp.eq.s32.totalorder %s25, 0
      %p73 = por %p71, %p72
      %s75 = sadd.s32 %s74, 1
      %p78 = scmp.eq.s32.totalorder %s19, 1
      %p79 = scmp.ne.s32.totalorder %s74, %s76
      %p80 = scmp.eq.s32.totalorder %s19, 0
      %p81 = por %p79, %p80
      %p82 = scmp.ne.s32.totalorder %s74, %s76
      %p83 = scmp.eq.s32.totalorder %s24, 1
      %p84 = por %p82, %p83
      %p85 = scmp.ne.s32.totalorder %s76, %s77
      %p86 = scmp.eq.s32.totalorder %s24, 0
      %p87 = por %p85, %p86
      %p88 = scmp.ne.s32.totalorder %s76, %s77
      %p89 = scmp.eq.s32.totalorder %s25, 1
      %p90 = por %p88, %p89
      %p92 = scmp.ne.s32.totalorder %s77, %s91
      %p93 = scmp.eq.s32.totalorder %s25, 0
      %p94 = por %p92, %p93
      %s96 = sadd.s32 %s95, 1
      %p99 = scmp.eq.s32.totalorder %s19, 1
      %p100 = scmp.ne.s32.totalorder %s95, %s97
      %p101 = scmp.eq.s32.totalorder %s19, 0
      %p102 = por %p100, %p101
      %p103 = scmp.ne.s32.totalorder %s95, %s97
      %p104 = scmp.eq.s32.totalorder %s24, 1
      %p105 = por %p103, %p104
      %p106 = scmp.ne.s32.totalorder %s97, %s98
      %p107 = scmp.eq.s32.totalorder %s24, 0
      %p108 = por %p106, %p107
      %p109 = scmp.ne.s32.totalorder %s97, %s98
      %p110 = scmp.eq.s32.totalorder %s25, 1
      %p111 = por %p109, %p110
      %p113 = scmp.ne.s32.totalorder %s98, %s112
      %p114 = scmp.eq.s32.totalorder %s25, 0
      %p115 = por %p113, %p114
      %s117 = sadd.s32 %s116, 1
      %p120 = scmp.eq.s32.totalorder %s19, 1
      %p121 = scmp.ne.s32.totalorder %s116, %s118
      %p122 = scmp.eq.s32.totalorder %s19, 0
      %p123 = por %p121, %p122
      %p124 = scmp.ne.s32.totalorder %s116, %s118
      %p125 = scmp.eq.s32.totalorder %s24, 1
      %p126 = por %p124, %p125
      %p127 = scmp.ne.s32.totalorder %s118, %s119
      %p128 = scmp.eq.s32.totalorder %s24, 0
      %p129 = por %p127, %p128
      %p130 = scmp.ne.s32.totalorder %s118, %s119
      %p131 = scmp.eq.s32.totalorder %s25, 1
      %p132 = por %p130, %p131
      %p134 = scmp.ne.s32.totalorder %s119, %s133
      %p135 = scmp.eq.s32.totalorder %s25, 0
      %p136 = por %p134, %p135
      %s137 = ssub.s32 %s19, %s26
      %p138 = scmp.eq.s32.totalorder %s137, 0
      %s140 = sadd.s32 %s139, 1
      %s141 = scalar_select %p138, %s139, %s140
      %p144 = pneg %p138
      %p145 = scmp.eq.s32.totalorder %s19, 1
      %p146 = por %p144, %p145
      %p147 = scmp.ne.s32.totalorder %s139, %s142
      %p148 = scmp.eq.s32.totalorder %s19, 0
      %p149 = por %p147, %p148
      %p150 = scmp.ne.s32.totalorder %s139, %s142
      %p151 = scmp.eq.s32.totalorder %s24, 1
      %p152 = por %p150, %p151
      %p153 = scmp.ne.s32.totalorder %s142, %s143
      %p154 = scmp.eq.s32.totalorder %s24, 0
      %p155 = por %p153, %p154
      %p156 = scmp.ne.s32.totalorder %s142, %s143
      %p157 = scmp.eq.s32.totalorder %s25, 1
      %p158 = por %p156, %p157
      %p160 = scmp.ne.s32.totalorder %s143, %s159
      %p161 = scmp.eq.s32.totalorder %s25, 0
      %p162 = por %p160, %p161
      %p163 = scmp.le.s32.totalorder 1, %s19
      %p164 = scmp.lt.s32.totalorder %s19, 3
      %p165 = pnand %p163, %p164
      %p166 = pneg %p165
      // Predicated region
      $region9: #{tpu_custom_call.1} parent=5 // pred_check
        _
      $region10: #{tpu_custom_call.1} parent=5 // pred_check_branch
        %168 = sbr.rel (%p165) target = $region12
      $region11: #{tpu_custom_call.1} parent=5 // pred_region
        %s169 = ssub.s32 %s19, 1
        // Predicated region
        $region13: #{tpu_custom_call.1} parent=11 // pred_check
          %p170 = pneg %p66
        $region14: #{tpu_custom_call.1} parent=11 // pred_check_branch
          %172 = sbr.rel (%p170) target = $region16
        $region15: #{tpu_custom_call.1} parent=11 // pred_region
          %s174 = ssub.s32 256, 256
          %175 = vsyncadd [#allocation9], %s174
          %s176 = sshll.u32 [#allocation8], 4
          %s177 = int_to_ptr.vmem [resolvable:$true] %s176
          %182 = dma.hbm_to_vmem [thread:$0]  %s1, 256, %s177, [#allocation9], 128, 128, 8
        $region16: #{tpu_custom_call.1} parent=11 // pred_fallthru
          _
        // Predicated region
        $region17: #{tpu_custom_call.1} parent=11 // pred_check
          %p183 = pneg %p87
        $region18: #{tpu_custom_call.1} parent=11 // pred_check_branch
          %185 = sbr.rel (%p183) target = $region20
        $region19: #{tpu_custom_call.1} parent=11 // pred_region
          %s187 = ssub.s32 384, 384
          %188 = vsyncadd [#allocation9], %s187
          %s189 = sshll.u32 [#allocation10], 4
          %s190 = int_to_ptr.vmem [resolvable:$true] %s189
          %195 = dma.hbm_to_vmem [thread:$0]  %s2, 384, %s190, [#allocation9], 128, 128, 8
        $region20: #{tpu_custom_call.1} parent=11 // pred_fallthru
          _
        // Predicated region
        $region21: #{tpu_custom_call.1} parent=11 // pred_check
          %p196 = pneg %p108
        $region22: #{tpu_custom_call.1} parent=11 // pred_check_branch
          %198 = sbr.rel (%p196) target = $region24
        $region23: #{tpu_custom_call.1} parent=11 // pred_region
          _
        $region24: #{tpu_custom_call.1} parent=11 // pred_fallthru
          _
        // Predicated region
        $region25: #{tpu_custom_call.1} parent=11 // pred_check
          %p199 = pneg %p129
        $region26: #{tpu_custom_call.1} parent=11 // pred_check_branch
          %201 = sbr.rel (%p199) target = $region28
        $region27: #{tpu_custom_call.1} parent=11 // pred_region
          %s203 = ssub.s32 4096, 4096
          %204 = vsyncadd [#allocation12], %s203
          %s205 = sshll.u32 [#allocation11], 4
          %s206 = int_to_ptr.vmem [resolvable:$true] %s205
          %211 = dma.hbm_to_vmem [thread:$0]  %s4, 4096, %s206, [#allocation12], 2048, 2048, 128
        $region28: #{tpu_custom_call.1} parent=11 // pred_fallthru
          _
      $region12: #{tpu_custom_call.1} parent=5 // pred_fallthru
        _
      %p212 = scmp.lt.s32.totalorder %s19, 2
      // Predicated region
      $region29: #{tpu_custom_call.1} parent=5 // pred_check
        %p213 = pneg %p212
      $region30: #{tpu_custom_call.1} parent=5 // pred_check_branch
        %215 = sbr.rel (%p213) target = $region32
      $region31: #{tpu_custom_call.1} parent=5 // pred_region
        // Predicated region
        $region33: #{tpu_custom_call.1} parent=31 // pred_check
          %p216 = pneg %p39
        $region34: #{tpu_custom_call.1} parent=31 // pred_check_branch
          %218 = sbr.rel (%p216) target = $region36
        $region35: #{tpu_custom_call.1} parent=31 // pred_region
          %s219 = sand.u32 %s29, 1
          %s220 = scalar_lea.sflag [#allocation6], %s219
          %s221 = sand.u32 %s29, 1
          %s222 = smul.addr %s221, 64
          %s223 = scalar_lea.vmem [#allocation5], %s222
          %s225 = ssub.s32 1024, 1024
          %226 = vsyncadd %s220, %s225
          %s227 = smul.addr %s19, 16
          %s228 = smul.addr %s227, 64
          %s229 = scalar_lea.hbm %s0, %s228
          %s231 = sshll.u32 %s223, 4
          %s232 = int_to_ptr.vmem [resolvable:$true] %s231
          %234 = dma.hbm_to_vmem [thread:$0]  %s229, 1024, %s232, %s220
        $region36: #{tpu_custom_call.1} parent=31 // pred_fallthru
          _
      $region32: #{tpu_custom_call.1} parent=5 // pred_fallthru
        _
      %p235 = scmp.le.s32.totalorder 1, %s19
      %p236 = scmp.lt.s32.totalorder %s19, 3
      %p237 = pnand %p235, %p236
      %p238 = pneg %p237
      // Predicated region
      $region37: #{tpu_custom_call.1} parent=5 // pred_check
        _
      $region38: #{tpu_custom_call.1} parent=5 // pred_check_branch
        %240 = sbr.rel (%p237) target = $region40
      $region39: #{tpu_custom_call.1} parent=5 // pred_region
        %s241 = ssub.s32 %s19, 1
        %s242 = sand.u32 %s32, 1
        %s243 = scalar_lea.sflag [#allocation6], %s242
        %s244 = sand.u32 %s32, 1
        %s245 = smul.addr %s244, 64
        %s246 = scalar_lea.vmem [#allocation5], %s245
        // Predicated region
        $region41: #{tpu_custom_call.1} parent=39 // pred_check
          %p247 = pneg %p45
        $region42: #{tpu_custom_call.1} parent=39 // pred_check_branch
          %249 = sbr.rel (%p247) target = $region44
        $region43: #{tpu_custom_call.1} parent=39 // pred_region
          %250 = dma.done %s243, 1024
        $region44: #{tpu_custom_call.1} parent=39 // pred_fallthru
          _
        // Predicated region
        $region45: #{tpu_custom_call.1} parent=39 // pred_check
          %p251 = pneg %p66
        $region46: #{tpu_custom_call.1} parent=39 // pred_check_branch
          %253 = sbr.rel (%p251) target = $region48
        $region47: #{tpu_custom_call.1} parent=39 // pred_region
          %254 = dma.done [#allocation9], 256
        $region48: #{tpu_custom_call.1} parent=39 // pred_fallthru
          _
        // Predicated region
        $region49: #{tpu_custom_call.1} parent=39 // pred_check
          %p255 = pneg %p87
        $region50: #{tpu_custom_call.1} parent=39 // pred_check_branch
          %257 = sbr.rel (%p255) target = $region52
        $region51: #{tpu_custom_call.1} parent=39 // pred_region
          %258 = dma.done [#allocation9], 384
        $region52: #{tpu_custom_call.1} parent=39 // pred_fallthru
          _
        // Predicated region
        $region53: #{tpu_custom_call.1} parent=39 // pred_check
          %p259 = pneg %p129
        $region54: #{tpu_custom_call.1} parent=39 // pred_check_branch
          %261 = sbr.rel (%p259) target = $region56
        $region55: #{tpu_custom_call.1} parent=39 // pred_region
          %262 = dma.done [#allocation12], 4096
        $region56: #{tpu_custom_call.1} parent=39 // pred_fallthru
          _
        %s263 = sand.u32 %s32, 1
        %s264 = scalar_lea.sflag [#allocation6], %s263
        %s265 = sand.u32 %s32, 1
        %s266 = smul.addr %s265, 64
        %s267 = scalar_lea.vmem [#allocation5], %s266
        %p268 = pneg %p45
        %p269 = pneg %p42
        %p270 = pneg %p66
        %p271 = pneg %p63
        %p272 = pneg %p87
        %p273 = pneg %p84
        %p274 = pneg %p108
        %p275 = pneg %p105
        %p276 = pneg %p129
        %p277 = pneg %p126
        %p278 = pneg %p155
        %p279 = pneg %p152
        %s280 = sand.u32 %s142, 1
        %s281 = scalar_lea.sflag [#allocation7], %s280
        %s282 = sand.u32 %s142, 1
        %s283 = smul.addr %s282, 128
        %s284 = scalar_lea.vmem [#allocation13], %s283
        %285 = vst [vmem:[#allocation2] sm:$0xf] 0.0
        %286 = vst [vmem:[#allocation2 + $0x44] sm:$0xf] 0.0
        %v287 = vld [vmem:[%s246] sm:$0xff]
        %v288 = vld [vmem:[%s246 + $0x8] sm:$0xff]
        %v289 = vld [vmem:[%s246 + $0x10] sm:$0xff]
        %v290 = vld [vmem:[%s246 + $0x18] sm:$0xff]
        %v291 = vld [vmem:[%s246 + $0x20] sm:$0xff]
        %v292 = vld [vmem:[%s246 + $0x28] sm:$0xff]
        %v293 = vld [vmem:[%s246 + $0x30] sm:$0xff]
        %v294 = vld [vmem:[%s246 + $0x38] sm:$0xff]
        %295 = vst [vmem:[#allocation2 + $0x4] sm:$0xff] %v287
        %296 = vst [vmem:[#allocation2 + $0xc] sm:$0xff] %v288
        %297 = vst [vmem:[#allocation2 + $0x14] sm:$0xff] %v289
        %298 = vst [vmem:[#allocation2 + $0x1c] sm:$0xff] %v290
        %299 = vst [vmem:[#allocation2 + $0x24] sm:$0xff] %v291
        %300 = vst [vmem:[#allocation2 + $0x2c] sm:$0xff] %v292
        %301 = vst [vmem:[#allocation2 + $0x34] sm:$0xff] %v293
        %302 = vst [vmem:[#allocation2 + $0x3c] sm:$0xff] %v294
        %v303 = vld [vmem:[#allocation2] sm:$0xff]
        %v304 = vld [vmem:[#allocation2 + $0x8] sm:$0xff]
        %v305 = vld [vmem:[#allocation2 + $0x10] sm:$0xff]
        %v306 = vld [vmem:[#allocation2 + $0x18] sm:$0xff]
        %v307 = vld [vmem:[#allocation2 + $0x20] sm:$0xff]
        %v308 = vld [vmem:[#allocation2 + $0x28] sm:$0xff]
        %v309 = vld [vmem:[#allocation2 + $0x30] sm:$0xff]
        %v310 = vld [vmem:[#allocation2 + $0x38] sm:$0xff]
        %v311 = vld [vmem:[#allocation2 + $0x40] sm:$0xf]
        %v312 = vld [vmem:[#allocation11] ss:$8 sm:$0xf]
        %v313 = vld [vmem:[#allocation11] ss:$8 sm:$0xf0]
        %v314 = vor.u32 %v312, %v313
        %s315 = scalar_lea.vmem [#allocation11], 64
        %v316 = vld [vmem:[%s315] ss:$8 sm:$0xf]
        %v317 = vld [vmem:[%s315] ss:$8 sm:$0xf0]
        %v318 = vor.u32 %v316, %v317
        %v321 = vlaneseq
        %v322 = vshrl.u32 %v321, 7
        %v323 = vsub.s32 0, %v322
        %v324 = vrot.slane %v314, %v323
        %v325 = vlaneseq
        %v326 = vshrl.u32 %v325, 7
        %v327 = vsub.s32 1, %v326
        %v328 = vrot.slane %v314, %v327
        %v329 = vlaneseq
        %v330 = vshrl.u32 %v329, 7
        %v331 = vsub.s32 2, %v330
        %v332 = vrot.slane %v314, %v331
        %v333 = vlaneseq
        %v334 = vshrl.u32 %v333, 7
        %v335 = vsub.s32 3, %v334
        %v336 = vrot.slane %v314, %v335
        %v337 = vlaneseq
        %v338 = vshrl.u32 %v337, 7
        %v339 = vsub.s32 4, %v338
        %v340 = vrot.slane %v314, %v339
        %v341 = vlaneseq
        %v342 = vshrl.u32 %v341, 7
        %v343 = vsub.s32 5, %v342
        %v344 = vrot.slane %v314, %v343
        %v345 = vlaneseq
        %v346 = vshrl.u32 %v345, 7
        %v347 = vsub.s32 6, %v346
        %v348 = vrot.slane %v314, %v347
        %v349 = vlaneseq
        %v350 = vshrl.u32 %v349, 7
        %v351 = vsub.s32 7, %v350
        %v352 = vrot.slane %v314, %v351
        %v353 = vlaneseq
        %v354 = vshrl.u32 %v353, 7
        %v355 = vsub.s32 0, %v354
        %v356 = vrot.slane %v318, %v355
        %v357 = vlaneseq
        %v358 = vshrl.u32 %v357, 7
        %v359 = vsub.s32 1, %v358
        %v360 = vrot.slane %v318, %v359
        %v361 = vlaneseq
        %v362 = vshrl.u32 %v361, 7
        %v363 = vsub.s32 2, %v362
        %v364 = vrot.slane %v318, %v363
        %v365 = vlaneseq
        %v366 = vshrl.u32 %v365, 7
        %v367 = vsub.s32 3, %v366
        %v368 = vrot.slane %v318, %v367
        %v369 = vlaneseq
        %v370 = vshrl.u32 %v369, 7
        %v371 = vsub.s32 4, %v370
        %v372 = vrot.slane %v318, %v371
        %v373 = vlaneseq
        %v374 = vshrl.u32 %v373, 7
        %v375 = vsub.s32 5, %v374
        %v376 = vrot.slane %v318, %v375
        %v377 = vlaneseq
        %v378 = vshrl.u32 %v377, 7
        %v379 = vsub.s32 6, %v378
        %v380 = vrot.slane %v318, %v379
        %v381 = vlaneseq
        %v382 = vshrl.u32 %v381, 7
        %v383 = vsub.s32 7, %v382
        %v384 = vrot.slane %v318, %v383
        %v385 = vcombine.low %v324, %v328
        %v386 = vcombine.low %v332, %v336
        %v387 = vcombine.low %v340, %v344
        %v388 = vcombine.low %v348, %v352
        %v389 = vcombine.low %v356, %v360
        %v390 = vcombine.low %v364, %v368
        %v391 = vcombine.low %v372, %v376
        %v392 = vcombine.low %v380, %v384
        %393 = vrot.lane.b32.xlu0 %v385, 111
        %v394 = vpop.permute.xlu0 %393
        %395 = vrot.lane.b32.xlu0 %v386, 111
        %v396 = vpop.permute.xlu0 %395
        %397 = vrot.lane.b32.xlu0 %v387, 111
        %v398 = vpop.permute.xlu0 %397
        %399 = vrot.lane.b32.xlu0 %v388, 111
        %v400 = vpop.permute.xlu0 %399
        %401 = vrot.lane.b32.xlu0 %v389, 111
        %v402 = vpop.permute.xlu0 %401
        %403 = vrot.lane.b32.xlu0 %v390, 111
        %v404 = vpop.permute.xlu0 %403
        %405 = vrot.lane.b32.xlu0 %v391, 111
        %v406 = vpop.permute.xlu0 %405
        %407 = vrot.lane.b32.xlu0 %v392, 111
        %v408 = vpop.permute.xlu0 %407
        %v409 = vrot.slane %v394, 4
        %v410 = vrot.slane %v396, 4
        %v411 = vrot.slane %v398, 4
        %v412 = vrot.slane %v400, 4
        %v413 = vrot.slane %v402, 4
        %v414 = vrot.slane %v404, 4
        %v415 = vrot.slane %v406, 4
        %v416 = vrot.slane %v408, 4
        %vm417 = vcmask 908288
        %v418 = vsel %vm417, %v409, %v394
        %vm419 = vcmask 1043456
        %v420 = vsel %vm419, %v409, %v410
        %v421 = vsel %vm417, %v420, %v396
        %v422 = vsel %vm419, %v410, %v411
        %v423 = vsel %vm417, %v422, %v398
        %v424 = vsel %vm419, %v411, %v412
        %v425 = vsel %vm417, %v424, %v400
        %v426 = vsel %vm419, %v412, %v413
        %v427 = vsel %vm417, %v426, %v402
        %v428 = vsel %vm419, %v413, %v414
        %v429 = vsel %vm417, %v428, %v404
        %v430 = vsel %vm419, %v414, %v415
        %v431 = vsel %vm417, %v430, %v406
        %v432 = vsel %vm419, %v415, %v416
        %v433 = vsel %vm417, %v432, %v408
        %v443 = vmul.f32 %v303, %v418
        %v444 = vmul.f32 %v304, %v421
        %v445 = vmul.f32 %v305, %v423
        %v446 = vmul.f32 %v306, %v425
        %v447 = vmul.f32 %v307, %v427
        %v448 = vmul.f32 %v308, %v429
        %v449 = vmul.f32 %v309, %v431
        %v450 = vmul.f32 %v310, %v433
        %v451 = vmul.f32 %v311, %v416
        %v461 = vcombine.high %v443, %v443
        %v462 = vcombine.high %v444, %v444
        %v463 = vcombine.high %v445, %v445
        %v464 = vcombine.high %v446, %v446
        %v465 = vcombine.high %v447, %v447
        %v466 = vcombine.high %v448, %v448
        %v467 = vcombine.high %v449, %v449
        %v468 = vcombine.high %v450, %v450
        %469 = vrot.lane.b32.xlu0 %v443, 17
        %v470 = vpop.permute.xlu0 %469
        %471 = vrot.lane.b32.xlu0 %v461, 17
        %v472 = vpop.permute.xlu0 %471
        %473 = vrot.lane.b32.xlu0 %v444, 17
        %v474 = vpop.permute.xlu0 %473
        %475 = vrot.lane.b32.xlu0 %v462, 17
        %v476 = vpop.permute.xlu0 %475
        %477 = vrot.lane.b32.xlu0 %v445, 17
        %v478 = vpop.permute.xlu0 %477
        %479 = vrot.lane.b32.xlu0 %v463, 17
        %v480 = vpop.permute.xlu0 %479
        %481 = vrot.lane.b32.xlu0 %v446, 17
        %v482 = vpop.permute.xlu0 %481
        %483 = vrot.lane.b32.xlu0 %v464, 17
        %v484 = vpop.permute.xlu0 %483
        %485 = vrot.lane.b32.xlu0 %v447, 17
        %v486 = vpop.permute.xlu0 %485
        %487 = vrot.lane.b32.xlu0 %v465, 17
        %v488 = vpop.permute.xlu0 %487
        %489 = vrot.lane.b32.xlu0 %v448, 17
        %v490 = vpop.permute.xlu0 %489
        %491 = vrot.lane.b32.xlu0 %v466, 17
        %v492 = vpop.permute.xlu0 %491
        %493 = vrot.lane.b32.xlu0 %v449, 17
        %v494 = vpop.permute.xlu0 %493
        %495 = vrot.lane.b32.xlu0 %v467, 17
        %v496 = vpop.permute.xlu0 %495
        %497 = vrot.lane.b32.xlu0 %v450, 17
        %v498 = vpop.permute.xlu0 %497
        %499 = vrot.lane.b32.xlu0 %v468, 17
        %v500 = vpop.permute.xlu0 %499
        %501 = vrot.lane.b32.xlu0 %v451, 17
        %v502 = vpop.permute.xlu0 %501
        %vm503 = vcmask 138240
        %v504 = vsel %vm503, %v470, %v472
        %v505 = vsel %vm503, %v472, %v474
        %v506 = vsel %vm503, %v474, %v476
        %v507 = vsel %vm503, %v476, %v478
        %v508 = vsel %vm503, %v478, %v480
        %v509 = vsel %vm503, %v480, %v482
        %v510 = vsel %vm503, %v482, %v484
        %v511 = vsel %vm503, %v484, %v486
        %v512 = vsel %vm503, %v486, %v488
        %v513 = vsel %vm503, %v488, %v490
        %v514 = vsel %vm503, %v490, %v492
        %v515 = vsel %vm503, %v492, %v494
        %v516 = vsel %vm503, %v494, %v496
        %v517 = vsel %vm503, %v496, %v498
        %v518 = vsel %vm503, %v498, %v500
        %v519 = vsel %vm503, %v500, %v502
        %536 = vst [vmem:[#allocation3] sm:$0xf] %v504
        %537 = vst [vmem:[#allocation3 + $0x8] sm:$0xf] %v505
        %538 = vst [vmem:[#allocation3 + $0x10] sm:$0xf] %v506
        %539 = vst [vmem:[#allocation3 + $0x18] sm:$0xf] %v507
        %540 = vst [vmem:[#allocation3 + $0x20] sm:$0xf] %v508
        %541 = vst [vmem:[#allocation3 + $0x28] sm:$0xf] %v509
        %542 = vst [vmem:[#allocation3 + $0x30] sm:$0xf] %v510
        %543 = vst [vmem:[#allocation3 + $0x38] sm:$0xf] %v511
        %544 = vst [vmem:[#allocation3 + $0x40] sm:$0xf] %v512
        %545 = vst [vmem:[#allocation3 + $0x48] sm:$0xf] %v513
        %546 = vst [vmem:[#allocation3 + $0x50] sm:$0xf] %v514
        %547 = vst [vmem:[#allocation3 + $0x58] sm:$0xf] %v515
        %548 = vst [vmem:[#allocation3 + $0x60] sm:$0xf] %v516
        %549 = vst [vmem:[#allocation3 + $0x68] sm:$0xf] %v517
        %550 = vst [vmem:[#allocation3 + $0x70] sm:$0xf] %v518
        %551 = vst [vmem:[#allocation3 + $0x78] sm:$0xf] %v519
        %v552 = vld [vmem:[#allocation2] sm:$0xff]
        %v553 = vld [vmem:[#allocation2 + $0x8] sm:$0xff]
        %v554 = vld [vmem:[#allocation2 + $0x10] sm:$0xff]
        %v555 = vld [vmem:[#allocation2 + $0x18] sm:$0xff]
        %v556 = vld [vmem:[#allocation2 + $0x20] sm:$0xff]
        %v557 = vld [vmem:[#allocation2 + $0x28] sm:$0xff]
        %v558 = vld [vmem:[#allocation2 + $0x30] sm:$0xff]
        %v559 = vld [vmem:[#allocation2 + $0x38] sm:$0xff]
        %v560 = vld [vmem:[#allocation2 + $0x40] sm:$0xf]
        %s561 = scalar_lea.vmem [#allocation11], 1
        %v562 = vld [vmem:[%s561] ss:$8 sm:$0xf]
        %v563 = vld [vmem:[%s561] ss:$8 sm:$0xf0]
        %v564 = vor.u32 %v562, %v563
        %s565 = scalar_lea.vmem [#allocation11], 65
        %v566 = vld [vmem:[%s565] ss:$8 sm:$0xf]
        %v567 = vld [vmem:[%s565] ss:$8 sm:$0xf0]
        %v568 = vor.u32 %v566, %v567
        %v571 = vlaneseq
        %v572 = vshrl.u32 %v571, 7
        %v573 = vsub.s32 0, %v572
        %v574 = vrot.slane %v564, %v573
        %v575 = vlaneseq
        %v576 = vshrl.u32 %v575, 7
        %v577 = vsub.s32 1, %v576
        %v578 = vrot.slane %v564, %v577
        %v579 = vlaneseq
        %v580 = vshrl.u32 %v579, 7
        %v581 = vsub.s32 2, %v580
        %v582 = vrot.slane %v564, %v581
        %v583 = vlaneseq
        %v584 = vshrl.u32 %v583, 7
        %v585 = vsub.s32 3, %v584
        %v586 = vrot.slane %v564, %v585
        %v587 = vlaneseq
        %v588 = vshrl.u32 %v587, 7
        %v589 = vsub.s32 4, %v588
        %v590 = vrot.slane %v564, %v589
        %v591 = vlaneseq
        %v592 = vshrl.u32 %v591, 7
        %v593 = vsub.s32 5, %v592
        %v594 = vrot.slane %v564, %v593
        %v595 = vlaneseq
        %v596 = vshrl.u32 %v595, 7
        %v597 = vsub.s32 6, %v596
        %v598 = vrot.slane %v564, %v597
        %v599 = vlaneseq
        %v600 = vshrl.u32 %v599, 7
        %v601 = vsub.s32 7, %v600
        %v602 = vrot.slane %v564, %v601
        %v603 = vlaneseq
        %v604 = vshrl.u32 %v603, 7
        %v605 = vsub.s32 0, %v604
        %v606 = vrot.slane %v568, %v605
        %v607 = vlaneseq
        %v608 = vshrl.u32 %v607, 7
        %v609 = vsub.s32 1, %v608
        %v610 = vrot.slane %v568, %v609
        %v611 = vlaneseq
        %v612 = vshrl.u32 %v611, 7
        %v613 = vsub.s32 2, %v612
        %v614 = vrot.slane %v568, %v613
        %v615 = vlaneseq
        %v616 = vshrl.u32 %v615, 7
        %v617 = vsub.s32 3, %v616
        %v618 = vrot.slane %v568, %v617
        %v619 = vlaneseq
        %v620 = vshrl.u32 %v619, 7
        %v621 = vsub.s32 4, %v620
        %v622 = vrot.slane %v568, %v621
        %v623 = vlaneseq
        %v624 = vshrl.u32 %v623, 7
        %v625 = vsub.s32 5, %v624
        %v626 = vrot.slane %v568, %v625
        %v627 = vlaneseq
        %v628 = vshrl.u32 %v627, 7
        %v629 = vsub.s32 6, %v628
        %v630 = vrot.slane %v568, %v629
        %v631 = vlaneseq
        %v632 = vshrl.u32 %v631, 7
        %v633 = vsub.s32 7, %v632
        %v634 = vrot.slane %v568, %v633
        %v635 = vcombine.low %v574, %v578
        %v636 = vcombine.low %v582, %v586
        %v637 = vcombine.low %v590, %v594
        %v638 = vcombine.low %v598, %v602
        %v639 = vcombine.low %v606, %v610
        %v640 = vcombine.low %v614, %v618
        %v641 = vcombine.low %v622, %v626
        %v642 = vcombine.low %v630, %v634
        %643 = vrot.lane.b32.xlu0 %v635, 112
        %v644 = vpop.permute.xlu0 %643
        %645 = vrot.lane.b32.xlu0 %v636, 112
        %v646 = vpop.permute.xlu0 %645
        %647 = vrot.lane.b32.xlu0 %v637, 112
        %v648 = vpop.permute.xlu0 %647
        %649 = vrot.lane.b32.xlu0 %v638, 112
        %v650 = vpop.permute.xlu0 %649
        %651 = vrot.lane.b32.xlu0 %v639, 112
        %v652 = vpop.permute.xlu0 %651
        %653 = vrot.lane.b32.xlu0 %v640, 112
        %v654 = vpop.permute.xlu0 %653
        %655 = vrot.lane.b32.xlu0 %v641, 112
        %v656 = vpop.permute.xlu0 %655
        %657 = vrot.lane.b32.xlu0 %v642, 112
        %v658 = vpop.permute.xlu0 %657
        %v659 = vrot.slane %v644, 4
        %v660 = vrot.slane %v646, 4
        %v661 = vrot.slane %v648, 4
        %v662 = vrot.slane %v650, 4
        %v663 = vrot.slane %v652, 4
        %v664 = vrot.slane %v654, 4
        %v665 = vrot.slane %v656, 4
        %v666 = vrot.slane %v658, 4
        %vm667 = vcmask 916480
        %v668 = vsel %vm667, %v659, %v644
        %v669 = vsel %vm419, %v659, %v660
        %v670 = vsel %vm667, %v669, %v646
        %v671 = vsel %vm419, %v660, %v661
        %v672 = vsel %vm667, %v671, %v648
        %v673 = vsel %vm419, %v661, %v662
        %v674 = vsel %vm667, %v673, %v650
        %v675 = vsel %vm419, %v662, %v663
        %v676 = vsel %vm667, %v675, %v652
        %v677 = vsel %vm419, %v663, %v664
        %v678 = vsel %vm667, %v677, %v654
        %v679 = vsel %vm419, %v664, %v665
        %v680 = vsel %vm667, %v679, %v656
        %v681 = vsel %vm419, %v665, %v666
        %v682 = vsel %vm667, %v681, %v658
        %v692 = vmul.f32 %v552, %v668
        %v693 = vmul.f32 %v553, %v670
        %v694 = vmul.f32 %v554, %v672
        %v695 = vmul.f32 %v555, %v674
        %v696 = vmul.f32 %v556, %v676
        %v697 = vmul.f32 %v557, %v678
        %v698 = vmul.f32 %v558, %v680
        %v699 = vmul.f32 %v559, %v682
        %v700 = vmul.f32 %v560, %v666
        %v710 = vcombine.low %v692, %v692
        %v711 = vcombine.low %v693, %v693
        %v712 = vcombine.low %v694, %v694
        %v713 = vcombine.low %v695, %v695
        %v714 = vcombine.low %v696, %v696
        %v715 = vcombine.low %v697, %v697
        %v716 = vcombine.low %v698, %v698
        %v717 = vcombine.low %v699, %v699
        %v718 = vcombine.low %v700, %v700
        %719 = vrot.lane.b32.xlu0 %v710, 16
        %v720 = vpop.permute.xlu0 %719
        %721 = vrot.lane.b32.xlu0 %v692, 16
        %v722 = vpop.permute.xlu0 %721
        %723 = vrot.lane.b32.xlu0 %v711, 16
        %v724 = vpop.permute.xlu0 %723
        %725 = vrot.lane.b32.xlu0 %v693, 16
        %v726 = vpop.permute.xlu0 %725
        %727 = vrot.lane.b32.xlu0 %v712, 16
        %v728 = vpop.permute.xlu0 %727
        %729 = vrot.lane.b32.xlu0 %v694, 16
        %v730 = vpop.permute.xlu0 %729
        %731 = vrot.lane.b32.xlu0 %v713, 16
        %v732 = vpop.permute.xlu0 %731
        %733 = vrot.lane.b32.xlu0 %v695, 16
        %v734 = vpop.permute.xlu0 %733
        %735 = vrot.lane.b32.xlu0 %v714, 16
        %v736 = vpop.permute.xlu0 %735
        %737 = vrot.lane.b32.xlu0 %v696, 16
        %v738 = vpop.permute.xlu0 %737
        %739 = vrot.lane.b32.xlu0 %v715, 16
        %v740 = vpop.permute.xlu0 %739
        %741 = vrot.lane.b32.xlu0 %v697, 16
        %v742 = vpop.permute.xlu0 %741
        %743 = vrot.lane.b32.xlu0 %v716, 16
        %v744 = vpop.permute.xlu0 %743
        %745 = vrot.lane.b32.xlu0 %v698, 16
        %v746 = vpop.permute.xlu0 %745
        %747 = vrot.lane.b32.xlu0 %v717, 16
        %v748 = vpop.permute.xlu0 %747
        %749 = vrot.lane.b32.xlu0 %v699, 16
        %v750 = vpop.permute.xlu0 %749
        %751 = vrot.lane.b32.xlu0 %v718, 16
        %v752 = vpop.permute.xlu0 %751
        %vm753 = vcmask 130048
        %v754 = vsel %vm753, %v720, %v722
        %v755 = vsel %vm753, %v722, %v724
        %v756 = vsel %vm753, %v724, %v726
        %v757 = vsel %vm753, %v726, %v728
        %v758 = vsel %vm753, %v728, %v730
        %v759 = vsel %vm753, %v730, %v732
        %v760 = vsel %vm753, %v732, %v734
        %v761 = vsel %vm753, %v734, %v736
        %v762 = vsel %vm753, %v736, %v738
        %v763 = vsel %vm753, %v738, %v740
        %v764 = vsel %vm753, %v740, %v742
        %v765 = vsel %vm753, %v742, %v744
        %v766 = vsel %vm753, %v744, %v746
        %v767 = vsel %vm753, %v746, %v748
        %v768 = vsel %vm753, %v748, %v750
        %v769 = vsel %vm753, %v750, %v752
        %786 = vst [vmem:[#allocation3] sm:$0xf0] %v754
        %787 = vst [vmem:[#allocation3 + $0x8] sm:$0xf0] %v755
        %788 = vst [vmem:[#allocation3 + $0x10] sm:$0xf0] %v756
        %789 = vst [vmem:[#allocation3 + $0x18] sm:$0xf0] %v757
        %790 = vst [vmem:[#allocation3 + $0x20] sm:$0xf0] %v758
        %791 = vst [vmem:[#allocation3 + $0x28] sm:$0xf0] %v759
        %792 = vst [vmem:[#allocation3 + $0x30] sm:$0xf0] %v760
        %793 = vst [vmem:[#allocation3 + $0x38] sm:$0xf0] %v761
        %794 = vst [vmem:[#allocation3 + $0x40] sm:$0xf0] %v762
        %795 = vst [vmem:[#allocation3 + $0x48] sm:$0xf0] %v763
        %796 = vst [vmem:[#allocation3 + $0x50] sm:$0xf0] %v764
        %797 = vst [vmem:[#allocation3 + $0x58] sm:$0xf0] %v765
        %798 = vst [vmem:[#allocation3 + $0x60] sm:$0xf0] %v766
        %799 = vst [vmem:[#allocation3 + $0x68] sm:$0xf0] %v767
        %800 = vst [vmem:[#allocation3 + $0x70] sm:$0xf0] %v768
        %801 = vst [vmem:[#allocation3 + $0x78] sm:$0xf0] %v769
        %v802 = vld [vmem:[#allocation2] sm:$0xff]
        %v803 = vld [vmem:[#allocation2 + $0x8] sm:$0xff]
        %v804 = vld [vmem:[#allocation2 + $0x10] sm:$0xff]
        %v805 = vld [vmem:[#allocation2 + $0x18] sm:$0xff]
        %v806 = vld [vmem:[#allocation2 + $0x20] sm:$0xff]
        %v807 = vld [vmem:[#allocation2 + $0x28] sm:$0xff]
        %v808 = vld [vmem:[#allocation2 + $0x30] sm:$0xff]
        %v809 = vld [vmem:[#allocation2 + $0x38] sm:$0xff]
        %v810 = vld [vmem:[#allocation2 + $0x40] sm:$0xf]
        %s811 = scalar_lea.vmem [#allocation11], 2
        %v812 = vld [vmem:[%s811] ss:$8 sm:$0xf]
        %v813 = vld [vmem:[%s811] ss:$8 sm:$0xf0]
        %v814 = vor.u32 %v812, %v813
        %s815 = scalar_lea.vmem [#allocation11], 66
        %v816 = vld [vmem:[%s815] ss:$8 sm:$0xf]
        %v817 = vld [vmem:[%s815] ss:$8 sm:$0xf0]
        %v818 = vor.u32 %v816, %v817
        %v821 = vlaneseq
        %v822 = vshrl.u32 %v821, 7
        %v823 = vsub.s32 0, %v822
        %v824 = vrot.slane %v814, %v823
        %v825 = vlaneseq
        %v826 = vshrl.u32 %v825, 7
        %v827 = vsub.s32 1, %v826
        %v828 = vrot.slane %v814, %v827
        %v829 = vlaneseq
        %v830 = vshrl.u32 %v829, 7
        %v831 = vsub.s32 2, %v830
        %v832 = vrot.slane %v814, %v831
        %v833 = vlaneseq
        %v834 = vshrl.u32 %v833, 7
        %v835 = vsub.s32 3, %v834
        %v836 = vrot.slane %v814, %v835
        %v837 = vlaneseq
        %v838 = vshrl.u32 %v837, 7
        %v839 = vsub.s32 4, %v838
        %v840 = vrot.slane %v814, %v839
        %v841 = vlaneseq
        %v842 = vshrl.u32 %v841, 7
        %v843 = vsub.s32 5, %v842
        %v844 = vrot.slane %v814, %v843
        %v845 = vlaneseq
        %v846 = vshrl.u32 %v845, 7
        %v847 = vsub.s32 6, %v846
        %v848 = vrot.slane %v814, %v847
        %v849 = vlaneseq
        %v850 = vshrl.u32 %v849, 7
        %v851 = vsub.s32 7, %v850
        %v852 = vrot.slane %v814, %v851
        %v853 = vlaneseq
        %v854 = vshrl.u32 %v853, 7
        %v855 = vsub.s32 0, %v854
        %v856 = vrot.slane %v818, %v855
        %v857 = vlaneseq
        %v858 = vshrl.u32 %v857, 7
        %v859 = vsub.s32 1, %v858
        %v860 = vrot.slane %v818, %v859
        %v861 = vlaneseq
        %v862 = vshrl.u32 %v861, 7
        %v863 = vsub.s32 2, %v862
        %v864 = vrot.slane %v818, %v863
        %v865 = vlaneseq
        %v866 = vshrl.u32 %v865, 7
        %v867 = vsub.s32 3, %v866
        %v868 = vrot.slane %v818, %v867
        %v869 = vlaneseq
        %v870 = vshrl.u32 %v869, 7
        %v871 = vsub.s32 4, %v870
        %v872 = vrot.slane %v818, %v871
        %v873 = vlaneseq
        %v874 = vshrl.u32 %v873, 7
        %v875 = vsub.s32 5, %v874
        %v876 = vrot.slane %v818, %v875
        %v877 = vlaneseq
        %v878 = vshrl.u32 %v877, 7
        %v879 = vsub.s32 6, %v878
        %v880 = vrot.slane %v818, %v879
        %v881 = vlaneseq
        %v882 = vshrl.u32 %v881, 7
        %v883 = vsub.s32 7, %v882
        %v884 = vrot.slane %v818, %v883
        %v885 = vcombine.low %v824, %v828
        %v886 = vcombine.low %v832, %v836
        %v887 = vcombine.low %v840, %v844
        %v888 = vcombine.low %v848, %v852
        %v889 = vcombine.low %v856, %v860
        %v890 = vcombine.low %v864, %v868
        %v891 = vcombine.low %v872, %v876
        %v892 = vcombine.low %v880, %v884
        %893 = vrot.lane.b32.xlu0 %v885, 113
        %v894 = vpop.permute.xlu0 %893
        %895 = vrot.lane.b32.xlu0 %v886, 113
        %v896 = vpop.permute.xlu0 %895
        %897 = vrot.lane.b32.xlu0 %v887, 113
        %v898 = vpop.permute.xlu0 %897
        %899 = vrot.lane.b32.xlu0 %v888, 113
        %v900 = vpop.permute.xlu0 %899
        %901 = vrot.lane.b32.xlu0 %v889, 113
        %v902 = vpop.permute.xlu0 %901
        %903 = vrot.lane.b32.xlu0 %v890, 113
        %v904 = vpop.permute.xlu0 %903
        %905 = vrot.lane.b32.xlu0 %v891, 113
        %v906 = vpop.permute.xlu0 %905
        %907 = vrot.lane.b32.xlu0 %v892, 113
        %v908 = vpop.permute.xlu0 %907
        %v909 = vrot.slane %v894, 4
        %v910 = vrot.slane %v896, 4
        %v911 = vrot.slane %v898, 4
        %v912 = vrot.slane %v900, 4
        %v913 = vrot.slane %v902, 4
        %v914 = vrot.slane %v904, 4
        %v915 = vrot.slane %v906, 4
        %v916 = vrot.slane %v908, 4
        %vm917 = vcmask 924672
        %v918 = vsel %vm917, %v909, %v894
        %v919 = vsel %vm419, %v909, %v910
        %v920 = vsel %vm917, %v919, %v896
        %v921 = vsel %vm419, %v910, %v911
        %v922 = vsel %vm917, %v921, %v898
        %v923 = vsel %vm419, %v911, %v912
        %v924 = vsel %vm917, %v923, %v900
        %v925 = vsel %vm419, %v912, %v913
        %v926 = vsel %vm917, %v925, %v902
        %v927 = vsel %vm419, %v913, %v914
        %v928 = vsel %vm917, %v927, %v904
        %v929 = vsel %vm419, %v914, %v915
        %v930 = vsel %vm917, %v929, %v906
        %v931 = vsel %vm419, %v915, %v916
        %v932 = vsel %vm917, %v931, %v908
        %v942 = vmul.f32 %v802, %v918
        %v943 = vmul.f32 %v803, %v920
        %v944 = vmul.f32 %v804, %v922
        %v945 = vmul.f32 %v805, %v924
        %v946 = vmul.f32 %v806, %v926
        %v947 = vmul.f32 %v807, %v928
        %v948 = vmul.f32 %v808, %v930
        %v949 = vmul.f32 %v809, %v932
        %v950 = vmul.f32 %v810, %v916
        %v960 = vcombine.high %v942, %v942
        %v961 = vcombine.high %v943, %v943
        %v962 = vcombine.high %v944, %v944
        %v963 = vcombine.high %v945, %v945
        %v964 = vcombine.high %v946, %v946
        %v965 = vcombine.high %v947, %v947
        %v966 = vcombine.high %v948, %v948
        %v967 = vcombine.high %v949, %v949
        %968 = vrot.lane.b32.xlu0 %v942, 15
        %v969 = vpop.permute.xlu0 %968
        %970 = vrot.lane.b32.xlu0 %v960, 15
        %v971 = vpop.permute.xlu0 %970
        %972 = vrot.lane.b32.xlu0 %v943, 15
        %v973 = vpop.permute.xlu0 %972
        %974 = vrot.lane.b32.xlu0 %v961, 15
        %v975 = vpop.permute.xlu0 %974
        %976 = vrot.lane.b32.xlu0 %v944, 15
        %v977 = vpop.permute.xlu0 %976
        %978 = vrot.lane.b32.xlu0 %v962, 15
        %v979 = vpop.permute.xlu0 %978
        %980 = vrot.lane.b32.xlu0 %v945, 15
        %v981 = vpop.permute.xlu0 %980
        %982 = vrot.lane.b32.xlu0 %v963, 15
        %v983 = vpop.permute.xlu0 %982
        %984 = vrot.lane.b32.xlu0 %v946, 15
        %v985 = vpop.permute.xlu0 %984
        %986 = vrot.lane.b32.xlu0 %v964, 15
        %v987 = vpop.permute.xlu0 %986
        %988 = vrot.lane.b32.xlu0 %v947, 15
        %v989 = vpop.permute.xlu0 %988
        %990 = vrot.lane.b32.xlu0 %v965, 15
        %v991 = vpop.permute.xlu0 %990
        %992 = vrot.lane.b32.xlu0 %v948, 15
        %v993 = vpop.permute.xlu0 %992
        %994 = vrot.lane.b32.xlu0 %v966, 15
        %v995 = vpop.permute.xlu0 %994
        %996 = vrot.lane.b32.xlu0 %v949, 15
        %v997 = vpop.permute.xlu0 %996
        %998 = vrot.lane.b32.xlu0 %v967, 15
        %v999 = vpop.permute.xlu0 %998
        %1000 = vrot.lane.b32.xlu0 %v950, 15
        %v1001 = vpop.permute.xlu0 %1000
        %vm1002 = vcmask 121856
        %v1003 = vsel %vm1002, %v969, %v971
        %v1004 = vsel %vm1002, %v971, %v973
        %v1005 = vsel %vm1002, %v973, %v975
        %v1006 = vsel %vm1002, %v975, %v977
        %v1007 = vsel %vm1002, %v977, %v979
        %v1008 = vsel %vm1002, %v979, %v981
        %v1009 = vsel %vm1002, %v981, %v983
        %v1010 = vsel %vm1002, %v983, %v985
        %v1011 = vsel %vm1002, %v985, %v987
        %v1012 = vsel %vm1002, %v987, %v989
        %v1013 = vsel %vm1002, %v989, %v991
        %v1014 = vsel %vm1002, %v991, %v993
        %v1015 = vsel %vm1002, %v993, %v995
        %v1016 = vsel %vm1002, %v995, %v997
        %v1017 = vsel %vm1002, %v997, %v999
        %v1018 = vsel %vm1002, %v999, %v1001
        %1035 = vst [vmem:[#allocation3 + $0x80] sm:$0xf] %v1003
        %1036 = vst [vmem:[#allocation3 + $0x88] sm:$0xf] %v1004
        %1037 = vst [vmem:[#allocation3 + $0x90] sm:$0xf] %v1005
        %1038 = vst [vmem:[#allocation3 + $0x98] sm:$0xf] %v1006
        %1039 = vst [vmem:[#allocation3 + $0xa0] sm:$0xf] %v1007
        %1040 = vst [vmem:[#allocation3 + $0xa8] sm:$0xf] %v1008
        %1041 = vst [vmem:[#allocation3 + $0xb0] sm:$0xf] %v1009
        %1042 = vst [vmem:[#allocation3 + $0xb8] sm:$0xf] %v1010
        %1043 = vst [vmem:[#allocation3 + $0xc0] sm:$0xf] %v1011
        %1044 = vst [vmem:[#allocation3 + $0xc8] sm:$0xf] %v1012
        %1045 = vst [vmem:[#allocation3 + $0xd0] sm:$0xf] %v1013
        %1046 = vst [vmem:[#allocation3 + $0xd8] sm:$0xf] %v1014
        %1047 = vst [vmem:[#allocation3 + $0xe0] sm:$0xf] %v1015
        %1048 = vst [vmem:[#allocation3 + $0xe8] sm:$0xf] %v1016
        %1049 = vst [vmem:[#allocation3 + $0xf0] sm:$0xf] %v1017
        %1050 = vst [vmem:[#allocation3 + $0xf8] sm:$0xf] %v1018
        %v1051 = vld [vmem:[#allocation2] sm:$0xff]
        %v1052 = vld [vmem:[#allocation2 + $0x8] sm:$0xff]
        %v1053 = vld [vmem:[#allocation2 + $0x10] sm:$0xff]
        %v1054 = vld [vmem:[#allocation2 + $0x18] sm:$0xff]
        %v1055 = vld [vmem:[#allocation2 + $0x20] sm:$0xff]
        %v1056 = vld [vmem:[#allocation2 + $0x28] sm:$0xff]
        %v1057 = vld [vmem:[#allocation2 + $0x30] sm:$0xff]
        %v1058 = vld [vmem:[#allocation2 + $0x38] sm:$0xff]
        %v1059 = vld [vmem:[#allocation2 + $0x40] sm:$0xf]
        %s1060 = scalar_lea.vmem [#allocation11], 3
        %v1061 = vld [vmem:[%s1060] ss:$8 sm:$0xf]
        %v1062 = vld [vmem:[%s1060] ss:$8 sm:$0xf0]
        %v1063 = vor.u32 %v1061, %v1062
        %s1064 = scalar_lea.vmem [#allocation11], 67
        %v1065 = vld [vmem:[%s1064] ss:$8 sm:$0xf]
        %v1066 = vld [vmem:[%s1064] ss:$8 sm:$0xf0]
        %v1067 = vor.u32 %v1065, %v1066
        %v1070 = vlaneseq
        %v1071 = vshrl.u32 %v1070, 7
        %v1072 = vsub.s32 0, %v1071
        %v1073 = vrot.slane %v1063, %v1072
        %v1074 = vlaneseq
        %v1075 = vshrl.u32 %v1074, 7
        %v1076 = vsub.s32 1, %v1075
        %v1077 = vrot.slane %v1063, %v1076
        %v1078 = vlaneseq
        %v1079 = vshrl.u32 %v1078, 7
        %v1080 = vsub.s32 2, %v1079
        %v1081 = vrot.slane %v1063, %v1080
        %v1082 = vlaneseq
        %v1083 = vshrl.u32 %v1082, 7
        %v1084 = vsub.s32 3, %v1083
        %v1085 = vrot.slane %v1063, %v1084
        %v1086 = vlaneseq
        %v1087 = vshrl.u32 %v1086, 7
        %v1088 = vsub.s32 4, %v1087
        %v1089 = vrot.slane %v1063, %v1088
        %v1090 = vlaneseq
        %v1091 = vshrl.u32 %v1090, 7
        %v1092 = vsub.s32 5, %v1091
        %v1093 = vrot.slane %v1063, %v1092
        %v1094 = vlaneseq
        %v1095 = vshrl.u32 %v1094, 7
        %v1096 = vsub.s32 6, %v1095
        %v1097 = vrot.slane %v1063, %v1096
        %v1098 = vlaneseq
        %v1099 = vshrl.u32 %v1098, 7
        %v1100 = vsub.s32 7, %v1099
        %v1101 = vrot.slane %v1063, %v1100
        %v1102 = vlaneseq
        %v1103 = vshrl.u32 %v1102, 7
        %v1104 = vsub.s32 0, %v1103
        %v1105 = vrot.slane %v1067, %v1104
        %v1106 = vlaneseq
        %v1107 = vshrl.u32 %v1106, 7
        %v1108 = vsub.s32 1, %v1107
        %v1109 = vrot.slane %v1067, %v1108
        %v1110 = vlaneseq
        %v1111 = vshrl.u32 %v1110, 7
        %v1112 = vsub.s32 2, %v1111
        %v1113 = vrot.slane %v1067, %v1112
        %v1114 = vlaneseq
        %v1115 = vshrl.u32 %v1114, 7
        %v1116 = vsub.s32 3, %v1115
        %v1117 = vrot.slane %v1067, %v1116
        %v1118 = vlaneseq
        %v1119 = vshrl.u32 %v1118, 7
        %v1120 = vsub.s32 4, %v1119
        %v1121 = vrot.slane %v1067, %v1120
        %v1122 = vlaneseq
        %v1123 = vshrl.u32 %v1122, 7
        %v1124 = vsub.s32 5, %v1123
        %v1125 = vrot.slane %v1067, %v1124
        %v1126 = vlaneseq
        %v1127 = vshrl.u32 %v1126, 7
        %v1128 = vsub.s32 6, %v1127
        %v1129 = vrot.slane %v1067, %v1128
        %v1130 = vlaneseq
        %v1131 = vshrl.u32 %v1130, 7
        %v1132 = vsub.s32 7, %v1131
        %v1133 = vrot.slane %v1067, %v1132
        %v1134 = vcombine.low %v1073, %v1077
        %v1135 = vcombine.low %v1081, %v1085
        %v1136 = vcombine.low %v1089, %v1093
        %v1137 = vcombine.low %v1097, %v1101
        %v1138 = vcombine.low %v1105, %v1109
        %v1139 = vcombine.low %v1113, %v1117
        %v1140 = vcombine.low %v1121, %v1125
        %v1141 = vcombine.low %v1129, %v1133
        %1142 = vrot.lane.b32.xlu0 %v1134, 127
        %v1143 = vpop.permute.xlu0 %1142
        %1144 = vrot.lane.b32.xlu0 %v1135, 127
        %v1145 = vpop.permute.xlu0 %1144
        %1146 = vrot.lane.b32.xlu0 %v1136, 127
        %v1147 = vpop.permute.xlu0 %1146
        %1148 = vrot.lane.b32.xlu0 %v1137, 127
        %v1149 = vpop.permute.xlu0 %1148
        %1150 = vrot.lane.b32.xlu0 %v1138, 127
        %v1151 = vpop.permute.xlu0 %1150
        %1152 = vrot.lane.b32.xlu0 %v1139, 127
        %v1153 = vpop.permute.xlu0 %1152
        %1154 = vrot.lane.b32.xlu0 %v1140, 127
        %v1155 = vpop.permute.xlu0 %1154
        %1156 = vrot.lane.b32.xlu0 %v1141, 127
        %v1157 = vpop.permute.xlu0 %1156
        %v1158 = vrot.slane %v1143, 4
        %v1159 = vrot.slane %v1145, 4
        %v1160 = vrot.slane %v1147, 4
        %v1161 = vrot.slane %v1149, 4
        %v1162 = vrot.slane %v1151, 4
        %v1163 = vrot.slane %v1153, 4
        %v1164 = vrot.slane %v1155, 4
        %v1165 = vrot.slane %v1157, 4
        %vm1166 = vcmask 1039360
        %v1167 = vsel %vm1166, %v1158, %v1143
        %v1168 = vsel %vm419, %v1158, %v1159
        %v1169 = vsel %vm1166, %v1168, %v1145
        %v1170 = vsel %vm419, %v1159, %v1160
        %v1171 = vsel %vm1166, %v1170, %v1147
        %v1172 = vsel %vm419, %v1160, %v1161
        %v1173 = vsel %vm1166, %v1172, %v1149
        %v1174 = vsel %vm419, %v1161, %v1162
        %v1175 = vsel %vm1166, %v1174, %v1151
        %v1176 = vsel %vm419, %v1162, %v1163
        %v1177 = vsel %vm1166, %v1176, %v1153
        %v1178 = vsel %vm419, %v1163, %v1164
        %v1179 = vsel %vm1166, %v1178, %v1155
        %v1180 = vsel %vm419, %v1164, %v1165
        %v1181 = vsel %vm1166, %v1180, %v1157
        %v1191 = vmul.f32 %v1051, %v1167
        %v1192 = vmul.f32 %v1052, %v1169
        %v1193 = vmul.f32 %v1053, %v1171
        %v1194 = vmul.f32 %v1054, %v1173
        %v1195 = vmul.f32 %v1055, %v1175
        %v1196 = vmul.f32 %v1056, %v1177
        %v1197 = vmul.f32 %v1057, %v1179
        %v1198 = vmul.f32 %v1058, %v1181
        %v1199 = vmul.f32 %v1059, %v1165
        %v1209 = vcombine.low %v1191, %v1191
        %v1210 = vcombine.low %v1192, %v1192
        %v1211 = vcombine.low %v1193, %v1193
        %v1212 = vcombine.low %v1194, %v1194
        %v1213 = vcombine.low %v1195, %v1195
        %v1214 = vcombine.low %v1196, %v1196
        %v1215 = vcombine.low %v1197, %v1197
        %v1216 = vcombine.low %v1198, %v1198
        %v1217 = vcombine.low %v1199, %v1199
        %1218 = vrot.lane.b32.xlu0 %v1209, 1
        %v1219 = vpop.permute.xlu0 %1218
        %1220 = vrot.lane.b32.xlu0 %v1191, 1
        %v1221 = vpop.permute.xlu0 %1220
        %1222 = vrot.lane.b32.xlu0 %v1210, 1
        %v1223 = vpop.permute.xlu0 %1222
        %1224 = vrot.lane.b32.xlu0 %v1192, 1
        %v1225 = vpop.permute.xlu0 %1224
        %1226 = vrot.lane.b32.xlu0 %v1211, 1
        %v1227 = vpop.permute.xlu0 %1226
        %1228 = vrot.lane.b32.xlu0 %v1193, 1
        %v1229 = vpop.permute.xlu0 %1228
        %1230 = vrot.lane.b32.xlu0 %v1212, 1
        %v1231 = vpop.permute.xlu0 %1230
        %1232 = vrot.lane.b32.xlu0 %v1194, 1
        %v1233 = vpop.permute.xlu0 %1232
        %1234 = vrot.lane.b32.xlu0 %v1213, 1
        %v1235 = vpop.permute.xlu0 %1234
        %1236 = vrot.lane.b32.xlu0 %v1195, 1
        %v1237 = vpop.permute.xlu0 %1236
        %1238 = vrot.lane.b32.xlu0 %v1214, 1
        %v1239 = vpop.permute.xlu0 %1238
        %1240 = vrot.lane.b32.xlu0 %v1196, 1
        %v1241 = vpop.permute.xlu0 %1240
        %1242 = vrot.lane.b32.xlu0 %v1215, 1
        %v1243 = vpop.permute.xlu0 %1242
        %1244 = vrot.lane.b32.xlu0 %v1197, 1
        %v1245 = vpop.permute.xlu0 %1244
        %1246 = vrot.lane.b32.xlu0 %v1216, 1
        %v1247 = vpop.permute.xlu0 %1246
        %1248 = vrot.lane.b32.xlu0 %v1198, 1
        %v1249 = vpop.permute.xlu0 %1248
        %1250 = vrot.lane.b32.xlu0 %v1217, 1
        %v1251 = vpop.permute.xlu0 %1250
        %vm1252 = vcmask 7168
        %v1253 = vsel %vm1252, %v1219, %v1221
        %v1254 = vsel %vm1252, %v1221, %v1223
        %v1255 = vsel %vm1252, %v1223, %v1225
        %v1256 = vsel %vm1252, %v1225, %v1227
        %v1257 = vsel %vm1252, %v1227, %v1229
        %v1258 = vsel %vm1252, %v1229, %v1231
        %v1259 = vsel %vm1252, %v1231, %v1233
        %v1260 = vsel %vm1252, %v1233, %v1235
        %v1261 = vsel %vm1252, %v1235, %v1237
        %v1262 = vsel %vm1252, %v1237, %v1239
        %v1263 = vsel %vm1252, %v1239, %v1241
        %v1264 = vsel %vm1252, %v1241, %v1243
        %v1265 = vsel %vm1252, %v1243, %v1245
        %v1266 = vsel %vm1252, %v1245, %v1247
        %v1267 = vsel %vm1252, %v1247, %v1249
        %v1268 = vsel %vm1252, %v1249, %v1251
        %1285 = vst [vmem:[#allocation3 + $0x80] sm:$0xf0] %v1253
        %1286 = vst [vmem:[#allocation3 + $0x88] sm:$0xf0] %v1254
        %1287 = vst [vmem:[#allocation3 + $0x90] sm:$0xf0] %v1255
        %1288 = vst [vmem:[#allocation3 + $0x98] sm:$0xf0] %v1256
        %1289 = vst [vmem:[#allocation3 + $0xa0] sm:$0xf0] %v1257
        %1290 = vst [vmem:[#allocation3 + $0xa8] sm:$0xf0] %v1258
        %1291 = vst [vmem:[#allocation3 + $0xb0] sm:$0xf0] %v1259
        %1292 = vst [vmem:[#allocation3 + $0xb8] sm:$0xf0] %v1260
        %1293 = vst [vmem:[#allocation3 + $0xc0] sm:$0xf0] %v1261
        %1294 = vst [vmem:[#allocation3 + $0xc8] sm:$0xf0] %v1262
        %1295 = vst [vmem:[#allocation3 + $0xd0] sm:$0xf0] %v1263
        %1296 = vst [vmem:[#allocation3 + $0xd8] sm:$0xf0] %v1264
        %1297 = vst [vmem:[#allocation3 + $0xe0] sm:$0xf0] %v1265
        %1298 = vst [vmem:[#allocation3 + $0xe8] sm:$0xf0] %v1266
        %1299 = vst [vmem:[#allocation3 + $0xf0] sm:$0xf0] %v1267
        %1300 = vst [vmem:[#allocation3 + $0xf8] sm:$0xf0] %v1268
        %v1301 = vld [vmem:[#allocation2 + $0x4] sm:$0xff]
        %v1302 = vld [vmem:[#allocation2 + $0xc] sm:$0xff]
        %v1303 = vld [vmem:[#allocation2 + $0x14] sm:$0xff]
        %v1304 = vld [vmem:[#allocation2 + $0x1c] sm:$0xff]
        %v1305 = vld [vmem:[#allocation2 + $0x24] sm:$0xff]
        %v1306 = vld [vmem:[#allocation2 + $0x2c] sm:$0xff]
        %v1307 = vld [vmem:[#allocation2 + $0x34] sm:$0xff]
        %v1308 = vld [vmem:[#allocation2 + $0x3c] sm:$0xff]
        %v1317 = vcombine.high %v1301, %v1301
        %v1318 = vcombine.high %v1302, %v1302
        %v1319 = vcombine.high %v1303, %v1303
        %v1320 = vcombine.high %v1304, %v1304
        %v1321 = vcombine.high %v1305, %v1305
        %v1322 = vcombine.high %v1306, %v1306
        %v1323 = vcombine.high %v1307, %v1307
        %v1324 = vcombine.high %v1308, %v1308
        %1333 = vst [vmem:[#allocation3 + $0x100] sm:$0xf] %v1301
        %1334 = vst [vmem:[#allocation3 + $0x108] sm:$0xf] %v1317
        %1335 = vst [vmem:[#allocation3 + $0x110] sm:$0xf] %v1302
        %1336 = vst [vmem:[#allocation3 + $0x118] sm:$0xf] %v1318
        %1337 = vst [vmem:[#allocation3 + $0x120] sm:$0xf] %v1303
        %1338 = vst [vmem:[#allocation3 + $0x128] sm:$0xf] %v1319
        %1339 = vst [vmem:[#allocation3 + $0x130] sm:$0xf] %v1304
        %1340 = vst [vmem:[#allocation3 + $0x138] sm:$0xf] %v1320
        %1341 = vst [vmem:[#allocation3 + $0x140] sm:$0xf] %v1305
        %1342 = vst [vmem:[#allocation3 + $0x148] sm:$0xf] %v1321
        %1343 = vst [vmem:[#allocation3 + $0x150] sm:$0xf] %v1306
        %1344 = vst [vmem:[#allocation3 + $0x158] sm:$0xf] %v1322
        %1345 = vst [vmem:[#allocation3 + $0x160] sm:$0xf] %v1307
        %1346 = vst [vmem:[#allocation3 + $0x168] sm:$0xf] %v1323
        %1347 = vst [vmem:[#allocation3 + $0x170] sm:$0xf] %v1308
        %1348 = vst [vmem:[#allocation3 + $0x178] sm:$0xf] %v1324
        %v1349 = vld [vmem:[#allocation2 + $0x4] sm:$0xff]
        %v1350 = vld [vmem:[#allocation2 + $0xc] sm:$0xff]
        %v1351 = vld [vmem:[#allocation2 + $0x14] sm:$0xff]
        %v1352 = vld [vmem:[#allocation2 + $0x1c] sm:$0xff]
        %v1353 = vld [vmem:[#allocation2 + $0x24] sm:$0xff]
        %v1354 = vld [vmem:[#allocation2 + $0x2c] sm:$0xff]
        %v1355 = vld [vmem:[#allocation2 + $0x34] sm:$0xff]
        %v1356 = vld [vmem:[#allocation2 + $0x3c] sm:$0xff]
        %v1357 = vld [vmem:[#allocation2 + $0x44] sm:$0xf]
        %s1358 = scalar_lea.vmem [#allocation11], 5
        %v1359 = vld [vmem:[%s1358] ss:$8 sm:$0xf]
        %v1360 = vld [vmem:[%s1358] ss:$8 sm:$0xf0]
        %v1361 = vor.u32 %v1359, %v1360
        %s1362 = scalar_lea.vmem [#allocation11], 69
        %v1363 = vld [vmem:[%s1362] ss:$8 sm:$0xf]
        %v1364 = vld [vmem:[%s1362] ss:$8 sm:$0xf0]
        %v1365 = vor.u32 %v1363, %v1364
        %v1368 = vlaneseq
        %v1369 = vshrl.u32 %v1368, 7
        %v1370 = vsub.s32 0, %v1369
        %v1371 = vrot.slane %v1361, %v1370
        %v1372 = vlaneseq
        %v1373 = vshrl.u32 %v1372, 7
        %v1374 = vsub.s32 1, %v1373
        %v1375 = vrot.slane %v1361, %v1374
        %v1376 = vlaneseq
        %v1377 = vshrl.u32 %v1376, 7
        %v1378 = vsub.s32 2, %v1377
        %v1379 = vrot.slane %v1361, %v1378
        %v1380 = vlaneseq
        %v1381 = vshrl.u32 %v1380, 7
        %v1382 = vsub.s32 3, %v1381
        %v1383 = vrot.slane %v1361, %v1382
        %v1384 = vlaneseq
        %v1385 = vshrl.u32 %v1384, 7
        %v1386 = vsub.s32 4, %v1385
        %v1387 = vrot.slane %v1361, %v1386
        %v1388 = vlaneseq
        %v1389 = vshrl.u32 %v1388, 7
        %v1390 = vsub.s32 5, %v1389
        %v1391 = vrot.slane %v1361, %v1390
        %v1392 = vlaneseq
        %v1393 = vshrl.u32 %v1392, 7
        %v1394 = vsub.s32 6, %v1393
        %v1395 = vrot.slane %v1361, %v1394
        %v1396 = vlaneseq
        %v1397 = vshrl.u32 %v1396, 7
        %v1398 = vsub.s32 7, %v1397
        %v1399 = vrot.slane %v1361, %v1398
        %v1400 = vlaneseq
        %v1401 = vshrl.u32 %v1400, 7
        %v1402 = vsub.s32 0, %v1401
        %v1403 = vrot.slane %v1365, %v1402
        %v1404 = vlaneseq
        %v1405 = vshrl.u32 %v1404, 7
        %v1406 = vsub.s32 1, %v1405
        %v1407 = vrot.slane %v1365, %v1406
        %v1408 = vlaneseq
        %v1409 = vshrl.u32 %v1408, 7
        %v1410 = vsub.s32 2, %v1409
        %v1411 = vrot.slane %v1365, %v1410
        %v1412 = vlaneseq
        %v1413 = vshrl.u32 %v1412, 7
        %v1414 = vsub.s32 3, %v1413
        %v1415 = vrot.slane %v1365, %v1414
        %v1416 = vlaneseq
        %v1417 = vshrl.u32 %v1416, 7
        %v1418 = vsub.s32 4, %v1417
        %v1419 = vrot.slane %v1365, %v1418
        %v1420 = vlaneseq
        %v1421 = vshrl.u32 %v1420, 7
        %v1422 = vsub.s32 5, %v1421
        %v1423 = vrot.slane %v1365, %v1422
        %v1424 = vlaneseq
        %v1425 = vshrl.u32 %v1424, 7
        %v1426 = vsub.s32 6, %v1425
        %v1427 = vrot.slane %v1365, %v1426
        %v1428 = vlaneseq
        %v1429 = vshrl.u32 %v1428, 7
        %v1430 = vsub.s32 7, %v1429
        %v1431 = vrot.slane %v1365, %v1430
        %v1432 = vcombine.low %v1371, %v1375
        %v1433 = vcombine.low %v1379, %v1383
        %v1434 = vcombine.low %v1387, %v1391
        %v1435 = vcombine.low %v1395, %v1399
        %v1436 = vcombine.low %v1403, %v1407
        %v1437 = vcombine.low %v1411, %v1415
        %v1438 = vcombine.low %v1419, %v1423
        %v1439 = vcombine.low %v1427, %v1431
        %1440 = vrot.lane.b32.xlu0 %v1432, 1
        %v1441 = vpop.permute.xlu0 %1440
        %1442 = vrot.lane.b32.xlu0 %v1433, 1
        %v1443 = vpop.permute.xlu0 %1442
        %1444 = vrot.lane.b32.xlu0 %v1434, 1
        %v1445 = vpop.permute.xlu0 %1444
        %1446 = vrot.lane.b32.xlu0 %v1435, 1
        %v1447 = vpop.permute.xlu0 %1446
        %1448 = vrot.lane.b32.xlu0 %v1436, 1
        %v1449 = vpop.permute.xlu0 %1448
        %1450 = vrot.lane.b32.xlu0 %v1437, 1
        %v1451 = vpop.permute.xlu0 %1450
        %1452 = vrot.lane.b32.xlu0 %v1438, 1
        %v1453 = vpop.permute.xlu0 %1452
        %1454 = vrot.lane.b32.xlu0 %v1439, 1
        %v1455 = vpop.permute.xlu0 %1454
        %v1456 = vrot.slane %v1441, 4
        %v1457 = vrot.slane %v1443, 4
        %v1458 = vrot.slane %v1445, 4
        %v1459 = vrot.slane %v1447, 4
        %v1460 = vrot.slane %v1449, 4
        %v1461 = vrot.slane %v1451, 4
        %v1462 = vrot.slane %v1453, 4
        %v1463 = vrot.slane %v1455, 4
        %v1464 = vsel %vm1252, %v1456, %v1441
        %v1465 = vsel %vm419, %v1456, %v1457
        %v1466 = vsel %vm1252, %v1465, %v1443
        %v1467 = vsel %vm419, %v1457, %v1458
        %v1468 = vsel %vm1252, %v1467, %v1445
        %v1469 = vsel %vm419, %v1458, %v1459
        %v1470 = vsel %vm1252, %v1469, %v1447
        %v1471 = vsel %vm419, %v1459, %v1460
        %v1472 = vsel %vm1252, %v1471, %v1449
        %v1473 = vsel %vm419, %v1460, %v1461
        %v1474 = vsel %vm1252, %v1473, %v1451
        %v1475 = vsel %vm419, %v1461, %v1462
        %v1476 = vsel %vm1252, %v1475, %v1453
        %v1477 = vsel %vm419, %v1462, %v1463
        %v1478 = vsel %vm1252, %v1477, %v1455
        %v1488 = vmul.f32 %v1349, %v1464
        %v1489 = vmul.f32 %v1350, %v1466
        %v1490 = vmul.f32 %v1351, %v1468
        %v1491 = vmul.f32 %v1352, %v1470
        %v1492 = vmul.f32 %v1353, %v1472
        %v1493 = vmul.f32 %v1354, %v1474
        %v1494 = vmul.f32 %v1355, %v1476
        %v1495 = vmul.f32 %v1356, %v1478
        %v1496 = vmul.f32 %v1357, %v1463
        %v1506 = vcombine.low %v1488, %v1488
        %v1507 = vcombine.low %v1489, %v1489
        %v1508 = vcombine.low %v1490, %v1490
        %v1509 = vcombine.low %v1491, %v1491
        %v1510 = vcombine.low %v1492, %v1492
        %v1511 = vcombine.low %v1493, %v1493
        %v1512 = vcombine.low %v1494, %v1494
        %v1513 = vcombine.low %v1495, %v1495
        %v1514 = vcombine.low %v1496, %v1496
        %1515 = vrot.lane.b32.xlu0 %v1506, 127
        %v1516 = vpop.permute.xlu0 %1515
        %1517 = vrot.lane.b32.xlu0 %v1488, 127
        %v1518 = vpop.permute.xlu0 %1517
        %1519 = vrot.lane.b32.xlu0 %v1507, 127
        %v1520 = vpop.permute.xlu0 %1519
        %1521 = vrot.lane.b32.xlu0 %v1489, 127
        %v1522 = vpop.permute.xlu0 %1521
        %1523 = vrot.lane.b32.xlu0 %v1508, 127
        %v1524 = vpop.permute.xlu0 %1523
        %1525 = vrot.lane.b32.xlu0 %v1490, 127
        %v1526 = vpop.permute.xlu0 %1525
        %1527 = vrot.lane.b32.xlu0 %v1509, 127
        %v1528 = vpop.permute.xlu0 %1527
        %1529 = vrot.lane.b32.xlu0 %v1491, 127
        %v1530 = vpop.permute.xlu0 %1529
        %1531 = vrot.lane.b32.xlu0 %v1510, 127
        %v1532 = vpop.permute.xlu0 %1531
        %1533 = vrot.lane.b32.xlu0 %v1492, 127
        %v1534 = vpop.permute.xlu0 %1533
        %1535 = vrot.lane.b32.xlu0 %v1511, 127
        %v1536 = vpop.permute.xlu0 %1535
        %1537 = vrot.lane.b32.xlu0 %v1493, 127
        %v1538 = vpop.permute.xlu0 %1537
        %1539 = vrot.lane.b32.xlu0 %v1512, 127
        %v1540 = vpop.permute.xlu0 %1539
        %1541 = vrot.lane.b32.xlu0 %v1494, 127
        %v1542 = vpop.permute.xlu0 %1541
        %1543 = vrot.lane.b32.xlu0 %v1513, 127
        %v1544 = vpop.permute.xlu0 %1543
        %1545 = vrot.lane.b32.xlu0 %v1495, 127
        %v1546 = vpop.permute.xlu0 %1545
        %1547 = vrot.lane.b32.xlu0 %v1514, 127
        %v1548 = vpop.permute.xlu0 %1547
        %v1549 = vsel %vm1166, %v1516, %v1518
        %v1550 = vsel %vm1166, %v1518, %v1520
        %v1551 = vsel %vm1166, %v1520, %v1522
        %v1552 = vsel %vm1166, %v1522, %v1524
        %v1553 = vsel %vm1166, %v1524, %v1526
        %v1554 = vsel %vm1166, %v1526, %v1528
        %v1555 = vsel %vm1166, %v1528, %v1530
        %v1556 = vsel %vm1166, %v1530, %v1532
        %v1557 = vsel %vm1166, %v1532, %v1534
        %v1558 = vsel %vm1166, %v1534, %v1536
        %v1559 = vsel %vm1166, %v1536, %v1538
        %v1560 = vsel %vm1166, %v1538, %v1540
        %v1561 = vsel %vm1166, %v1540, %v1542
        %v1562 = vsel %vm1166, %v1542, %v1544
        %v1563 = vsel %vm1166, %v1544, %v1546
        %v1564 = vsel %vm1166, %v1546, %v1548
        %1581 = vst [vmem:[#allocation3 + $0x100] sm:$0xf0] %v1549
        %1582 = vst [vmem:[#allocation3 + $0x108] sm:$0xf0] %v1550
        %1583 = vst [vmem:[#allocation3 + $0x110] sm:$0xf0] %v1551
        %1584 = vst [vmem:[#allocation3 + $0x118] sm:$0xf0] %v1552
        %1585 = vst [vmem:[#allocation3 + $0x120] sm:$0xf0] %v1553
        %1586 = vst [vmem:[#allocation3 + $0x128] sm:$0xf0] %v1554
        %1587 = vst [vmem:[#allocation3 + $0x130] sm:$0xf0] %v1555
        %1588 = vst [vmem:[#allocation3 + $0x138] sm:$0xf0] %v1556
        %1589 = vst [vmem:[#allocation3 + $0x140] sm:$0xf0] %v1557
        %1590 = vst [vmem:[#allocation3 + $0x148] sm:$0xf0] %v1558
        %1591 = vst [vmem:[#allocation3 + $0x150] sm:$0xf0] %v1559
        %1592 = vst [vmem:[#allocation3 + $0x158] sm:$0xf0] %v1560
        %1593 = vst [vmem:[#allocation3 + $0x160] sm:$0xf0] %v1561
        %1594 = vst [vmem:[#allocation3 + $0x168] sm:$0xf0] %v1562
        %1595 = vst [vmem:[#allocation3 + $0x170] sm:$0xf0] %v1563
        %1596 = vst [vmem:[#allocation3 + $0x178] sm:$0xf0] %v1564
        %v1597 = vld [vmem:[#allocation2 + $0x4] sm:$0xff]
        %v1598 = vld [vmem:[#allocation2 + $0xc] sm:$0xff]
        %v1599 = vld [vmem:[#allocation2 + $0x14] sm:$0xff]
        %v1600 = vld [vmem:[#allocation2 + $0x1c] sm:$0xff]
        %v1601 = vld [vmem:[#allocation2 + $0x24] sm:$0xff]
        %v1602 = vld [vmem:[#allocation2 + $0x2c] sm:$0xff]
        %v1603 = vld [vmem:[#allocation2 + $0x34] sm:$0xff]
        %v1604 = vld [vmem:[#allocation2 + $0x3c] sm:$0xff]
        %v1605 = vld [vmem:[#allocation2 + $0x44] sm:$0xf]
        %s1606 = scalar_lea.vmem [#allocation11], 6
        %v1607 = vld [vmem:[%s1606] ss:$8 sm:$0xf]
        %v1608 = vld [vmem:[%s1606] ss:$8 sm:$0xf0]
        %v1609 = vor.u32 %v1607, %v1608
        %s1610 = scalar_lea.vmem [#allocation11], 70
        %v1611 = vld [vmem:[%s1610] ss:$8 sm:$0xf]
        %v1612 = vld [vmem:[%s1610] ss:$8 sm:$0xf0]
        %v1613 = vor.u32 %v1611, %v1612
        %v1616 = vlaneseq
        %v1617 = vshrl.u32 %v1616, 7
        %v1618 = vsub.s32 0, %v1617
        %v1619 = vrot.slane %v1609, %v1618
        %v1620 = vlaneseq
        %v1621 = vshrl.u32 %v1620, 7
        %v1622 = vsub.s32 1, %v1621
        %v1623 = vrot.slane %v1609, %v1622
        %v1624 = vlaneseq
        %v1625 = vshrl.u32 %v1624, 7
        %v1626 = vsub.s32 2, %v1625
        %v1627 = vrot.slane %v1609, %v1626
        %v1628 = vlaneseq
        %v1629 = vshrl.u32 %v1628, 7
        %v1630 = vsub.s32 3, %v1629
        %v1631 = vrot.slane %v1609, %v1630
        %v1632 = vlaneseq
        %v1633 = vshrl.u32 %v1632, 7
        %v1634 = vsub.s32 4, %v1633
        %v1635 = vrot.slane %v1609, %v1634
        %v1636 = vlaneseq
        %v1637 = vshrl.u32 %v1636, 7
        %v1638 = vsub.s32 5, %v1637
        %v1639 = vrot.slane %v1609, %v1638
        %v1640 = vlaneseq
        %v1641 = vshrl.u32 %v1640, 7
        %v1642 = vsub.s32 6, %v1641
        %v1643 = vrot.slane %v1609, %v1642
        %v1644 = vlaneseq
        %v1645 = vshrl.u32 %v1644, 7
        %v1646 = vsub.s32 7, %v1645
        %v1647 = vrot.slane %v1609, %v1646
        %v1648 = vlaneseq
        %v1649 = vshrl.u32 %v1648, 7
        %v1650 = vsub.s32 0, %v1649
        %v1651 = vrot.slane %v1613, %v1650
        %v1652 = vlaneseq
        %v1653 = vshrl.u32 %v1652, 7
        %v1654 = vsub.s32 1, %v1653
        %v1655 = vrot.slane %v1613, %v1654
        %v1656 = vlaneseq
        %v1657 = vshrl.u32 %v1656, 7
        %v1658 = vsub.s32 2, %v1657
        %v1659 = vrot.slane %v1613, %v1658
        %v1660 = vlaneseq
        %v1661 = vshrl.u32 %v1660, 7
        %v1662 = vsub.s32 3, %v1661
        %v1663 = vrot.slane %v1613, %v1662
        %v1664 = vlaneseq
        %v1665 = vshrl.u32 %v1664, 7
        %v1666 = vsub.s32 4, %v1665
        %v1667 = vrot.slane %v1613, %v1666
        %v1668 = vlaneseq
        %v1669 = vshrl.u32 %v1668, 7
        %v1670 = vsub.s32 5, %v1669
        %v1671 = vrot.slane %v1613, %v1670
        %v1672 = vlaneseq
        %v1673 = vshrl.u32 %v1672, 7
        %v1674 = vsub.s32 6, %v1673
        %v1675 = vrot.slane %v1613, %v1674
        %v1676 = vlaneseq
        %v1677 = vshrl.u32 %v1676, 7
        %v1678 = vsub.s32 7, %v1677
        %v1679 = vrot.slane %v1613, %v1678
        %v1680 = vcombine.low %v1619, %v1623
        %v1681 = vcombine.low %v1627, %v1631
        %v1682 = vcombine.low %v1635, %v1639
        %v1683 = vcombine.low %v1643, %v1647
        %v1684 = vcombine.low %v1651, %v1655
        %v1685 = vcombine.low %v1659, %v1663
        %v1686 = vcombine.low %v1667, %v1671
        %v1687 = vcombine.low %v1675, %v1679
        %1688 = vrot.lane.b32.xlu0 %v1680, 15
        %v1689 = vpop.permute.xlu0 %1688
        %1690 = vrot.lane.b32.xlu0 %v1681, 15
        %v1691 = vpop.permute.xlu0 %1690
        %1692 = vrot.lane.b32.xlu0 %v1682, 15
        %v1693 = vpop.permute.xlu0 %1692
        %1694 = vrot.lane.b32.xlu0 %v1683, 15
        %v1695 = vpop.permute.xlu0 %1694
        %1696 = vrot.lane.b32.xlu0 %v1684, 15
        %v1697 = vpop.permute.xlu0 %1696
        %1698 = vrot.lane.b32.xlu0 %v1685, 15
        %v1699 = vpop.permute.xlu0 %1698
        %1700 = vrot.lane.b32.xlu0 %v1686, 15
        %v1701 = vpop.permute.xlu0 %1700
        %1702 = vrot.lane.b32.xlu0 %v1687, 15
        %v1703 = vpop.permute.xlu0 %1702
        %v1704 = vrot.slane %v1689, 4
        %v1705 = vrot.slane %v1691, 4
        %v1706 = vrot.slane %v1693, 4
        %v1707 = vrot.slane %v1695, 4
        %v1708 = vrot.slane %v1697, 4
        %v1709 = vrot.slane %v1699, 4
        %v1710 = vrot.slane %v1701, 4
        %v1711 = vrot.slane %v1703, 4
        %v1712 = vsel %vm1002, %v1704, %v1689
        %v1713 = vsel %vm419, %v1704, %v1705
        %v1714 = vsel %vm1002, %v1713, %v1691
        %v1715 = vsel %vm419, %v1705, %v1706
        %v1716 = vsel %vm1002, %v1715, %v1693
        %v1717 = vsel %vm419, %v1706, %v1707
        %v1718 = vsel %vm1002, %v1717, %v1695
        %v1719 = vsel %vm419, %v1707, %v1708
        %v1720 = vsel %vm1002, %v1719, %v1697
        %v1721 = vsel %vm419, %v1708, %v1709
        %v1722 = vsel %vm1002, %v1721, %v1699
        %v1723 = vsel %vm419, %v1709, %v1710
        %v1724 = vsel %vm1002, %v1723, %v1701
        %v1725 = vsel %vm419, %v1710, %v1711
        %v1726 = vsel %vm1002, %v1725, %v1703
        %v1736 = vmul.f32 %v1597, %v1712
        %v1737 = vmul.f32 %v1598, %v1714
        %v1738 = vmul.f32 %v1599, %v1716
        %v1739 = vmul.f32 %v1600, %v1718
        %v1740 = vmul.f32 %v1601, %v1720
        %v1741 = vmul.f32 %v1602, %v1722
        %v1742 = vmul.f32 %v1603, %v1724
        %v1743 = vmul.f32 %v1604, %v1726
        %v1744 = vmul.f32 %v1605, %v1711
        %v1754 = vcombine.high %v1736, %v1736
        %v1755 = vcombine.high %v1737, %v1737
        %v1756 = vcombine.high %v1738, %v1738
        %v1757 = vcombine.high %v1739, %v1739
        %v1758 = vcombine.high %v1740, %v1740
        %v1759 = vcombine.high %v1741, %v1741
        %v1760 = vcombine.high %v1742, %v1742
        %v1761 = vcombine.high %v1743, %v1743
        %1762 = vrot.lane.b32.xlu0 %v1736, 113
        %v1763 = vpop.permute.xlu0 %1762
        %1764 = vrot.lane.b32.xlu0 %v1754, 113
        %v1765 = vpop.permute.xlu0 %1764
        %1766 = vrot.lane.b32.xlu0 %v1737, 113
        %v1767 = vpop.permute.xlu0 %1766
        %1768 = vrot.lane.b32.xlu0 %v1755, 113
        %v1769 = vpop.permute.xlu0 %1768
        %1770 = vrot.lane.b32.xlu0 %v1738, 113
        %v1771 = vpop.permute.xlu0 %1770
        %1772 = vrot.lane.b32.xlu0 %v1756, 113
        %v1773 = vpop.permute.xlu0 %1772
        %1774 = vrot.lane.b32.xlu0 %v1739, 113
        %v1775 = vpop.permute.xlu0 %1774
        %1776 = vrot.lane.b32.xlu0 %v1757, 113
        %v1777 = vpop.permute.xlu0 %1776
        %1778 = vrot.lane.b32.xlu0 %v1740, 113
        %v1779 = vpop.permute.xlu0 %1778
        %1780 = vrot.lane.b32.xlu0 %v1758, 113
        %v1781 = vpop.permute.xlu0 %1780
        %1782 = vrot.lane.b32.xlu0 %v1741, 113
        %v1783 = vpop.permute.xlu0 %1782
        %1784 = vrot.lane.b32.xlu0 %v1759, 113
        %v1785 = vpop.permute.xlu0 %1784
        %1786 = vrot.lane.b32.xlu0 %v1742, 113
        %v1787 = vpop.permute.xlu0 %1786
        %1788 = vrot.lane.b32.xlu0 %v1760, 113
        %v1789 = vpop.permute.xlu0 %1788
        %1790 = vrot.lane.b32.xlu0 %v1743, 113
        %v1791 = vpop.permute.xlu0 %1790
        %1792 = vrot.lane.b32.xlu0 %v1761, 113
        %v1793 = vpop.permute.xlu0 %1792
        %1794 = vrot.lane.b32.xlu0 %v1744, 113
        %v1795 = vpop.permute.xlu0 %1794
        %v1796 = vsel %vm917, %v1763, %v1765
        %v1797 = vsel %vm917, %v1765, %v1767
        %v1798 = vsel %vm917, %v1767, %v1769
        %v1799 = vsel %vm917, %v1769, %v1771
        %v1800 = vsel %vm917, %v1771, %v1773
        %v1801 = vsel %vm917, %v1773, %v1775
        %v1802 = vsel %vm917, %v1775, %v1777
        %v1803 = vsel %vm917, %v1777, %v1779
        %v1804 = vsel %vm917, %v1779, %v1781
        %v1805 = vsel %vm917, %v1781, %v1783
        %v1806 = vsel %vm917, %v1783, %v1785
        %v1807 = vsel %vm917, %v1785, %v1787
        %v1808 = vsel %vm917, %v1787, %v1789
        %v1809 = vsel %vm917, %v1789, %v1791
        %v1810 = vsel %vm917, %v1791, %v1793
        %v1811 = vsel %vm917, %v1793, %v1795
        %1828 = vst [vmem:[#allocation3 + $0x180] sm:$0xf] %v1796
        %1829 = vst [vmem:[#allocation3 + $0x188] sm:$0xf] %v1797
        %1830 = vst [vmem:[#allocation3 + $0x190] sm:$0xf] %v1798
        %1831 = vst [vmem:[#allocation3 + $0x198] sm:$0xf] %v1799
        %1832 = vst [vmem:[#allocation3 + $0x1a0] sm:$0xf] %v1800
        %1833 = vst [vmem:[#allocation3 + $0x1a8] sm:$0xf] %v1801
        %1834 = vst [vmem:[#allocation3 + $0x1b0] sm:$0xf] %v1802
        %1835 = vst [vmem:[#allocation3 + $0x1b8] sm:$0xf] %v1803
        %1836 = vst [vmem:[#allocation3 + $0x1c0] sm:$0xf] %v1804
        %1837 = vst [vmem:[#allocation3 + $0x1c8] sm:$0xf] %v1805
        %1838 = vst [vmem:[#allocation3 + $0x1d0] sm:$0xf] %v1806
        %1839 = vst [vmem:[#allocation3 + $0x1d8] sm:$0xf] %v1807
        %1840 = vst [vmem:[#allocation3 + $0x1e0] sm:$0xf] %v1808
        %1841 = vst [vmem:[#allocation3 + $0x1e8] sm:$0xf] %v1809
        %1842 = vst [vmem:[#allocation3 + $0x1f0] sm:$0xf] %v1810
        %1843 = vst [vmem:[#allocation3 + $0x1f8] sm:$0xf] %v1811
        %v1844 = vld [vmem:[#allocation2 + $0x4] sm:$0xff]
        %v1845 = vld [vmem:[#allocation2 + $0xc] sm:$0xff]
        %v1846 = vld [vmem:[#allocation2 + $0x14] sm:$0xff]
        %v1847 = vld [vmem:[#allocation2 + $0x1c] sm:$0xff]
        %v1848 = vld [vmem:[#allocation2 + $0x24] sm:$0xff]
        %v1849 = vld [vmem:[#allocation2 + $0x2c] sm:$0xff]
        %v1850 = vld [vmem:[#allocation2 + $0x34] sm:$0xff]
        %v1851 = vld [vmem:[#allocation2 + $0x3c] sm:$0xff]
        %v1852 = vld [vmem:[#allocation2 + $0x44] sm:$0xf]
        %s1853 = scalar_lea.vmem [#allocation11], 7
        %v1854 = vld [vmem:[%s1853] ss:$8 sm:$0xf]
        %v1855 = vld [vmem:[%s1853] ss:$8 sm:$0xf0]
        %v1856 = vor.u32 %v1854, %v1855
        %s1857 = scalar_lea.vmem [#allocation11], 71
        %v1858 = vld [vmem:[%s1857] ss:$8 sm:$0xf]
        %v1859 = vld [vmem:[%s1857] ss:$8 sm:$0xf0]
        %v1860 = vor.u32 %v1858, %v1859
        %v1863 = vlaneseq
        %v1864 = vshrl.u32 %v1863, 7
        %v1865 = vsub.s32 0, %v1864
        %v1866 = vrot.slane %v1856, %v1865
        %v1867 = vlaneseq
        %v1868 = vshrl.u32 %v1867, 7
        %v1869 = vsub.s32 1, %v1868
        %v1870 = vrot.slane %v1856, %v1869
        %v1871 = vlaneseq
        %v1872 = vshrl.u32 %v1871, 7
        %v1873 = vsub.s32 2, %v1872
        %v1874 = vrot.slane %v1856, %v1873
        %v1875 = vlaneseq
        %v1876 = vshrl.u32 %v1875, 7
        %v1877 = vsub.s32 3, %v1876
        %v1878 = vrot.slane %v1856, %v1877
        %v1879 = vlaneseq
        %v1880 = vshrl.u32 %v1879, 7
        %v1881 = vsub.s32 4, %v1880
        %v1882 = vrot.slane %v1856, %v1881
        %v1883 = vlaneseq
        %v1884 = vshrl.u32 %v1883, 7
        %v1885 = vsub.s32 5, %v1884
        %v1886 = vrot.slane %v1856, %v1885
        %v1887 = vlaneseq
        %v1888 = vshrl.u32 %v1887, 7
        %v1889 = vsub.s32 6, %v1888
        %v1890 = vrot.slane %v1856, %v1889
        %v1891 = vlaneseq
        %v1892 = vshrl.u32 %v1891, 7
        %v1893 = vsub.s32 7, %v1892
        %v1894 = vrot.slane %v1856, %v1893
        %v1895 = vlaneseq
        %v1896 = vshrl.u32 %v1895, 7
        %v1897 = vsub.s32 0, %v1896
        %v1898 = vrot.slane %v1860, %v1897
        %v1899 = vlaneseq
        %v1900 = vshrl.u32 %v1899, 7
        %v1901 = vsub.s32 1, %v1900
        %v1902 = vrot.slane %v1860, %v1901
        %v1903 = vlaneseq
        %v1904 = vshrl.u32 %v1903, 7
        %v1905 = vsub.s32 2, %v1904
        %v1906 = vrot.slane %v1860, %v1905
        %v1907 = vlaneseq
        %v1908 = vshrl.u32 %v1907, 7
        %v1909 = vsub.s32 3, %v1908
        %v1910 = vrot.slane %v1860, %v1909
        %v1911 = vlaneseq
        %v1912 = vshrl.u32 %v1911, 7
        %v1913 = vsub.s32 4, %v1912
        %v1914 = vrot.slane %v1860, %v1913
        %v1915 = vlaneseq
        %v1916 = vshrl.u32 %v1915, 7
        %v1917 = vsub.s32 5, %v1916
        %v1918 = vrot.slane %v1860, %v1917
        %v1919 = vlaneseq
        %v1920 = vshrl.u32 %v1919, 7
        %v1921 = vsub.s32 6, %v1920
        %v1922 = vrot.slane %v1860, %v1921
        %v1923 = vlaneseq
        %v1924 = vshrl.u32 %v1923, 7
        %v1925 = vsub.s32 7, %v1924
        %v1926 = vrot.slane %v1860, %v1925
        %v1927 = vcombine.low %v1866, %v1870
        %v1928 = vcombine.low %v1874, %v1878
        %v1929 = vcombine.low %v1882, %v1886
        %v1930 = vcombine.low %v1890, %v1894
        %v1931 = vcombine.low %v1898, %v1902
        %v1932 = vcombine.low %v1906, %v1910
        %v1933 = vcombine.low %v1914, %v1918
        %v1934 = vcombine.low %v1922, %v1926
        %1935 = vrot.lane.b32.xlu0 %v1927, 16
        %v1936 = vpop.permute.xlu0 %1935
        %1937 = vrot.lane.b32.xlu0 %v1928, 16
        %v1938 = vpop.permute.xlu0 %1937
        %1939 = vrot.lane.b32.xlu0 %v1929, 16
        %v1940 = vpop.permute.xlu0 %1939
        %1941 = vrot.lane.b32.xlu0 %v1930, 16
        %v1942 = vpop.permute.xlu0 %1941
        %1943 = vrot.lane.b32.xlu0 %v1931, 16
        %v1944 = vpop.permute.xlu0 %1943
        %1945 = vrot.lane.b32.xlu0 %v1932, 16
        %v1946 = vpop.permute.xlu0 %1945
        %1947 = vrot.lane.b32.xlu0 %v1933, 16
        %v1948 = vpop.permute.xlu0 %1947
        %1949 = vrot.lane.b32.xlu0 %v1934, 16
        %v1950 = vpop.permute.xlu0 %1949
        %v1951 = vrot.slane %v1936, 4
        %v1952 = vrot.slane %v1938, 4
        %v1953 = vrot.slane %v1940, 4
        %v1954 = vrot.slane %v1942, 4
        %v1955 = vrot.slane %v1944, 4
        %v1956 = vrot.slane %v1946, 4
        %v1957 = vrot.slane %v1948, 4
        %v1958 = vrot.slane %v1950, 4
        %v1959 = vsel %vm753, %v1951, %v1936
        %v1960 = vsel %vm419, %v1951, %v1952
        %v1961 = vsel %vm753, %v1960, %v1938
        %v1962 = vsel %vm419, %v1952, %v1953
        %v1963 = vsel %vm753, %v1962, %v1940
        %v1964 = vsel %vm419, %v1953, %v1954
        %v1965 = vsel %vm753, %v1964, %v1942
        %v1966 = vsel %vm419, %v1954, %v1955
        %v1967 = vsel %vm753, %v1966, %v1944
        %v1968 = vsel %vm419, %v1955, %v1956
        %v1969 = vsel %vm753, %v1968, %v1946
        %v1970 = vsel %vm419, %v1956, %v1957
        %v1971 = vsel %vm753, %v1970, %v1948
        %v1972 = vsel %vm419, %v1957, %v1958
        %v1973 = vsel %vm753, %v1972, %v1950
        %v1983 = vmul.f32 %v1844, %v1959
        %v1984 = vmul.f32 %v1845, %v1961
        %v1985 = vmul.f32 %v1846, %v1963
        %v1986 = vmul.f32 %v1847, %v1965
        %v1987 = vmul.f32 %v1848, %v1967
        %v1988 = vmul.f32 %v1849, %v1969
        %v1989 = vmul.f32 %v1850, %v1971
        %v1990 = vmul.f32 %v1851, %v1973
        %v1991 = vmul.f32 %v1852, %v1958
        %v2001 = vcombine.low %v1983, %v1983
        %v2002 = vcombine.low %v1984, %v1984
        %v2003 = vcombine.low %v1985, %v1985
        %v2004 = vcombine.low %v1986, %v1986
        %v2005 = vcombine.low %v1987, %v1987
        %v2006 = vcombine.low %v1988, %v1988
        %v2007 = vcombine.low %v1989, %v1989
        %v2008 = vcombine.low %v1990, %v1990
        %v2009 = vcombine.low %v1991, %v1991
        %2010 = vrot.lane.b32.xlu0 %v2001, 112
        %v2011 = vpop.permute.xlu0 %2010
        %2012 = vrot.lane.b32.xlu0 %v1983, 112
        %v2013 = vpop.permute.xlu0 %2012
        %2014 = vrot.lane.b32.xlu0 %v2002, 112
        %v2015 = vpop.permute.xlu0 %2014
        %2016 = vrot.lane.b32.xlu0 %v1984, 112
        %v2017 = vpop.permute.xlu0 %2016
        %2018 = vrot.lane.b32.xlu0 %v2003, 112
        %v2019 = vpop.permute.xlu0 %2018
        %2020 = vrot.lane.b32.xlu0 %v1985, 112
        %v2021 = vpop.permute.xlu0 %2020
        %2022 = vrot.lane.b32.xlu0 %v2004, 112
        %v2023 = vpop.permute.xlu0 %2022
        %2024 = vrot.lane.b32.xlu0 %v1986, 112
        %v2025 = vpop.permute.xlu0 %2024
        %2026 = vrot.lane.b32.xlu0 %v2005, 112
        %v2027 = vpop.permute.xlu0 %2026
        %2028 = vrot.lane.b32.xlu0 %v1987, 112
        %v2029 = vpop.permute.xlu0 %2028
        %2030 = vrot.lane.b32.xlu0 %v2006, 112
        %v2031 = vpop.permute.xlu0 %2030
        %2032 = vrot.lane.b32.xlu0 %v1988, 112
        %v2033 = vpop.permute.xlu0 %2032
        %2034 = vrot.lane.b32.xlu0 %v2007, 112
        %v2035 = vpop.permute.xlu0 %2034
        %2036 = vrot.lane.b32.xlu0 %v1989, 112
        %v2037 = vpop.permute.xlu0 %2036
        %2038 = vrot.lane.b32.xlu0 %v2008, 112
        %v2039 = vpop.permute.xlu0 %2038
        %2040 = vrot.lane.b32.xlu0 %v1990, 112
        %v2041 = vpop.permute.xlu0 %2040
        %2042 = vrot.lane.b32.xlu0 %v2009, 112
        %v2043 = vpop.permute.xlu0 %2042
        %v2044 = vsel %vm667, %v2011, %v2013
        %v2045 = vsel %vm667, %v2013, %v2015
        %v2046 = vsel %vm667, %v2015, %v2017
        %v2047 = vsel %vm667, %v2017, %v2019
        %v2048 = vsel %vm667, %v2019, %v2021
        %v2049 = vsel %vm667, %v2021, %v2023
        %v2050 = vsel %vm667, %v2023, %v2025
        %v2051 = vsel %vm667, %v2025, %v2027
        %v2052 = vsel %vm667, %v2027, %v2029
        %v2053 = vsel %vm667, %v2029, %v2031
        %v2054 = vsel %vm667, %v2031, %v2033
        %v2055 = vsel %vm667, %v2033, %v2035
        %v2056 = vsel %vm667, %v2035, %v2037
        %v2057 = vsel %vm667, %v2037, %v2039
        %v2058 = vsel %vm667, %v2039, %v2041
        %v2059 = vsel %vm667, %v2041, %v2043
        %2076 = vst [vmem:[#allocation3 + $0x180] sm:$0xf0] %v2044
        %2077 = vst [vmem:[#allocation3 + $0x188] sm:$0xf0] %v2045
        %2078 = vst [vmem:[#allocation3 + $0x190] sm:$0xf0] %v2046
        %2079 = vst [vmem:[#allocation3 + $0x198] sm:$0xf0] %v2047
        %2080 = vst [vmem:[#allocation3 + $0x1a0] sm:$0xf0] %v2048
        %2081 = vst [vmem:[#allocation3 + $0x1a8] sm:$0xf0] %v2049
        %2082 = vst [vmem:[#allocation3 + $0x1b0] sm:$0xf0] %v2050
        %2083 = vst [vmem:[#allocation3 + $0x1b8] sm:$0xf0] %v2051
        %2084 = vst [vmem:[#allocation3 + $0x1c0] sm:$0xf0] %v2052
        %2085 = vst [vmem:[#allocation3 + $0x1c8] sm:$0xf0] %v2053
        %2086 = vst [vmem:[#allocation3 + $0x1d0] sm:$0xf0] %v2054
        %2087 = vst [vmem:[#allocation3 + $0x1d8] sm:$0xf0] %v2055
        %2088 = vst [vmem:[#allocation3 + $0x1e0] sm:$0xf0] %v2056
        %2089 = vst [vmem:[#allocation3 + $0x1e8] sm:$0xf0] %v2057
        %2090 = vst [vmem:[#allocation3 + $0x1f0] sm:$0xf0] %v2058
        %2091 = vst [vmem:[#allocation3 + $0x1f8] sm:$0xf0] %v2059
        %v2092 = vld [vmem:[#allocation2 + $0x4] sm:$0xff]
        %v2093 = vld [vmem:[#allocation2 + $0xc] sm:$0xff]
        %v2094 = vld [vmem:[#allocation2 + $0x14] sm:$0xff]
        %v2095 = vld [vmem:[#allocation2 + $0x1c] sm:$0xff]
        %v2096 = vld [vmem:[#allocation2 + $0x24] sm:$0xff]
        %v2097 = vld [vmem:[#allocation2 + $0x2c] sm:$0xff]
        %v2098 = vld [vmem:[#allocation2 + $0x34] sm:$0xff]
        %v2099 = vld [vmem:[#allocation2 + $0x3c] sm:$0xff]
        %v2100 = vld [vmem:[#allocation2 + $0x44] sm:$0xf]
        %s2101 = scalar_lea.vmem [#allocation11], 128
        %v2102 = vld [vmem:[%s2101] ss:$8 sm:$0xf]
        %v2103 = vld [vmem:[%s2101] ss:$8 sm:$0xf0]
        %v2104 = vor.u32 %v2102, %v2103
        %s2105 = scalar_lea.vmem [#allocation11], 192
        %v2106 = vld [vmem:[%s2105] ss:$8 sm:$0xf]
        %v2107 = vld [vmem:[%s2105] ss:$8 sm:$0xf0]
        %v2108 = vor.u32 %v2106, %v2107
        %v2111 = vlaneseq
        %v2112 = vshrl.u32 %v2111, 7
        %v2113 = vsub.s32 0, %v2112
        %v2114 = vrot.slane %v2104, %v2113
        %v2115 = vlaneseq
        %v2116 = vshrl.u32 %v2115, 7
        %v2117 = vsub.s32 1, %v2116
        %v2118 = vrot.slane %v2104, %v2117
        %v2119 = vlaneseq
        %v2120 = vshrl.u32 %v2119, 7
        %v2121 = vsub.s32 2, %v2120
        %v2122 = vrot.slane %v2104, %v2121
        %v2123 = vlaneseq
        %v2124 = vshrl.u32 %v2123, 7
        %v2125 = vsub.s32 3, %v2124
        %v2126 = vrot.slane %v2104, %v2125
        %v2127 = vlaneseq
        %v2128 = vshrl.u32 %v2127, 7
        %v2129 = vsub.s32 4, %v2128
        %v2130 = vrot.slane %v2104, %v2129
        %v2131 = vlaneseq
        %v2132 = vshrl.u32 %v2131, 7
        %v2133 = vsub.s32 5, %v2132
        %v2134 = vrot.slane %v2104, %v2133
        %v2135 = vlaneseq
        %v2136 = vshrl.u32 %v2135, 7
        %v2137 = vsub.s32 6, %v2136
        %v2138 = vrot.slane %v2104, %v2137
        %v2139 = vlaneseq
        %v2140 = vshrl.u32 %v2139, 7
        %v2141 = vsub.s32 7, %v2140
        %v2142 = vrot.slane %v2104, %v2141
        %v2143 = vlaneseq
        %v2144 = vshrl.u32 %v2143, 7
        %v2145 = vsub.s32 0, %v2144
        %v2146 = vrot.slane %v2108, %v2145
        %v2147 = vlaneseq
        %v2148 = vshrl.u32 %v2147, 7
        %v2149 = vsub.s32 1, %v2148
        %v2150 = vrot.slane %v2108, %v2149
        %v2151 = vlaneseq
        %v2152 = vshrl.u32 %v2151, 7
        %v2153 = vsub.s32 2, %v2152
        %v2154 = vrot.slane %v2108, %v2153
        %v2155 = vlaneseq
        %v2156 = vshrl.u32 %v2155, 7
        %v2157 = vsub.s32 3, %v2156
        %v2158 = vrot.slane %v2108, %v2157
        %v2159 = vlaneseq
        %v2160 = vshrl.u32 %v2159, 7
        %v2161 = vsub.s32 4, %v2160
        %v2162 = vrot.slane %v2108, %v2161
        %v2163 = vlaneseq
        %v2164 = vshrl.u32 %v2163, 7
        %v2165 = vsub.s32 5, %v2164
        %v2166 = vrot.slane %v2108, %v2165
        %v2167 = vlaneseq
        %v2168 = vshrl.u32 %v2167, 7
        %v2169 = vsub.s32 6, %v2168
        %v2170 = vrot.slane %v2108, %v2169
        %v2171 = vlaneseq
        %v2172 = vshrl.u32 %v2171, 7
        %v2173 = vsub.s32 7, %v2172
        %v2174 = vrot.slane %v2108, %v2173
        %v2175 = vcombine.low %v2114, %v2118
        %v2176 = vcombine.low %v2122, %v2126
        %v2177 = vcombine.low %v2130, %v2134
        %v2178 = vcombine.low %v2138, %v2142
        %v2179 = vcombine.low %v2146, %v2150
        %v2180 = vcombine.low %v2154, %v2158
        %v2181 = vcombine.low %v2162, %v2166
        %v2182 = vcombine.low %v2170, %v2174
        %2183 = vrot.lane.b32.xlu0 %v2175, 17
        %v2184 = vpop.permute.xlu0 %2183
        %2185 = vrot.lane.b32.xlu0 %v2176, 17
        %v2186 = vpop.permute.xlu0 %2185
        %2187 = vrot.lane.b32.xlu0 %v2177, 17
        %v2188 = vpop.permute.xlu0 %2187
        %2189 = vrot.lane.b32.xlu0 %v2178, 17
        %v2190 = vpop.permute.xlu0 %2189
        %2191 = vrot.lane.b32.xlu0 %v2179, 17
        %v2192 = vpop.permute.xlu0 %2191
        %2193 = vrot.lane.b32.xlu0 %v2180, 17
        %v2194 = vpop.permute.xlu0 %2193
        %2195 = vrot.lane.b32.xlu0 %v2181, 17
        %v2196 = vpop.permute.xlu0 %2195
        %2197 = vrot.lane.b32.xlu0 %v2182, 17
        %v2198 = vpop.permute.xlu0 %2197
        %v2199 = vrot.slane %v2184, 4
        %v2200 = vrot.slane %v2186, 4
        %v2201 = vrot.slane %v2188, 4
        %v2202 = vrot.slane %v2190, 4
        %v2203 = vrot.slane %v2192, 4
        %v2204 = vrot.slane %v2194, 4
        %v2205 = vrot.slane %v2196, 4
        %v2206 = vrot.slane %v2198, 4
        %v2207 = vsel %vm503, %v2199, %v2184
        %v2208 = vsel %vm419, %v2199, %v2200
        %v2209 = vsel %vm503, %v2208, %v2186
        %v2210 = vsel %vm419, %v2200, %v2201
        %v2211 = vsel %vm503, %v2210, %v2188
        %v2212 = vsel %vm419, %v2201, %v2202
        %v2213 = vsel %vm503, %v2212, %v2190
        %v2214 = vsel %vm419, %v2202, %v2203
        %v2215 = vsel %vm503, %v2214, %v2192
        %v2216 = vsel %vm419, %v2203, %v2204
        %v2217 = vsel %vm503, %v2216, %v2194
        %v2218 = vsel %vm419, %v2204, %v2205
        %v2219 = vsel %vm503, %v2218, %v2196
        %v2220 = vsel %vm419, %v2205, %v2206
        %v2221 = vsel %vm503, %v2220, %v2198
        %v2231 = vmul.f32 %v2092, %v2207
        %v2232 = vmul.f32 %v2093, %v2209
        %v2233 = vmul.f32 %v2094, %v2211
        %v2234 = vmul.f32 %v2095, %v2213
        %v2235 = vmul.f32 %v2096, %v2215
        %v2236 = vmul.f32 %v2097, %v2217
        %v2237 = vmul.f32 %v2098, %v2219
        %v2238 = vmul.f32 %v2099, %v2221
        %v2239 = vmul.f32 %v2100, %v2206
        %v2249 = vcombine.high %v2231, %v2231
        %v2250 = vcombine.high %v2232, %v2232
        %v2251 = vcombine.high %v2233, %v2233
        %v2252 = vcombine.high %v2234, %v2234
        %v2253 = vcombine.high %v2235, %v2235
        %v2254 = vcombine.high %v2236, %v2236
        %v2255 = vcombine.high %v2237, %v2237
        %v2256 = vcombine.high %v2238, %v2238
        %2257 = vrot.lane.b32.xlu0 %v2231, 111
        %v2258 = vpop.permute.xlu0 %2257
        %2259 = vrot.lane.b32.xlu0 %v2249, 111
        %v2260 = vpop.permute.xlu0 %2259
        %2261 = vrot.lane.b32.xlu0 %v2232, 111
        %v2262 = vpop.permute.xlu0 %2261
        %2263 = vrot.lane.b32.xlu0 %v2250, 111
        %v2264 = vpop.permute.xlu0 %2263
        %2265 = vrot.lane.b32.xlu0 %v2233, 111
        %v2266 = vpop.permute.xlu0 %2265
        %2267 = vrot.lane.b32.xlu0 %v2251, 111
        %v2268 = vpop.permute.xlu0 %2267
        %2269 = vrot.lane.b32.xlu0 %v2234, 111
        %v2270 = vpop.permute.xlu0 %2269
        %2271 = vrot.lane.b32.xlu0 %v2252, 111
        %v2272 = vpop.permute.xlu0 %2271
        %2273 = vrot.lane.b32.xlu0 %v2235, 111
        %v2274 = vpop.permute.xlu0 %2273
        %2275 = vrot.lane.b32.xlu0 %v2253, 111
        %v2276 = vpop.permute.xlu0 %2275
        %2277 = vrot.lane.b32.xlu0 %v2236, 111
        %v2278 = vpop.permute.xlu0 %2277
        %2279 = vrot.lane.b32.xlu0 %v2254, 111
        %v2280 = vpop.permute.xlu0 %2279
        %2281 = vrot.lane.b32.xlu0 %v2237, 111
        %v2282 = vpop.permute.xlu0 %2281
        %2283 = vrot.lane.b32.xlu0 %v2255, 111
        %v2284 = vpop.permute.xlu0 %2283
        %2285 = vrot.lane.b32.xlu0 %v2238, 111
        %v2286 = vpop.permute.xlu0 %2285
        %2287 = vrot.lane.b32.xlu0 %v2256, 111
        %v2288 = vpop.permute.xlu0 %2287
        %2289 = vrot.lane.b32.xlu0 %v2239, 111
        %v2290 = vpop.permute.xlu0 %2289
        %v2291 = vsel %vm417, %v2258, %v2260
        %v2292 = vsel %vm417, %v2260, %v2262
        %v2293 = vsel %vm417, %v2262, %v2264
        %v2294 = vsel %vm417, %v2264, %v2266
        %v2295 = vsel %vm417, %v2266, %v2268
        %v2296 = vsel %vm417, %v2268, %v2270
        %v2297 = vsel %vm417, %v2270, %v2272
        %v2298 = vsel %vm417, %v2272, %v2274
        %v2299 = vsel %vm417, %v2274, %v2276
        %v2300 = vsel %vm417, %v2276, %v2278
        %v2301 = vsel %vm417, %v2278, %v2280
        %v2302 = vsel %vm417, %v2280, %v2282
        %v2303 = vsel %vm417, %v2282, %v2284
        %v2304 = vsel %vm417, %v2284, %v2286
        %v2305 = vsel %vm417, %v2286, %v2288
        %v2306 = vsel %vm417, %v2288, %v2290
        %2323 = vst [vmem:[#allocation3 + $0x200] sm:$0xf] %v2291
        %2324 = vst [vmem:[#allocation3 + $0x208] sm:$0xf] %v2292
        %2325 = vst [vmem:[#allocation3 + $0x210] sm:$0xf] %v2293
        %2326 = vst [vmem:[#allocation3 + $0x218] sm:$0xf] %v2294
        %2327 = vst [vmem:[#allocation3 + $0x220] sm:$0xf] %v2295
        %2328 = vst [vmem:[#allocation3 + $0x228] sm:$0xf] %v2296
        %2329 = vst [vmem:[#allocation3 + $0x230] sm:$0xf] %v2297
        %2330 = vst [vmem:[#allocation3 + $0x238] sm:$0xf] %v2298
        %2331 = vst [vmem:[#allocation3 + $0x240] sm:$0xf] %v2299
        %2332 = vst [vmem:[#allocation3 + $0x248] sm:$0xf] %v2300
        %2333 = vst [vmem:[#allocation3 + $0x250] sm:$0xf] %v2301
        %2334 = vst [vmem:[#allocation3 + $0x258] sm:$0xf] %v2302
        %2335 = vst [vmem:[#allocation3 + $0x260] sm:$0xf] %v2303
        %2336 = vst [vmem:[#allocation3 + $0x268] sm:$0xf] %v2304
        %2337 = vst [vmem:[#allocation3 + $0x270] sm:$0xf] %v2305
        %2338 = vst [vmem:[#allocation3 + $0x278] sm:$0xf] %v2306
        %2339 = vst [vmem:[#allocation4] sm:$0xff] 0.0
        %2340 = vst [vmem:[#allocation4 + $0x8] sm:$0xff] 0.0
        %2341 = vst [vmem:[#allocation4 + $0x10] sm:$0xff] 0.0
        %2342 = vst [vmem:[#allocation4 + $0x18] sm:$0xff] 0.0
        %2343 = vst [vmem:[#allocation4 + $0xc0] sm:$0xff] 0.0
        %2344 = vst [vmem:[#allocation4 + $0xc8] sm:$0xff] 0.0
        %2345 = vst [vmem:[#allocation4 + $0xd0] sm:$0xff] 0.0
        %2346 = vst [vmem:[#allocation4 + $0xd8] sm:$0xff] 0.0
        %2347 = vst [vmem:[#allocation4 + $0xa0] sm:$0xff] 0.0
        %2348 = vst [vmem:[#allocation4 + $0xa8] sm:$0xff] 0.0
        %2349 = vst [vmem:[#allocation4 + $0xb0] sm:$0xff] 0.0
        %2350 = vst [vmem:[#allocation4 + $0xb8] sm:$0xff] 0.0
        %2351 = vst [vmem:[#allocation4 + $0x160] sm:$0xff] 0.0
        %2352 = vst [vmem:[#allocation4 + $0x168] sm:$0xff] 0.0
        %2353 = vst [vmem:[#allocation4 + $0x170] sm:$0xff] 0.0
        %2354 = vst [vmem:[#allocation4 + $0x178] sm:$0xff] 0.0
        %v2355 = vld [vmem:[#allocation8] sm:$0xff]
        %v2356 = vld [vmem:[#allocation8 + $0x8] sm:$0xff]
        %v2357 = vld [vmem:[#allocation3] sm:$0xff]
        %v2358 = vld [vmem:[#allocation3 + $0x8] sm:$0xff]
        %v2359 = vld [vmem:[#allocation3 + $0x10] sm:$0xff]
        %v2360 = vld [vmem:[#allocation3 + $0x18] sm:$0xff]
        %v2361 = vld [vmem:[#allocation3 + $0x20] sm:$0xff]
        %v2362 = vld [vmem:[#allocation3 + $0x28] sm:$0xff]
        %v2363 = vld [vmem:[#allocation3 + $0x30] sm:$0xff]
        %v2364 = vld [vmem:[#allocation3 + $0x38] sm:$0xff]
        %v2365 = vld [vmem:[#allocation3 + $0x40] sm:$0xff]
        %v2366 = vld [vmem:[#allocation3 + $0x48] sm:$0xff]
        %v2367 = vld [vmem:[#allocation3 + $0x50] sm:$0xff]
        %v2368 = vld [vmem:[#allocation3 + $0x58] sm:$0xff]
        %v2369 = vld [vmem:[#allocation3 + $0x60] sm:$0xff]
        %v2370 = vld [vmem:[#allocation3 + $0x68] sm:$0xff]
        %v2371 = vld [vmem:[#allocation3 + $0x70] sm:$0xff]
        %v2372 = vld [vmem:[#allocation3 + $0x78] sm:$0xff]
        %v2373 = vld [vmem:[#allocation3 + $0x80] sm:$0xff]
        %v2374 = vld [vmem:[#allocation3 + $0x88] sm:$0xff]
        %v2375 = vld [vmem:[#allocation3 + $0x90] sm:$0xff]
        %v2376 = vld [vmem:[#allocation3 + $0x98] sm:$0xff]
        %v2377 = vld [vmem:[#allocation3 + $0xa0] sm:$0xff]
        %v2378 = vld [vmem:[#allocation3 + $0xa8] sm:$0xff]
        %v2379 = vld [vmem:[#allocation3 + $0xb0] sm:$0xff]
        %v2380 = vld [vmem:[#allocation3 + $0xb8] sm:$0xff]
        %v2381 = vld [vmem:[#allocation3 + $0xc0] sm:$0xff]
        %v2382 = vld [vmem:[#allocation3 + $0xc8] sm:$0xff]
        %v2383 = vld [vmem:[#allocation3 + $0xd0] sm:$0xff]
        %v2384 = vld [vmem:[#allocation3 + $0xd8] sm:$0xff]
        %v2385 = vld [vmem:[#allocation3 + $0xe0] sm:$0xff]
        %v2386 = vld [vmem:[#allocation3 + $0xe8] sm:$0xff]
        %v2387 = vld [vmem:[#allocation3 + $0xf0] sm:$0xff]
        %v2388 = vld [vmem:[#allocation3 + $0xf8] sm:$0xff]
        %v2389 = vld [vmem:[#allocation3 + $0x100] sm:$0xff]
        %v2390 = vld [vmem:[#allocation3 + $0x108] sm:$0xff]
        %v2391 = vld [vmem:[#allocation3 + $0x110] sm:$0xff]
        %v2392 = vld [vmem:[#allocation3 + $0x118] sm:$0xff]
        %v2393 = vld [vmem:[#allocation3 + $0x120] sm:$0xff]
        %v2394 = vld [vmem:[#allocation3 + $0x128] sm:$0xff]
        %v2395 = vld [vmem:[#allocation3 + $0x130] sm:$0xff]
        %v2396 = vld [vmem:[#allocation3 + $0x138] sm:$0xff]
        %v2397 = vld [vmem:[#allocation3 + $0x140] sm:$0xff]
        %v2398 = vld [vmem:[#allocation3 + $0x148] sm:$0xff]
        %v2399 = vld [vmem:[#allocation3 + $0x150] sm:$0xff]
        %v2400 = vld [vmem:[#allocation3 + $0x158] sm:$0xff]
        %v2401 = vld [vmem:[#allocation3 + $0x160] sm:$0xff]
        %v2402 = vld [vmem:[#allocation3 + $0x168] sm:$0xff]
        %v2403 = vld [vmem:[#allocation3 + $0x170] sm:$0xff]
        %v2404 = vld [vmem:[#allocation3 + $0x178] sm:$0xff]
        %v2405 = vld [vmem:[#allocation3 + $0x180] sm:$0xff]
        %v2406 = vld [vmem:[#allocation3 + $0x188] sm:$0xff]
        %v2407 = vld [vmem:[#allocation3 + $0x190] sm:$0xff]
        %v2408 = vld [vmem:[#allocation3 + $0x198] sm:$0xff]
        %v2409 = vld [vmem:[#allocation3 + $0x1a0] sm:$0xff]
        %v2410 = vld [vmem:[#allocation3 + $0x1a8] sm:$0xff]
        %v2411 = vld [vmem:[#allocation3 + $0x1b0] sm:$0xff]
        %v2412 = vld [vmem:[#allocation3 + $0x1b8] sm:$0xff]
        %v2413 = vld [vmem:[#allocation3 + $0x1c0] sm:$0xff]
        %v2414 = vld [vmem:[#allocation3 + $0x1c8] sm:$0xff]
        %v2415 = vld [vmem:[#allocation3 + $0x1d0] sm:$0xff]
        %v2416 = vld [vmem:[#allocation3 + $0x1d8] sm:$0xff]
        %v2417 = vld [vmem:[#allocation3 + $0x1e0] sm:$0xff]
        %v2418 = vld [vmem:[#allocation3 + $0x1e8] sm:$0xff]
        %v2419 = vld [vmem:[#allocation3 + $0x1f0] sm:$0xff]
        %v2420 = vld [vmem:[#allocation3 + $0x1f8] sm:$0xff]
        %v2421 = vld [vmem:[#allocation3 + $0x200] sm:$0xf]
        %v2422 = vld [vmem:[#allocation3 + $0x208] sm:$0xf]
        %v2423 = vld [vmem:[#allocation3 + $0x210] sm:$0xf]
        %v2424 = vld [vmem:[#allocation3 + $0x218] sm:$0xf]
        %v2425 = vld [vmem:[#allocation3 + $0x220] sm:$0xf]
        %v2426 = vld [vmem:[#allocation3 + $0x228] sm:$0xf]
        %v2427 = vld [vmem:[#allocation3 + $0x230] sm:$0xf]
        %v2428 = vld [vmem:[#allocation3 + $0x238] sm:$0xf]
        %v2429 = vld [vmem:[#allocation3 + $0x240] sm:$0xf]
        %v2430 = vld [vmem:[#allocation3 + $0x248] sm:$0xf]
        %v2431 = vld [vmem:[#allocation3 + $0x250] sm:$0xf]
        %v2432 = vld [vmem:[#allocation3 + $0x258] sm:$0xf]
        %v2433 = vld [vmem:[#allocation3 + $0x260] sm:$0xf]
        %v2434 = vld [vmem:[#allocation3 + $0x268] sm:$0xf]
        %v2435 = vld [vmem:[#allocation3 + $0x270] sm:$0xf]
        %v2436 = vld [vmem:[#allocation3 + $0x278] sm:$0xf]
        %vm2437 = vcmask 293888
        %v2439 = vsel %vm2437, %v2355, 0
        %v2442 = vsel %vm2437, %v2356, 0
        %v2445 = vsel %vm419, %v2421, 0
        %v2448 = vsel %vm419, %v2422, 0
        %v2451 = vsel %vm419, %v2423, 0
        %v2454 = vsel %vm419, %v2424, 0
        %v2457 = vsel %vm419, %v2425, 0
        %v2460 = vsel %vm419, %v2426, 0
        %v2463 = vsel %vm419, %v2427, 0
        %v2466 = vsel %vm419, %v2428, 0
        %v2469 = vsel %vm419, %v2429, 0
        %v2472 = vsel %vm419, %v2430, 0
        %v2475 = vsel %vm419, %v2431, 0
        %v2478 = vsel %vm419, %v2432, 0
        %v2481 = vsel %vm419, %v2433, 0
        %v2484 = vsel %vm419, %v2434, 0
        %v2487 = vsel %vm419, %v2435, 0
        %v2490 = vsel %vm419, %v2436, 0
        %2492 = vmatprep.subr.mxu0 0.0
        %2493 = vmatpush1.msra.mxu0 0.0
        %2494 = vmatprep.subr.mxu0 0.0
        %2495 = vmatpush1.msra.mxu0 0.0
        %2496 = vmatprep.subr.mxu0 0.0
        %2497 = vmatpush1.msra.mxu0 0.0
        %2498 = vmatprep.subr.mxu0 0.0
        %2499 = vmatpush1.msra.mxu0 0.0
        %2500 = vmatprep.subr.mxu0 0.0
        %2501 = vmatpush1.msra.mxu0 0.0
        %2502 = vmatprep.subr.mxu0 0.0
        %2503 = vmatpush1.msra.mxu0 0.0
        %2504 = vmatprep.subr.mxu0 0.0
        %2505 = vmatpush1.msra.mxu0 0.0
        %2506 = vmatprep.subr.mxu0 0.0
        %2507 = vmatpush1.msra.mxu0 0.0
        %2508 = vmatprep.subr.mxu0 0.0
        %2509 = vmatpush1.msra.mxu0 0.0
        %2510 = vmatprep.subr.mxu0 0.0
        %2511 = vmatpush1.msra.mxu0 0.0
        %2512 = vmatprep.subr.mxu0 0.0
        %2513 = vmatpush1.msra.mxu0 0.0
        %2514 = vmatprep.subr.mxu0 %v2448
        %2515 = vmatpush1.msra.mxu0 %v2445
        %2516 = vmatprep.subr.mxu0 %v2406
        %2517 = vmatpush1.msra.mxu0 %v2405
        %2518 = vmatprep.subr.mxu0 %v2390
        %2519 = vmatpush1.msra.mxu0 %v2389
        %2520 = vmatprep.subr.mxu0 %v2374
        %2521 = vmatpush1.msra.mxu0 %v2373
        %2522 = vmatprep.subr.mxu0 %v2358
        %2523 = vmatpush1.msra.mxu0 %v2357
        %2524 = vmatprep.subr.mxu0 0.0
        %2525 = vmatpush2.msra.mxu0 0.0
        %2526 = vmatprep.subr.mxu0 0.0
        %2527 = vmatpush2.msra.mxu0 0.0
        %2528 = vmatprep.subr.mxu0 0.0
        %2529 = vmatpush2.msra.mxu0 0.0
        %2530 = vmatprep.subr.mxu0 0.0
        %2531 = vmatpush2.msra.mxu0 0.0
        %2532 = vmatprep.subr.mxu0 0.0
        %2533 = vmatpush2.msra.mxu0 0.0
        %2534 = vmatprep.subr.mxu0 0.0
        %2535 = vmatpush2.msra.mxu0 0.0
        %2536 = vmatprep.subr.mxu0 0.0
        %2537 = vmatpush2.msra.mxu0 0.0
        %2538 = vmatprep.subr.mxu0 0.0
        %2539 = vmatpush2.msra.mxu0 0.0
        %2540 = vmatprep.subr.mxu0 0.0
        %2541 = vmatpush2.msra.mxu0 0.0
        %2542 = vmatprep.subr.mxu0 0.0
        %2543 = vmatpush2.msra.mxu0 0.0
        %2544 = vmatprep.subr.mxu0 0.0
        %2545 = vmatpush2.msra.mxu0 0.0
        %2546 = vmatprep.subr.mxu0 0.0
        %2547 = vmatpush2.msra.mxu0 0.0
        %2548 = vmatprep.subr.mxu0 0.0
        %2549 = vmatpush2.msra.mxu0 0.0
        %2550 = vmatprep.subr.mxu0 0.0
        %2551 = vmatpush2.msra.mxu0 0.0
        %2552 = vmatprep.subr.mxu0 0.0
        %2553 = vmatpush2.msra.mxu0 0.0
        %2554 = vmatprep.subr.mxu0 0.0
        %2555 = vmatpush2.msra.mxu0 0.0
        %2556 = vmatprep.mubr.f32.mxu0 0.0
        %2557 = vmatmul.mubr.f32.gmra.mxu0 %v2439
        %v2558 = vpop.f32.mrf.mxu0
        %v2559 = vadd.f32 0.0, %v2558
        %v2560 = vpop.f32.mrf.mxu0
        %v2561 = vadd.f32 0.0, %v2560
        %2562 = vmatprep.mubr.f32.mxu0 0.0
        %2563 = vmatmul.mubr.f32.gmra.mxu0 %v2442
        %v2564 = vpop.f32.mrf.mxu0
        %v2565 = vadd.f32 0.0, %v2564
        %v2566 = vpop.f32.mrf.mxu0
        %v2567 = vadd.f32 0.0, %v2566
        %2568 = vdwg.mxu0
        %2569 = vmatprep.subr.mxu0 0.0
        %2570 = vmatpush1.msra.mxu0 0.0
        %2571 = vmatprep.subr.mxu0 0.0
        %2572 = vmatpush1.msra.mxu0 0.0
        %2573 = vmatprep.subr.mxu0 0.0
        %2574 = vmatpush1.msra.mxu0 0.0
        %2575 = vmatprep.subr.mxu0 0.0
        %2576 = vmatpush1.msra.mxu0 0.0
        %2577 = vmatprep.subr.mxu0 0.0
        %2578 = vmatpush1.msra.mxu0 0.0
        %2579 = vmatprep.subr.mxu0 0.0
        %2580 = vmatpush1.msra.mxu0 0.0
        %2581 = vmatprep.subr.mxu0 0.0
        %2582 = vmatpush1.msra.mxu0 0.0
        %2583 = vmatprep.subr.mxu0 0.0
        %2584 = vmatpush1.msra.mxu0 0.0
        %2585 = vmatprep.subr.mxu0 0.0
        %2586 = vmatpush1.msra.mxu0 0.0
        %2587 = vmatprep.subr.mxu0 0.0
        %2588 = vmatpush1.msra.mxu0 0.0
        %2589 = vmatprep.subr.mxu0 0.0
        %2590 = vmatpush1.msra.mxu0 0.0
        %2591 = vmatprep.subr.mxu0 %v2454
        %2592 = vmatpush1.msra.mxu0 %v2451
        %2593 = vmatprep.subr.mxu0 %v2408
        %2594 = vmatpush1.msra.mxu0 %v2407
        %2595 = vmatprep.subr.mxu0 %v2392
        %2596 = vmatpush1.msra.mxu0 %v2391
        %2597 = vmatprep.subr.mxu0 %v2376
        %2598 = vmatpush1.msra.mxu0 %v2375
        %2599 = vmatprep.subr.mxu0 %v2360
        %2600 = vmatpush1.msra.mxu0 %v2359
        %2601 = vmatprep.subr.mxu0 0.0
        %2602 = vmatpush2.msra.mxu0 0.0
        %2603 = vmatprep.subr.mxu0 0.0
        %2604 = vmatpush2.msra.mxu0 0.0
        %2605 = vmatprep.subr.mxu0 0.0
        %2606 = vmatpush2.msra.mxu0 0.0
        %2607 = vmatprep.subr.mxu0 0.0
        %2608 = vmatpush2.msra.mxu0 0.0
        %2609 = vmatprep.subr.mxu0 0.0
        %2610 = vmatpush2.msra.mxu0 0.0
        %2611 = vmatprep.subr.mxu0 0.0
        %2612 = vmatpush2.msra.mxu0 0.0
        %2613 = vmatprep.subr.mxu0 0.0
        %2614 = vmatpush2.msra.mxu0 0.0
        %2615 = vmatprep.subr.mxu0 0.0
        %2616 = vmatpush2.msra.mxu0 0.0
        %2617 = vmatprep.subr.mxu0 0.0
        %2618 = vmatpush2.msra.mxu0 0.0
        %2619 = vmatprep.subr.mxu0 0.0
        %2620 = vmatpush2.msra.mxu0 0.0
        %2621 = vmatprep.subr.mxu0 0.0
        %2622 = vmatpush2.msra.mxu0 0.0
        %2623 = vmatprep.subr.mxu0 0.0
        %2624 = vmatpush2.msra.mxu0 0.0
        %2625 = vmatprep.subr.mxu0 0.0
        %2626 = vmatpush2.msra.mxu0 0.0
        %2627 = vmatprep.subr.mxu0 0.0
        %2628 = vmatpush2.msra.mxu0 0.0
        %2629 = vmatprep.subr.mxu0 0.0
        %2630 = vmatpush2.msra.mxu0 0.0
        %2631 = vmatprep.subr.mxu0 0.0
        %2632 = vmatpush2.msra.mxu0 0.0
        %2633 = vmatprep.mubr.f32.mxu0 0.0
        %2634 = vmatmul.mubr.f32.gmra.mxu0 %v2439
        %v2635 = vpop.f32.mrf.mxu0
        %v2636 = vadd.f32 0.0, %v2635
        %v2637 = vpop.f32.mrf.mxu0
        %v2638 = vadd.f32 0.0, %v2637
        %2639 = vmatprep.mubr.f32.mxu0 0.0
        %2640 = vmatmul.mubr.f32.gmra.mxu0 %v2442
        %v2641 = vpop.f32.mrf.mxu0
        %v2642 = vadd.f32 0.0, %v2641
        %v2643 = vpop.f32.mrf.mxu0
        %v2644 = vadd.f32 0.0, %v2643
        %2645 = vdwg.mxu0
        %2646 = vmatprep.subr.mxu0 0.0
        %2647 = vmatpush1.msra.mxu0 0.0
        %2648 = vmatprep.subr.mxu0 0.0
        %2649 = vmatpush1.msra.mxu0 0.0
        %2650 = vmatprep.subr.mxu0 0.0
        %2651 = vmatpush1.msra.mxu0 0.0
        %2652 = vmatprep.subr.mxu0 0.0
        %2653 = vmatpush1.msra.mxu0 0.0
        %2654 = vmatprep.subr.mxu0 0.0
        %2655 = vmatpush1.msra.mxu0 0.0
        %2656 = vmatprep.subr.mxu0 0.0
        %2657 = vmatpush1.msra.mxu0 0.0
        %2658 = vmatprep.subr.mxu0 0.0
        %2659 = vmatpush1.msra.mxu0 0.0
        %2660 = vmatprep.subr.mxu0 0.0
        %2661 = vmatpush1.msra.mxu0 0.0
        %2662 = vmatprep.subr.mxu0 0.0
        %2663 = vmatpush1.msra.mxu0 0.0
        %2664 = vmatprep.subr.mxu0 0.0
        %2665 = vmatpush1.msra.mxu0 0.0
        %2666 = vmatprep.subr.mxu0 0.0
        %2667 = vmatpush1.msra.mxu0 0.0
        %2668 = vmatprep.subr.mxu0 %v2460
        %2669 = vmatpush1.msra.mxu0 %v2457
        %2670 = vmatprep.subr.mxu0 %v2410
        %2671 = vmatpush1.msra.mxu0 %v2409
        %2672 = vmatprep.subr.mxu0 %v2394
        %2673 = vmatpush1.msra.mxu0 %v2393
        %2674 = vmatprep.subr.mxu0 %v2378
        %2675 = vmatpush1.msra.mxu0 %v2377
        %2676 = vmatprep.subr.mxu0 %v2362
        %2677 = vmatpush1.msra.mxu0 %v2361
        %2678 = vmatprep.subr.mxu0 0.0
        %2679 = vmatpush2.msra.mxu0 0.0
        %2680 = vmatprep.subr.mxu0 0.0
        %2681 = vmatpush2.msra.mxu0 0.0
        %2682 = vmatprep.subr.mxu0 0.0
        %2683 = vmatpush2.msra.mxu0 0.0
        %2684 = vmatprep.subr.mxu0 0.0
        %2685 = vmatpush2.msra.mxu0 0.0
        %2686 = vmatprep.subr.mxu0 0.0
        %2687 = vmatpush2.msra.mxu0 0.0
        %2688 = vmatprep.subr.mxu0 0.0
        %2689 = vmatpush2.msra.mxu0 0.0
        %2690 = vmatprep.subr.mxu0 0.0
        %2691 = vmatpush2.msra.mxu0 0.0
        %2692 = vmatprep.subr.mxu0 0.0
        %2693 = vmatpush2.msra.mxu0 0.0
        %2694 = vmatprep.subr.mxu0 0.0
        %2695 = vmatpush2.msra.mxu0 0.0
        %2696 = vmatprep.subr.mxu0 0.0
        %2697 = vmatpush2.msra.mxu0 0.0
        %2698 = vmatprep.subr.mxu0 0.0
        %2699 = vmatpush2.msra.mxu0 0.0
        %2700 = vmatprep.subr.mxu0 0.0
        %2701 = vmatpush2.msra.mxu0 0.0
        %2702 = vmatprep.subr.mxu0 0.0
        %2703 = vmatpush2.msra.mxu0 0.0
        %2704 = vmatprep.subr.mxu0 0.0
        %2705 = vmatpush2.msra.mxu0 0.0
        %2706 = vmatprep.subr.mxu0 0.0
        %2707 = vmatpush2.msra.mxu0 0.0
        %2708 = vmatprep.subr.mxu0 0.0
        %2709 = vmatpush2.msra.mxu0 0.0
        %2710 = vmatprep.mubr.f32.mxu0 0.0
        %2711 = vmatmul.mubr.f32.gmra.mxu0 %v2439
        %v2712 = vpop.f32.mrf.mxu0
        %v2713 = vadd.f32 0.0, %v2712
        %v2714 = vpop.f32.mrf.mxu0
        %v2715 = vadd.f32 0.0, %v2714
        %2716 = vmatprep.mubr.f32.mxu0 0.0
        %2717 = vmatmul.mubr.f32.gmra.mxu0 %v2442
        %v2718 = vpop.f32.mrf.mxu0
        %v2719 = vadd.f32 0.0, %v2718
        %v2720 = vpop.f32.mrf.mxu0
        %v2721 = vadd.f32 0.0, %v2720
        %2722 = vdwg.mxu0
        %2723 = vmatprep.subr.mxu0 0.0
        %2724 = vmatpush1.msra.mxu0 0.0
        %2725 = vmatprep.subr.mxu0 0.0
        %2726 = vmatpush1.msra.mxu0 0.0
        %2727 = vmatprep.subr.mxu0 0.0
        %2728 = vmatpush1.msra.mxu0 0.0
        %2729 = vmatprep.subr.mxu0 0.0
        %2730 = vmatpush1.msra.mxu0 0.0
        %2731 = vmatprep.subr.mxu0 0.0
        %2732 = vmatpush1.msra.mxu0 0.0
        %2733 = vmatprep.subr.mxu0 0.0
        %2734 = vmatpush1.msra.mxu0 0.0
        %2735 = vmatprep.subr.mxu0 0.0
        %2736 = vmatpush1.msra.mxu0 0.0
        %2737 = vmatprep.subr.mxu0 0.0
        %2738 = vmatpush1.msra.mxu0 0.0
        %2739 = vmatprep.subr.mxu0 0.0
        %2740 = vmatpush1.msra.mxu0 0.0
        %2741 = vmatprep.subr.mxu0 0.0
        %2742 = vmatpush1.msra.mxu0 0.0
        %2743 = vmatprep.subr.mxu0 0.0
        %2744 = vmatpush1.msra.mxu0 0.0
        %2745 = vmatprep.subr.mxu0 %v2466
        %2746 = vmatpush1.msra.mxu0 %v2463
        %2747 = vmatprep.subr.mxu0 %v2412
        %2748 = vmatpush1.msra.mxu0 %v2411
        %2749 = vmatprep.subr.mxu0 %v2396
        %2750 = vmatpush1.msra.mxu0 %v2395
        %2751 = vmatprep.subr.mxu0 %v2380
        %2752 = vmatpush1.msra.mxu0 %v2379
        %2753 = vmatprep.subr.mxu0 %v2364
        %2754 = vmatpush1.msra.mxu0 %v2363
        %2755 = vmatprep.subr.mxu0 0.0
        %2756 = vmatpush2.msra.mxu0 0.0
        %2757 = vmatprep.subr.mxu0 0.0
        %2758 = vmatpush2.msra.mxu0 0.0
        %2759 = vmatprep.subr.mxu0 0.0
        %2760 = vmatpush2.msra.mxu0 0.0
        %2761 = vmatprep.subr.mxu0 0.0
        %2762 = vmatpush2.msra.mxu0 0.0
        %2763 = vmatprep.subr.mxu0 0.0
        %2764 = vmatpush2.msra.mxu0 0.0
        %2765 = vmatprep.subr.mxu0 0.0
        %2766 = vmatpush2.msra.mxu0 0.0
        %2767 = vmatprep.subr.mxu0 0.0
        %2768 = vmatpush2.msra.mxu0 0.0
        %2769 = vmatprep.subr.mxu0 0.0
        %2770 = vmatpush2.msra.mxu0 0.0
        %2771 = vmatprep.subr.mxu0 0.0
        %2772 = vmatpush2.msra.mxu0 0.0
        %2773 = vmatprep.subr.mxu0 0.0
        %2774 = vmatpush2.msra.mxu0 0.0
        %2775 = vmatprep.subr.mxu0 0.0
        %2776 = vmatpush2.msra.mxu0 0.0
        %2777 = vmatprep.subr.mxu0 0.0
        %2778 = vmatpush2.msra.mxu0 0.0
        %2779 = vmatprep.subr.mxu0 0.0
        %2780 = vmatpush2.msra.mxu0 0.0
        %2781 = vmatprep.subr.mxu0 0.0
        %2782 = vmatpush2.msra.mxu0 0.0
        %2783 = vmatprep.subr.mxu0 0.0
        %2784 = vmatpush2.msra.mxu0 0.0
        %2785 = vmatprep.subr.mxu0 0.0
        %2786 = vmatpush2.msra.mxu0 0.0
        %2787 = vmatprep.mubr.f32.mxu0 0.0
        %2788 = vmatmul.mubr.f32.gmra.mxu0 %v2439
        %v2789 = vpop.f32.mrf.mxu0
        %v2790 = vadd.f32 0.0, %v2789
        %v2791 = vpop.f32.mrf.mxu0
        %v2792 = vadd.f32 0.0, %v2791
        %2793 = vmatprep.mubr.f32.mxu0 0.0
        %2794 = vmatmul.mubr.f32.gmra.mxu0 %v2442
        %v2795 = vpop.f32.mrf.mxu0
        %v2796 = vadd.f32 0.0, %v2795
        %v2797 = vpop.f32.mrf.mxu0
        %v2798 = vadd.f32 0.0, %v2797
        %2799 = vdwg.mxu0
        %2800 = vmatprep.subr.mxu0 0.0
        %2801 = vmatpush1.msra.mxu0 0.0
        %2802 = vmatprep.subr.mxu0 0.0
        %2803 = vmatpush1.msra.mxu0 0.0
        %2804 = vmatprep.subr.mxu0 0.0
        %2805 = vmatpush1.msra.mxu0 0.0
        %2806 = vmatprep.subr.mxu0 0.0
        %2807 = vmatpush1.msra.mxu0 0.0
        %2808 = vmatprep.subr.mxu0 0.0
        %2809 = vmatpush1.msra.mxu0 0.0
        %2810 = vmatprep.subr.mxu0 0.0
        %2811 = vmatpush1.msra.mxu0 0.0
        %2812 = vmatprep.subr.mxu0 0.0
        %2813 = vmatpush1.msra.mxu0 0.0
        %2814 = vmatprep.subr.mxu0 0.0
        %2815 = vmatpush1.msra.mxu0 0.0
        %2816 = vmatprep.subr.mxu0 0.0
        %2817 = vmatpush1.msra.mxu0 0.0
        %2818 = vmatprep.subr.mxu0 0.0
        %2819 = vmatpush1.msra.mxu0 0.0
        %2820 = vmatprep.subr.mxu0 0.0
        %2821 = vmatpush1.msra.mxu0 0.0
        %2822 = vmatprep.subr.mxu0 %v2472
        %2823 = vmatpush1.msra.mxu0 %v2469
        %2824 = vmatprep.subr.mxu0 %v2414
        %2825 = vmatpush1.msra.mxu0 %v2413
        %2826 = vmatprep.subr.mxu0 %v2398
        %2827 = vmatpush1.msra.mxu0 %v2397
        %2828 = vmatprep.subr.mxu0 %v2382
        %2829 = vmatpush1.msra.mxu0 %v2381
        %2830 = vmatprep.subr.mxu0 %v2366
        %2831 = vmatpush1.msra.mxu0 %v2365
        %2832 = vmatprep.subr.mxu0 0.0
        %2833 = vmatpush2.msra.mxu0 0.0
        %2834 = vmatprep.subr.mxu0 0.0
        %2835 = vmatpush2.msra.mxu0 0.0
        %2836 = vmatprep.subr.mxu0 0.0
        %2837 = vmatpush2.msra.mxu0 0.0
        %2838 = vmatprep.subr.mxu0 0.0
        %2839 = vmatpush2.msra.mxu0 0.0
        %2840 = vmatprep.subr.mxu0 0.0
        %2841 = vmatpush2.msra.mxu0 0.0
        %2842 = vmatprep.subr.mxu0 0.0
        %2843 = vmatpush2.msra.mxu0 0.0
        %2844 = vmatprep.subr.mxu0 0.0
        %2845 = vmatpush2.msra.mxu0 0.0
        %2846 = vmatprep.subr.mxu0 0.0
        %2847 = vmatpush2.msra.mxu0 0.0
        %2848 = vmatprep.subr.mxu0 0.0
        %2849 = vmatpush2.msra.mxu0 0.0
        %2850 = vmatprep.subr.mxu0 0.0
        %2851 = vmatpush2.msra.mxu0 0.0
        %2852 = vmatprep.subr.mxu0 0.0
        %2853 = vmatpush2.msra.mxu0 0.0
        %2854 = vmatprep.subr.mxu0 0.0
        %2855 = vmatpush2.msra.mxu0 0.0
        %2856 = vmatprep.subr.mxu0 0.0
        %2857 = vmatpush2.msra.mxu0 0.0
        %2858 = vmatprep.subr.mxu0 0.0
        %2859 = vmatpush2.msra.mxu0 0.0
        %2860 = vmatprep.subr.mxu0 0.0
        %2861 = vmatpush2.msra.mxu0 0.0
        %2862 = vmatprep.subr.mxu0 0.0
        %2863 = vmatpush2.msra.mxu0 0.0
        %2864 = vmatprep.mubr.f32.mxu0 0.0
        %2865 = vmatmul.mubr.f32.gmra.mxu0 %v2439
        %v2866 = vpop.f32.mrf.mxu0
        %v2867 = vadd.f32 0.0, %v2866
        %v2868 = vpop.f32.mrf.mxu0
        %v2869 = vadd.f32 0.0, %v2868
        %2870 = vmatprep.mubr.f32.mxu0 0.0
        %2871 = vmatmul.mubr.f32.gmra.mxu0 %v2442
        %v2872 = vpop.f32.mrf.mxu0
        %v2873 = vadd.f32 0.0, %v2872
        %v2874 = vpop.f32.mrf.mxu0
        %v2875 = vadd.f32 0.0, %v2874
        %2876 = vdwg.mxu0
        %2877 = vmatprep.subr.mxu0 0.0
        %2878 = vmatpush1.msra.mxu0 0.0
        %2879 = vmatprep.subr.mxu0 0.0
        %2880 = vmatpush1.msra.mxu0 0.0
        %2881 = vmatprep.subr.mxu0 0.0
        %2882 = vmatpush1.msra.mxu0 0.0
        %2883 = vmatprep.subr.mxu0 0.0
        %2884 = vmatpush1.msra.mxu0 0.0
        %2885 = vmatprep.subr.mxu0 0.0
        %2886 = vmatpush1.msra.mxu0 0.0
        %2887 = vmatprep.subr.mxu0 0.0
        %2888 = vmatpush1.msra.mxu0 0.0
        %2889 = vmatprep.subr.mxu0 0.0
        %2890 = vmatpush1.msra.mxu0 0.0
        %2891 = vmatprep.subr.mxu0 0.0
        %2892 = vmatpush1.msra.mxu0 0.0
        %2893 = vmatprep.subr.mxu0 0.0
        %2894 = vmatpush1.msra.mxu0 0.0
        %2895 = vmatprep.subr.mxu0 0.0
        %2896 = vmatpush1.msra.mxu0 0.0
        %2897 = vmatprep.subr.mxu0 0.0
        %2898 = vmatpush1.msra.mxu0 0.0
        %2899 = vmatprep.subr.mxu0 %v2478
        %2900 = vmatpush1.msra.mxu0 %v2475
        %2901 = vmatprep.subr.mxu0 %v2416
        %2902 = vmatpush1.msra.mxu0 %v2415
        %2903 = vmatprep.subr.mxu0 %v2400
        %2904 = vmatpush1.msra.mxu0 %v2399
        %2905 = vmatprep.subr.mxu0 %v2384
        %2906 = vmatpush1.msra.mxu0 %v2383
        %2907 = vmatprep.subr.mxu0 %v2368
        %2908 = vmatpush1.msra.mxu0 %v2367
        %2909 = vmatprep.subr.mxu0 0.0
        %2910 = vmatpush2.msra.mxu0 0.0
        %2911 = vmatprep.subr.mxu0 0.0
        %2912 = vmatpush2.msra.mxu0 0.0
        %2913 = vmatprep.subr.mxu0 0.0
        %2914 = vmatpush2.msra.mxu0 0.0
        %2915 = vmatprep.subr.mxu0 0.0
        %2916 = vmatpush2.msra.mxu0 0.0
        %2917 = vmatprep.subr.mxu0 0.0
        %2918 = vmatpush2.msra.mxu0 0.0
        %2919 = vmatprep.subr.mxu0 0.0
        %2920 = vmatpush2.msra.mxu0 0.0
        %2921 = vmatprep.subr.mxu0 0.0
        %2922 = vmatpush2.msra.mxu0 0.0
        %2923 = vmatprep.subr.mxu0 0.0
        %2924 = vmatpush2.msra.mxu0 0.0
        %2925 = vmatprep.subr.mxu0 0.0
        %2926 = vmatpush2.msra.mxu0 0.0
        %2927 = vmatprep.subr.mxu0 0.0
        %2928 = vmatpush2.msra.mxu0 0.0
        %2929 = vmatprep.subr.mxu0 0.0
        %2930 = vmatpush2.msra.mxu0 0.0
        %2931 = vmatprep.subr.mxu0 0.0
        %2932 = vmatpush2.msra.mxu0 0.0
        %2933 = vmatprep.subr.mxu0 0.0
        %2934 = vmatpush2.msra.mxu0 0.0
        %2935 = vmatprep.subr.mxu0 0.0
        %2936 = vmatpush2.msra.mxu0 0.0
        %2937 = vmatprep.subr.mxu0 0.0
        %2938 = vmatpush2.msra.mxu0 0.0
        %2939 = vmatprep.subr.mxu0 0.0
        %2940 = vmatpush2.msra.mxu0 0.0
        %2941 = vmatprep.mubr.f32.mxu0 0.0
        %2942 = vmatmul.mubr.f32.gmra.mxu0 %v2439
        %v2943 = vpop.f32.mrf.mxu0
        %v2944 = vadd.f32 0.0, %v2943
        %v2945 = vpop.f32.mrf.mxu0
        %v2946 = vadd.f32 0.0, %v2945
        %2947 = vmatprep.mubr.f32.mxu0 0.0
        %2948 = vmatmul.mubr.f32.gmra.mxu0 %v2442
        %v2949 = vpop.f32.mrf.mxu0
        %v2950 = vadd.f32 0.0, %v2949
        %v2951 = vpop.f32.mrf.mxu0
        %v2952 = vadd.f32 0.0, %v2951
        %2953 = vdwg.mxu0
        %2954 = vmatprep.subr.mxu0 0.0
        %2955 = vmatpush1.msra.mxu0 0.0
        %2956 = vmatprep.subr.mxu0 0.0
        %2957 = vmatpush1.msra.mxu0 0.0
        %2958 = vmatprep.subr.mxu0 0.0
        %2959 = vmatpush1.msra.mxu0 0.0
        %2960 = vmatprep.subr.mxu0 0.0
        %2961 = vmatpush1.msra.mxu0 0.0
        %2962 = vmatprep.subr.mxu0 0.0
        %2963 = vmatpush1.msra.mxu0 0.0
        %2964 = vmatprep.subr.mxu0 0.0
        %2965 = vmatpush1.msra.mxu0 0.0
        %2966 = vmatprep.subr.mxu0 0.0
        %2967 = vmatpush1.msra.mxu0 0.0
        %2968 = vmatprep.subr.mxu0 0.0
        %2969 = vmatpush1.msra.mxu0 0.0
        %2970 = vmatprep.subr.mxu0 0.0
        %2971 = vmatpush1.msra.mxu0 0.0
        %2972 = vmatprep.subr.mxu0 0.0
        %2973 = vmatpush1.msra.mxu0 0.0
        %2974 = vmatprep.subr.mxu0 0.0
        %2975 = vmatpush1.msra.mxu0 0.0
        %2976 = vmatprep.subr.mxu0 %v2484
        %2977 = vmatpush1.msra.mxu0 %v2481
        %2978 = vmatprep.subr.mxu0 %v2418
        %2979 = vmatpush1.msra.mxu0 %v2417
        %2980 = vmatprep.subr.mxu0 %v2402
        %2981 = vmatpush1.msra.mxu0 %v2401
        %2982 = vmatprep.subr.mxu0 %v2386
        %2983 = vmatpush1.msra.mxu0 %v2385
        %2984 = vmatprep.subr.mxu0 %v2370
        %2985 = vmatpush1.msra.mxu0 %v2369
        %2986 = vmatprep.subr.mxu0 0.0
        %2987 = vmatpush2.msra.mxu0 0.0
        %2988 = vmatprep.subr.mxu0 0.0
        %2989 = vmatpush2.msra.mxu0 0.0
        %2990 = vmatprep.subr.mxu0 0.0
        %2991 = vmatpush2.msra.mxu0 0.0
        %2992 = vmatprep.subr.mxu0 0.0
        %2993 = vmatpush2.msra.mxu0 0.0
        %2994 = vmatprep.subr.mxu0 0.0
        %2995 = vmatpush2.msra.mxu0 0.0
        %2996 = vmatprep.subr.mxu0 0.0
        %2997 = vmatpush2.msra.mxu0 0.0
        %2998 = vmatprep.subr.mxu0 0.0
        %2999 = vmatpush2.msra.mxu0 0.0
        %3000 = vmatprep.subr.mxu0 0.0
        %3001 = vmatpush2.msra.mxu0 0.0
        %3002 = vmatprep.subr.mxu0 0.0
        %3003 = vmatpush2.msra.mxu0 0.0
        %3004 = vmatprep.subr.mxu0 0.0
        %3005 = vmatpush2.msra.mxu0 0.0
        %3006 = vmatprep.subr.mxu0 0.0
        %3007 = vmatpush2.msra.mxu0 0.0
        %3008 = vmatprep.subr.mxu0 0.0
        %3009 = vmatpush2.msra.mxu0 0.0
        %3010 = vmatprep.subr.mxu0 0.0
        %3011 = vmatpush2.msra.mxu0 0.0
        %3012 = vmatprep.subr.mxu0 0.0
        %3013 = vmatpush2.msra.mxu0 0.0
        %3014 = vmatprep.subr.mxu0 0.0
        %3015 = vmatpush2.msra.mxu0 0.0
        %3016 = vmatprep.subr.mxu0 0.0
        %3017 = vmatpush2.msra.mxu0 0.0
        %3018 = vmatprep.mubr.f32.mxu0 0.0
        %3019 = vmatmul.mubr.f32.gmra.mxu0 %v2439
        %v3020 = vpop.f32.mrf.mxu0
        %v3021 = vadd.f32 0.0, %v3020
        %v3022 = vpop.f32.mrf.mxu0
        %v3023 = vadd.f32 0.0, %v3022
        %3024 = vmatprep.mubr.f32.mxu0 0.0
        %3025 = vmatmul.mubr.f32.gmra.mxu0 %v2442
        %v3026 = vpop.f32.mrf.mxu0
        %v3027 = vadd.f32 0.0, %v3026
        %v3028 = vpop.f32.mrf.mxu0
        %v3029 = vadd.f32 0.0, %v3028
        %3030 = vdwg.mxu0
        %3031 = vmatprep.subr.mxu0 0.0
        %3032 = vmatpush1.msra.mxu0 0.0
        %3033 = vmatprep.subr.mxu0 0.0
        %3034 = vmatpush1.msra.mxu0 0.0
        %3035 = vmatprep.subr.mxu0 0.0
        %3036 = vmatpush1.msra.mxu0 0.0
        %3037 = vmatprep.subr.mxu0 0.0
        %3038 = vmatpush1.msra.mxu0 0.0
        %3039 = vmatprep.subr.mxu0 0.0
        %3040 = vmatpush1.msra.mxu0 0.0
        %3041 = vmatprep.subr.mxu0 0.0
        %3042 = vmatpush1.msra.mxu0 0.0
        %3043 = vmatprep.subr.mxu0 0.0
        %3044 = vmatpush1.msra.mxu0 0.0
        %3045 = vmatprep.subr.mxu0 0.0
        %3046 = vmatpush1.msra.mxu0 0.0
        %3047 = vmatprep.subr.mxu0 0.0
        %3048 = vmatpush1.msra.mxu0 0.0
        %3049 = vmatprep.subr.mxu0 0.0
        %3050 = vmatpush1.msra.mxu0 0.0
        %3051 = vmatprep.subr.mxu0 0.0
        %3052 = vmatpush1.msra.mxu0 0.0
        %3053 = vmatprep.subr.mxu0 %v2490
        %3054 = vmatpush1.msra.mxu0 %v2487
        %3055 = vmatprep.subr.mxu0 %v2420
        %3056 = vmatpush1.msra.mxu0 %v2419
        %3057 = vmatprep.subr.mxu0 %v2404
        %3058 = vmatpush1.msra.mxu0 %v2403
        %3059 = vmatprep.subr.mxu0 %v2388
        %3060 = vmatpush1.msra.mxu0 %v2387
        %3061 = vmatprep.subr.mxu0 %v2372
        %3062 = vmatpush1.msra.mxu0 %v2371
        %3063 = vmatprep.subr.mxu0 0.0
        %3064 = vmatpush2.msra.mxu0 0.0
        %3065 = vmatprep.subr.mxu0 0.0
        %3066 = vmatpush2.msra.mxu0 0.0
        %3067 = vmatprep.subr.mxu0 0.0
        %3068 = vmatpush2.msra.mxu0 0.0
        %3069 = vmatprep.subr.mxu0 0.0
        %3070 = vmatpush2.msra.mxu0 0.0
        %3071 = vmatprep.subr.mxu0 0.0
        %3072 = vmatpush2.msra.mxu0 0.0
        %3073 = vmatprep.subr.mxu0 0.0
        %3074 = vmatpush2.msra.mxu0 0.0
        %3075 = vmatprep.subr.mxu0 0.0
        %3076 = vmatpush2.msra.mxu0 0.0
        %3077 = vmatprep.subr.mxu0 0.0
        %3078 = vmatpush2.msra.mxu0 0.0
        %3079 = vmatprep.subr.mxu0 0.0
        %3080 = vmatpush2.msra.mxu0 0.0
        %3081 = vmatprep.subr.mxu0 0.0
        %3082 = vmatpush2.msra.mxu0 0.0
        %3083 = vmatprep.subr.mxu0 0.0
        %3084 = vmatpush2.msra.mxu0 0.0
        %3085 = vmatprep.subr.mxu0 0.0
        %3086 = vmatpush2.msra.mxu0 0.0
        %3087 = vmatprep.subr.mxu0 0.0
        %3088 = vmatpush2.msra.mxu0 0.0
        %3089 = vmatprep.subr.mxu0 0.0
        %3090 = vmatpush2.msra.mxu0 0.0
        %3091 = vmatprep.subr.mxu0 0.0
        %3092 = vmatpush2.msra.mxu0 0.0
        %3093 = vmatprep.subr.mxu0 0.0
        %3094 = vmatpush2.msra.mxu0 0.0
        %3095 = vmatprep.mubr.f32.mxu0 0.0
        %3096 = vmatmul.mubr.f32.gmra.mxu0 %v2439
        %v3097 = vpop.f32.mrf.mxu0
        %v3098 = vadd.f32 0.0, %v3097
        %v3099 = vpop.f32.mrf.mxu0
        %v3100 = vadd.f32 0.0, %v3099
        %3101 = vmatprep.mubr.f32.mxu0 0.0
        %3102 = vmatmul.mubr.f32.gmra.mxu0 %v2442
        %v3103 = vpop.f32.mrf.mxu0
        %v3104 = vadd.f32 0.0, %v3103
        %v3105 = vpop.f32.mrf.mxu0
        %v3106 = vadd.f32 0.0, %v3105
        %3107 = vdwg.mxu0
        %3108 = vst [vmem:[#allocation4 + $0x20] sm:$0xff] %v2559
        %3109 = vst [vmem:[#allocation4 + $0x28] sm:$0xff] %v2561
        %3110 = vst [vmem:[#allocation4 + $0x30] sm:$0xff] %v2636
        %3111 = vst [vmem:[#allocation4 + $0x38] sm:$0xff] %v2638
        %3112 = vst [vmem:[#allocation4 + $0x40] sm:$0xff] %v2713
        %3113 = vst [vmem:[#allocation4 + $0x48] sm:$0xff] %v2715
        %3114 = vst [vmem:[#allocation4 + $0x50] sm:$0xff] %v2790
        %3115 = vst [vmem:[#allocation4 + $0x58] sm:$0xff] %v2792
        %3116 = vst [vmem:[#allocation4 + $0x60] sm:$0xff] %v2867
        %3117 = vst [vmem:[#allocation4 + $0x68] sm:$0xff] %v2869
        %3118 = vst [vmem:[#allocation4 + $0x70] sm:$0xff] %v2944
        %3119 = vst [vmem:[#allocation4 + $0x78] sm:$0xff] %v2946
        %3120 = vst [vmem:[#allocation4 + $0x80] sm:$0xff] %v3021
        %3121 = vst [vmem:[#allocation4 + $0x88] sm:$0xff] %v3023
        %3122 = vst [vmem:[#allocation4 + $0x90] sm:$0xff] %v3098
        %3123 = vst [vmem:[#allocation4 + $0x98] sm:$0xff] %v3100
        %3124 = vst [vmem:[#allocation4 + $0xe0] sm:$0xff] %v2565
        %3125 = vst [vmem:[#allocation4 + $0xe8] sm:$0xff] %v2567
        %3126 = vst [vmem:[#allocation4 + $0xf0] sm:$0xff] %v2642
        %3127 = vst [vmem:[#allocation4 + $0xf8] sm:$0xff] %v2644
        %3128 = vst [vmem:[#allocation4 + $0x100] sm:$0xff] %v2719
        %3129 = vst [vmem:[#allocation4 + $0x108] sm:$0xff] %v2721
        %3130 = vst [vmem:[#allocation4 + $0x110] sm:$0xff] %v2796
        %3131 = vst [vmem:[#allocation4 + $0x118] sm:$0xff] %v2798
        %3132 = vst [vmem:[#allocation4 + $0x120] sm:$0xff] %v2873
        %3133 = vst [vmem:[#allocation4 + $0x128] sm:$0xff] %v2875
        %3134 = vst [vmem:[#allocation4 + $0x130] sm:$0xff] %v2950
        %3135 = vst [vmem:[#allocation4 + $0x138] sm:$0xff] %v2952
        %3136 = vst [vmem:[#allocation4 + $0x140] sm:$0xff] %v3027
        %3137 = vst [vmem:[#allocation4 + $0x148] sm:$0xff] %v3029
        %3138 = vst [vmem:[#allocation4 + $0x150] sm:$0xff] %v3104
        %3139 = vst [vmem:[#allocation4 + $0x158] sm:$0xff] %v3106
        %v3140 = vld [vmem:[#allocation10] sm:$0xff]
        %v3141 = vld [vmem:[#allocation4] sm:$0xff]
        %v3142 = vld [vmem:[#allocation4 + $0x8] sm:$0xff]
        %v3143 = vld [vmem:[#allocation4 + $0x10] sm:$0xff]
        %v3144 = vld [vmem:[#allocation4 + $0x18] sm:$0xff]
        %v3145 = vld [vmem:[#allocation4 + $0x20] sm:$0xff]
        %v3146 = vld [vmem:[#allocation4 + $0x28] sm:$0xff]
        %v3147 = vld [vmem:[#allocation4 + $0x30] sm:$0xff]
        %v3148 = vld [vmem:[#allocation4 + $0x38] sm:$0xff]
        %v3149 = vld [vmem:[#allocation4 + $0x40] sm:$0xff]
        %v3150 = vld [vmem:[#allocation4 + $0x48] sm:$0xff]
        %v3151 = vld [vmem:[#allocation4 + $0x50] sm:$0xff]
        %v3152 = vld [vmem:[#allocation4 + $0x58] sm:$0xff]
        %v3153 = vld [vmem:[#allocation4 + $0x60] sm:$0xff]
        %v3154 = vld [vmem:[#allocation4 + $0x68] sm:$0xff]
        %v3155 = vld [vmem:[#allocation4 + $0x70] sm:$0xff]
        %v3156 = vld [vmem:[#allocation4 + $0x78] sm:$0xff]
        %v3157 = vld [vmem:[#allocation4 + $0xc0] sm:$0xff]
        %v3158 = vld [vmem:[#allocation4 + $0xc8] sm:$0xff]
        %v3159 = vld [vmem:[#allocation4 + $0xd0] sm:$0xff]
        %v3160 = vld [vmem:[#allocation4 + $0xd8] sm:$0xff]
        %v3161 = vld [vmem:[#allocation4 + $0xe0] sm:$0xff]
        %v3162 = vld [vmem:[#allocation4 + $0xe8] sm:$0xff]
        %v3163 = vld [vmem:[#allocation4 + $0xf0] sm:$0xff]
        %v3164 = vld [vmem:[#allocation4 + $0xf8] sm:$0xff]
        %v3165 = vld [vmem:[#allocation4 + $0x100] sm:$0xff]
        %v3166 = vld [vmem:[#allocation4 + $0x108] sm:$0xff]
        %v3167 = vld [vmem:[#allocation4 + $0x110] sm:$0xff]
        %v3168 = vld [vmem:[#allocation4 + $0x118] sm:$0xff]
        %v3169 = vld [vmem:[#allocation4 + $0x120] sm:$0xff]
        %v3170 = vld [vmem:[#allocation4 + $0x128] sm:$0xff]
        %v3171 = vld [vmem:[#allocation4 + $0x130] sm:$0xff]
        %v3172 = vld [vmem:[#allocation4 + $0x138] sm:$0xff]
        %s3173 = scalar_lea.vmem [#allocation10], 8
        %v3174 = vld [vmem:[%s3173] sm:$0xff]
        %v3175 = vld [vmem:[#allocation4 + $0x80] sm:$0xff]
        %v3176 = vld [vmem:[#allocation4 + $0x88] sm:$0xff]
        %v3177 = vld [vmem:[#allocation4 + $0x90] sm:$0xff]
        %v3178 = vld [vmem:[#allocation4 + $0x98] sm:$0xff]
        %v3179 = vld [vmem:[#allocation4 + $0x140] sm:$0xff]
        %v3180 = vld [vmem:[#allocation4 + $0x148] sm:$0xff]
        %v3181 = vld [vmem:[#allocation4 + $0x150] sm:$0xff]
        %v3182 = vld [vmem:[#allocation4 + $0x158] sm:$0xff]
        %v3184 = vsel %vm753, %v3174, 0
        %3186 = vmatprep.subr.mxu0 0.0
        %3187 = vmatpush1.msra.mxu0 0.0
        %3188 = vmatprep.subr.mxu0 0.0
        %3189 = vmatpush1.msra.mxu0 0.0
        %3190 = vmatprep.subr.mxu0 0.0
        %3191 = vmatpush1.msra.mxu0 0.0
        %3192 = vmatprep.subr.mxu0 0.0
        %3193 = vmatpush1.msra.mxu0 0.0
        %3194 = vmatprep.subr.mxu0 0.0
        %3195 = vmatpush1.msra.mxu0 0.0
        %3196 = vmatprep.subr.mxu0 0.0
        %3197 = vmatpush1.msra.mxu0 0.0
        %3198 = vmatprep.subr.mxu0 0.0
        %3199 = vmatpush1.msra.mxu0 0.0
        %3200 = vmatprep.subr.mxu0 0.0
        %3201 = vmatpush1.msra.mxu0 0.0
        %3202 = vmatprep.subr.mxu0 0.0
        %3203 = vmatpush1.msra.mxu0 0.0
        %3204 = vmatprep.subr.mxu0 0.0
        %3205 = vmatpush1.msra.mxu0 0.0
        %3206 = vmatprep.subr.mxu0 0.0
        %3207 = vmatpush1.msra.mxu0 0.0
        %3208 = vmatprep.subr.mxu0 0.0
        %3209 = vmatpush1.msra.mxu0 0.0
        %3210 = vmatprep.subr.mxu0 0.0
        %3211 = vmatpush1.msra.mxu0 0.0
        %3212 = vmatprep.subr.mxu0 0.0
        %3213 = vmatpush1.msra.mxu0 0.0
        %3214 = vmatprep.subr.mxu0 %v3162
        %3215 = vmatpush1.msra.mxu0 %v3161
        %3216 = vmatprep.subr.mxu0 %v3146
        %3217 = vmatpush1.msra.mxu0 %v3145
        %3218 = vmatprep.subr.mxu0 0.0
        %3219 = vmatpush2.msra.mxu0 0.0
        %3220 = vmatprep.subr.mxu0 0.0
        %3221 = vmatpush2.msra.mxu0 0.0
        %3222 = vmatprep.subr.mxu0 0.0
        %3223 = vmatpush2.msra.mxu0 0.0
        %3224 = vmatprep.subr.mxu0 0.0
        %3225 = vmatpush2.msra.mxu0 0.0
        %3226 = vmatprep.subr.mxu0 0.0
        %3227 = vmatpush2.msra.mxu0 0.0
        %3228 = vmatprep.subr.mxu0 0.0
        %3229 = vmatpush2.msra.mxu0 0.0
        %3230 = vmatprep.subr.mxu0 0.0
        %3231 = vmatpush2.msra.mxu0 0.0
        %3232 = vmatprep.subr.mxu0 0.0
        %3233 = vmatpush2.msra.mxu0 0.0
        %3234 = vmatprep.subr.mxu0 0.0
        %3235 = vmatpush2.msra.mxu0 0.0
        %3236 = vmatprep.subr.mxu0 0.0
        %3237 = vmatpush2.msra.mxu0 0.0
        %3238 = vmatprep.subr.mxu0 0.0
        %3239 = vmatpush2.msra.mxu0 0.0
        %3240 = vmatprep.subr.mxu0 0.0
        %3241 = vmatpush2.msra.mxu0 0.0
        %3242 = vmatprep.subr.mxu0 0.0
        %3243 = vmatpush2.msra.mxu0 0.0
        %3244 = vmatprep.subr.mxu0 0.0
        %3245 = vmatpush2.msra.mxu0 0.0
        %3246 = vmatprep.subr.mxu0 0.0
        %3247 = vmatpush2.msra.mxu0 0.0
        %3248 = vmatprep.subr.mxu0 0.0
        %3249 = vmatpush2.msra.mxu0 0.0
        %3250 = vmatprep.mubr.f32.mxu0 0.0
        %3251 = vmatmul.mubr.f32.gmra.mxu0 %v3184
        %v3252 = vpop.f32.mrf.mxu0
        %v3253 = vadd.f32 0.0, %v3252
        %v3254 = vpop.f32.mrf.mxu0
        %v3255 = vadd.f32 0.0, %v3254
        %3256 = vdwg.mxu0
        %3257 = vmatprep.subr.mxu0 0.0
        %3258 = vmatpush1.msra.mxu0 0.0
        %3259 = vmatprep.subr.mxu0 0.0
        %3260 = vmatpush1.msra.mxu0 0.0
        %3261 = vmatprep.subr.mxu0 0.0
        %3262 = vmatpush1.msra.mxu0 0.0
        %3263 = vmatprep.subr.mxu0 0.0
        %3264 = vmatpush1.msra.mxu0 0.0
        %3265 = vmatprep.subr.mxu0 0.0
        %3266 = vmatpush1.msra.mxu0 0.0
        %3267 = vmatprep.subr.mxu0 0.0
        %3268 = vmatpush1.msra.mxu0 0.0
        %3269 = vmatprep.subr.mxu0 0.0
        %3270 = vmatpush1.msra.mxu0 0.0
        %3271 = vmatprep.subr.mxu0 0.0
        %3272 = vmatpush1.msra.mxu0 0.0
        %3273 = vmatprep.subr.mxu0 0.0
        %3274 = vmatpush1.msra.mxu0 0.0
        %3275 = vmatprep.subr.mxu0 0.0
        %3276 = vmatpush1.msra.mxu0 0.0
        %3277 = vmatprep.subr.mxu0 0.0
        %3278 = vmatpush1.msra.mxu0 0.0
        %3279 = vmatprep.subr.mxu0 0.0
        %3280 = vmatpush1.msra.mxu0 0.0
        %3281 = vmatprep.subr.mxu0 0.0
        %3282 = vmatpush1.msra.mxu0 0.0
        %3283 = vmatprep.subr.mxu0 0.0
        %3284 = vmatpush1.msra.mxu0 0.0
        %3285 = vmatprep.subr.mxu0 %v3164
        %3286 = vmatpush1.msra.mxu0 %v3163
        %3287 = vmatprep.subr.mxu0 %v3148
        %3288 = vmatpush1.msra.mxu0 %v3147
        %3289 = vmatprep.subr.mxu0 0.0
        %3290 = vmatpush2.msra.mxu0 0.0
        %3291 = vmatprep.subr.mxu0 0.0
        %3292 = vmatpush2.msra.mxu0 0.0
        %3293 = vmatprep.subr.mxu0 0.0
        %3294 = vmatpush2.msra.mxu0 0.0
        %3295 = vmatprep.subr.mxu0 0.0
        %3296 = vmatpush2.msra.mxu0 0.0
        %3297 = vmatprep.subr.mxu0 0.0
        %3298 = vmatpush2.msra.mxu0 0.0
        %3299 = vmatprep.subr.mxu0 0.0
        %3300 = vmatpush2.msra.mxu0 0.0
        %3301 = vmatprep.subr.mxu0 0.0
        %3302 = vmatpush2.msra.mxu0 0.0
        %3303 = vmatprep.subr.mxu0 0.0
        %3304 = vmatpush2.msra.mxu0 0.0
        %3305 = vmatprep.subr.mxu0 0.0
        %3306 = vmatpush2.msra.mxu0 0.0
        %3307 = vmatprep.subr.mxu0 0.0
        %3308 = vmatpush2.msra.mxu0 0.0
        %3309 = vmatprep.subr.mxu0 0.0
        %3310 = vmatpush2.msra.mxu0 0.0
        %3311 = vmatprep.subr.mxu0 0.0
        %3312 = vmatpush2.msra.mxu0 0.0
        %3313 = vmatprep.subr.mxu0 0.0
        %3314 = vmatpush2.msra.mxu0 0.0
        %3315 = vmatprep.subr.mxu0 0.0
        %3316 = vmatpush2.msra.mxu0 0.0
        %3317 = vmatprep.subr.mxu0 0.0
        %3318 = vmatpush2.msra.mxu0 0.0
        %3319 = vmatprep.subr.mxu0 0.0
        %3320 = vmatpush2.msra.mxu0 0.0
        %3321 = vmatprep.mubr.f32.mxu0 0.0
        %3322 = vmatmul.mubr.f32.gmra.mxu0 %v3184
        %v3323 = vpop.f32.mrf.mxu0
        %v3324 = vadd.f32 0.0, %v3323
        %v3325 = vpop.f32.mrf.mxu0
        %v3326 = vadd.f32 0.0, %v3325
        %3327 = vdwg.mxu0
        %3328 = vmatprep.subr.mxu0 0.0
        %3329 = vmatpush1.msra.mxu0 0.0
        %3330 = vmatprep.subr.mxu0 0.0
        %3331 = vmatpush1.msra.mxu0 0.0
        %3332 = vmatprep.subr.mxu0 0.0
        %3333 = vmatpush1.msra.mxu0 0.0
        %3334 = vmatprep.subr.mxu0 0.0
        %3335 = vmatpush1.msra.mxu0 0.0
        %3336 = vmatprep.subr.mxu0 0.0
        %3337 = vmatpush1.msra.mxu0 0.0
        %3338 = vmatprep.subr.mxu0 0.0
        %3339 = vmatpush1.msra.mxu0 0.0
        %3340 = vmatprep.subr.mxu0 0.0
        %3341 = vmatpush1.msra.mxu0 0.0
        %3342 = vmatprep.subr.mxu0 0.0
        %3343 = vmatpush1.msra.mxu0 0.0
        %3344 = vmatprep.subr.mxu0 0.0
        %3345 = vmatpush1.msra.mxu0 0.0
        %3346 = vmatprep.subr.mxu0 0.0
        %3347 = vmatpush1.msra.mxu0 0.0
        %3348 = vmatprep.subr.mxu0 0.0
        %3349 = vmatpush1.msra.mxu0 0.0
        %3350 = vmatprep.subr.mxu0 0.0
        %3351 = vmatpush1.msra.mxu0 0.0
        %3352 = vmatprep.subr.mxu0 0.0
        %3353 = vmatpush1.msra.mxu0 0.0
        %3354 = vmatprep.subr.mxu0 0.0
        %3355 = vmatpush1.msra.mxu0 0.0
        %3356 = vmatprep.subr.mxu0 %v3166
        %3357 = vmatpush1.msra.mxu0 %v3165
        %3358 = vmatprep.subr.mxu0 %v3150
        %3359 = vmatpush1.msra.mxu0 %v3149
        %3360 = vmatprep.subr.mxu0 0.0
        %3361 = vmatpush2.msra.mxu0 0.0
        %3362 = vmatprep.subr.mxu0 0.0
        %3363 = vmatpush2.msra.mxu0 0.0
        %3364 = vmatprep.subr.mxu0 0.0
        %3365 = vmatpush2.msra.mxu0 0.0
        %3366 = vmatprep.subr.mxu0 0.0
        %3367 = vmatpush2.msra.mxu0 0.0
        %3368 = vmatprep.subr.mxu0 0.0
        %3369 = vmatpush2.msra.mxu0 0.0
        %3370 = vmatprep.subr.mxu0 0.0
        %3371 = vmatpush2.msra.mxu0 0.0
        %3372 = vmatprep.subr.mxu0 0.0
        %3373 = vmatpush2.msra.mxu0 0.0
        %3374 = vmatprep.subr.mxu0 0.0
        %3375 = vmatpush2.msra.mxu0 0.0
        %3376 = vmatprep.subr.mxu0 0.0
        %3377 = vmatpush2.msra.mxu0 0.0
        %3378 = vmatprep.subr.mxu0 0.0
        %3379 = vmatpush2.msra.mxu0 0.0
        %3380 = vmatprep.subr.mxu0 0.0
        %3381 = vmatpush2.msra.mxu0 0.0
        %3382 = vmatprep.subr.mxu0 0.0
        %3383 = vmatpush2.msra.mxu0 0.0
        %3384 = vmatprep.subr.mxu0 0.0
        %3385 = vmatpush2.msra.mxu0 0.0
        %3386 = vmatprep.subr.mxu0 0.0
        %3387 = vmatpush2.msra.mxu0 0.0
        %3388 = vmatprep.subr.mxu0 0.0
        %3389 = vmatpush2.msra.mxu0 0.0
        %3390 = vmatprep.subr.mxu0 0.0
        %3391 = vmatpush2.msra.mxu0 0.0
        %3392 = vmatprep.mubr.f32.mxu0 0.0
        %3393 = vmatmul.mubr.f32.gmra.mxu0 %v3184
        %v3394 = vpop.f32.mrf.mxu0
        %v3395 = vadd.f32 0.0, %v3394
        %v3396 = vpop.f32.mrf.mxu0
        %v3397 = vadd.f32 0.0, %v3396
        %3398 = vdwg.mxu0
        %3399 = vmatprep.subr.mxu0 0.0
        %3400 = vmatpush1.msra.mxu0 0.0
        %3401 = vmatprep.subr.mxu0 0.0
        %3402 = vmatpush1.msra.mxu0 0.0
        %3403 = vmatprep.subr.mxu0 0.0
        %3404 = vmatpush1.msra.mxu0 0.0
        %3405 = vmatprep.subr.mxu0 0.0
        %3406 = vmatpush1.msra.mxu0 0.0
        %3407 = vmatprep.subr.mxu0 0.0
        %3408 = vmatpush1.msra.mxu0 0.0
        %3409 = vmatprep.subr.mxu0 0.0
        %3410 = vmatpush1.msra.mxu0 0.0
        %3411 = vmatprep.subr.mxu0 0.0
        %3412 = vmatpush1.msra.mxu0 0.0
        %3413 = vmatprep.subr.mxu0 0.0
        %3414 = vmatpush1.msra.mxu0 0.0
        %3415 = vmatprep.subr.mxu0 0.0
        %3416 = vmatpush1.msra.mxu0 0.0
        %3417 = vmatprep.subr.mxu0 0.0
        %3418 = vmatpush1.msra.mxu0 0.0
        %3419 = vmatprep.subr.mxu0 0.0
        %3420 = vmatpush1.msra.mxu0 0.0
        %3421 = vmatprep.subr.mxu0 0.0
        %3422 = vmatpush1.msra.mxu0 0.0
        %3423 = vmatprep.subr.mxu0 0.0
        %3424 = vmatpush1.msra.mxu0 0.0
        %3425 = vmatprep.subr.mxu0 0.0
        %3426 = vmatpush1.msra.mxu0 0.0
        %3427 = vmatprep.subr.mxu0 %v3168
        %3428 = vmatpush1.msra.mxu0 %v3167
        %3429 = vmatprep.subr.mxu0 %v3152
        %3430 = vmatpush1.msra.mxu0 %v3151
        %3431 = vmatprep.subr.mxu0 0.0
        %3432 = vmatpush2.msra.mxu0 0.0
        %3433 = vmatprep.subr.mxu0 0.0
        %3434 = vmatpush2.msra.mxu0 0.0
        %3435 = vmatprep.subr.mxu0 0.0
        %3436 = vmatpush2.msra.mxu0 0.0
        %3437 = vmatprep.subr.mxu0 0.0
        %3438 = vmatpush2.msra.mxu0 0.0
        %3439 = vmatprep.subr.mxu0 0.0
        %3440 = vmatpush2.msra.mxu0 0.0
        %3441 = vmatprep.subr.mxu0 0.0
        %3442 = vmatpush2.msra.mxu0 0.0
        %3443 = vmatprep.subr.mxu0 0.0
        %3444 = vmatpush2.msra.mxu0 0.0
        %3445 = vmatprep.subr.mxu0 0.0
        %3446 = vmatpush2.msra.mxu0 0.0
        %3447 = vmatprep.subr.mxu0 0.0
        %3448 = vmatpush2.msra.mxu0 0.0
        %3449 = vmatprep.subr.mxu0 0.0
        %3450 = vmatpush2.msra.mxu0 0.0
        %3451 = vmatprep.subr.mxu0 0.0
        %3452 = vmatpush2.msra.mxu0 0.0
        %3453 = vmatprep.subr.mxu0 0.0
        %3454 = vmatpush2.msra.mxu0 0.0
        %3455 = vmatprep.subr.mxu0 0.0
        %3456 = vmatpush2.msra.mxu0 0.0
        %3457 = vmatprep.subr.mxu0 0.0
        %3458 = vmatpush2.msra.mxu0 0.0
        %3459 = vmatprep.subr.mxu0 0.0
        %3460 = vmatpush2.msra.mxu0 0.0
        %3461 = vmatprep.subr.mxu0 0.0
        %3462 = vmatpush2.msra.mxu0 0.0
        %3463 = vmatprep.mubr.f32.mxu0 0.0
        %3464 = vmatmul.mubr.f32.gmra.mxu0 %v3184
        %v3465 = vpop.f32.mrf.mxu0
        %v3466 = vadd.f32 0.0, %v3465
        %v3467 = vpop.f32.mrf.mxu0
        %v3468 = vadd.f32 0.0, %v3467
        %3469 = vdwg.mxu0
        %3470 = vmatprep.subr.mxu0 0.0
        %3471 = vmatpush1.msra.mxu0 0.0
        %3472 = vmatprep.subr.mxu0 0.0
        %3473 = vmatpush1.msra.mxu0 0.0
        %3474 = vmatprep.subr.mxu0 0.0
        %3475 = vmatpush1.msra.mxu0 0.0
        %3476 = vmatprep.subr.mxu0 0.0
        %3477 = vmatpush1.msra.mxu0 0.0
        %3478 = vmatprep.subr.mxu0 0.0
        %3479 = vmatpush1.msra.mxu0 0.0
        %3480 = vmatprep.subr.mxu0 0.0
        %3481 = vmatpush1.msra.mxu0 0.0
        %3482 = vmatprep.subr.mxu0 0.0
        %3483 = vmatpush1.msra.mxu0 0.0
        %3484 = vmatprep.subr.mxu0 0.0
        %3485 = vmatpush1.msra.mxu0 0.0
        %3486 = vmatprep.subr.mxu0 0.0
        %3487 = vmatpush1.msra.mxu0 0.0
        %3488 = vmatprep.subr.mxu0 0.0
        %3489 = vmatpush1.msra.mxu0 0.0
        %3490 = vmatprep.subr.mxu0 0.0
        %3491 = vmatpush1.msra.mxu0 0.0
        %3492 = vmatprep.subr.mxu0 0.0
        %3493 = vmatpush1.msra.mxu0 0.0
        %3494 = vmatprep.subr.mxu0 0.0
        %3495 = vmatpush1.msra.mxu0 0.0
        %3496 = vmatprep.subr.mxu0 0.0
        %3497 = vmatpush1.msra.mxu0 0.0
        %3498 = vmatprep.subr.mxu0 %v3170
        %3499 = vmatpush1.msra.mxu0 %v3169
        %3500 = vmatprep.subr.mxu0 %v3154
        %3501 = vmatpush1.msra.mxu0 %v3153
        %3502 = vmatprep.subr.mxu0 0.0
        %3503 = vmatpush2.msra.mxu0 0.0
        %3504 = vmatprep.subr.mxu0 0.0
        %3505 = vmatpush2.msra.mxu0 0.0
        %3506 = vmatprep.subr.mxu0 0.0
        %3507 = vmatpush2.msra.mxu0 0.0
        %3508 = vmatprep.subr.mxu0 0.0
        %3509 = vmatpush2.msra.mxu0 0.0
        %3510 = vmatprep.subr.mxu0 0.0
        %3511 = vmatpush2.msra.mxu0 0.0
        %3512 = vmatprep.subr.mxu0 0.0
        %3513 = vmatpush2.msra.mxu0 0.0
        %3514 = vmatprep.subr.mxu0 0.0
        %3515 = vmatpush2.msra.mxu0 0.0
        %3516 = vmatprep.subr.mxu0 0.0
        %3517 = vmatpush2.msra.mxu0 0.0
        %3518 = vmatprep.subr.mxu0 0.0
        %3519 = vmatpush2.msra.mxu0 0.0
        %3520 = vmatprep.subr.mxu0 0.0
        %3521 = vmatpush2.msra.mxu0 0.0
        %3522 = vmatprep.subr.mxu0 0.0
        %3523 = vmatpush2.msra.mxu0 0.0
        %3524 = vmatprep.subr.mxu0 0.0
        %3525 = vmatpush2.msra.mxu0 0.0
        %3526 = vmatprep.subr.mxu0 0.0
        %3527 = vmatpush2.msra.mxu0 0.0
        %3528 = vmatprep.subr.mxu0 0.0
        %3529 = vmatpush2.msra.mxu0 0.0
        %3530 = vmatprep.subr.mxu0 0.0
        %3531 = vmatpush2.msra.mxu0 0.0
        %3532 = vmatprep.subr.mxu0 0.0
        %3533 = vmatpush2.msra.mxu0 0.0
        %3534 = vmatprep.mubr.f32.mxu0 0.0
        %3535 = vmatmul.mubr.f32.gmra.mxu0 %v3184
        %v3536 = vpop.f32.mrf.mxu0
        %v3537 = vadd.f32 0.0, %v3536
        %v3538 = vpop.f32.mrf.mxu0
        %v3539 = vadd.f32 0.0, %v3538
        %3540 = vdwg.mxu0
        %3541 = vmatprep.subr.mxu0 0.0
        %3542 = vmatpush1.msra.mxu0 0.0
        %3543 = vmatprep.subr.mxu0 0.0
        %3544 = vmatpush1.msra.mxu0 0.0
        %3545 = vmatprep.subr.mxu0 0.0
        %3546 = vmatpush1.msra.mxu0 0.0
        %3547 = vmatprep.subr.mxu0 0.0
        %3548 = vmatpush1.msra.mxu0 0.0
        %3549 = vmatprep.subr.mxu0 0.0
        %3550 = vmatpush1.msra.mxu0 0.0
        %3551 = vmatprep.subr.mxu0 0.0
        %3552 = vmatpush1.msra.mxu0 0.0
        %3553 = vmatprep.subr.mxu0 0.0
        %3554 = vmatpush1.msra.mxu0 0.0
        %3555 = vmatprep.subr.mxu0 0.0
        %3556 = vmatpush1.msra.mxu0 0.0
        %3557 = vmatprep.subr.mxu0 0.0
        %3558 = vmatpush1.msra.mxu0 0.0
        %3559 = vmatprep.subr.mxu0 0.0
        %3560 = vmatpush1.msra.mxu0 0.0
        %3561 = vmatprep.subr.mxu0 0.0
        %3562 = vmatpush1.msra.mxu0 0.0
        %3563 = vmatprep.subr.mxu0 0.0
        %3564 = vmatpush1.msra.mxu0 0.0
        %3565 = vmatprep.subr.mxu0 0.0
        %3566 = vmatpush1.msra.mxu0 0.0
        %3567 = vmatprep.subr.mxu0 0.0
        %3568 = vmatpush1.msra.mxu0 0.0
        %3569 = vmatprep.subr.mxu0 %v3172
        %3570 = vmatpush1.msra.mxu0 %v3171
        %3571 = vmatprep.subr.mxu0 %v3156
        %3572 = vmatpush1.msra.mxu0 %v3155
        %3573 = vmatprep.subr.mxu0 0.0
        %3574 = vmatpush2.msra.mxu0 0.0
        %3575 = vmatprep.subr.mxu0 0.0
        %3576 = vmatpush2.msra.mxu0 0.0
        %3577 = vmatprep.subr.mxu0 0.0
        %3578 = vmatpush2.msra.mxu0 0.0
        %3579 = vmatprep.subr.mxu0 0.0
        %3580 = vmatpush2.msra.mxu0 0.0
        %3581 = vmatprep.subr.mxu0 0.0
        %3582 = vmatpush2.msra.mxu0 0.0
        %3583 = vmatprep.subr.mxu0 0.0
        %3584 = vmatpush2.msra.mxu0 0.0
        %3585 = vmatprep.subr.mxu0 0.0
        %3586 = vmatpush2.msra.mxu0 0.0
        %3587 = vmatprep.subr.mxu0 0.0
        %3588 = vmatpush2.msra.mxu0 0.0
        %3589 = vmatprep.subr.mxu0 0.0
        %3590 = vmatpush2.msra.mxu0 0.0
        %3591 = vmatprep.subr.mxu0 0.0
        %3592 = vmatpush2.msra.mxu0 0.0
        %3593 = vmatprep.subr.mxu0 0.0
        %3594 = vmatpush2.msra.mxu0 0.0
        %3595 = vmatprep.subr.mxu0 0.0
        %3596 = vmatpush2.msra.mxu0 0.0
        %3597 = vmatprep.subr.mxu0 0.0
        %3598 = vmatpush2.msra.mxu0 0.0
        %3599 = vmatprep.subr.mxu0 0.0
        %3600 = vmatpush2.msra.mxu0 0.0
        %3601 = vmatprep.subr.mxu0 0.0
        %3602 = vmatpush2.msra.mxu0 0.0
        %3603 = vmatprep.subr.mxu0 0.0
        %3604 = vmatpush2.msra.mxu0 0.0
        %3605 = vmatprep.mubr.f32.mxu0 0.0
        %3606 = vmatmul.mubr.f32.gmra.mxu0 %v3184
        %v3607 = vpop.f32.mrf.mxu0
        %v3608 = vadd.f32 0.0, %v3607
        %v3609 = vpop.f32.mrf.mxu0
        %v3610 = vadd.f32 0.0, %v3609
        %3611 = vdwg.mxu0
        %3612 = vmatprep.subr.mxu0 0.0
        %3613 = vmatpush1.msra.mxu0 0.0
        %3614 = vmatprep.subr.mxu0 0.0
        %3615 = vmatpush1.msra.mxu0 0.0
        %3616 = vmatprep.subr.mxu0 0.0
        %3617 = vmatpush1.msra.mxu0 0.0
        %3618 = vmatprep.subr.mxu0 0.0
        %3619 = vmatpush1.msra.mxu0 0.0
        %3620 = vmatprep.subr.mxu0 0.0
        %3621 = vmatpush1.msra.mxu0 0.0
        %3622 = vmatprep.subr.mxu0 0.0
        %3623 = vmatpush1.msra.mxu0 0.0
        %3624 = vmatprep.subr.mxu0 0.0
        %3625 = vmatpush1.msra.mxu0 0.0
        %3626 = vmatprep.subr.mxu0 0.0
        %3627 = vmatpush1.msra.mxu0 0.0
        %3628 = vmatprep.subr.mxu0 0.0
        %3629 = vmatpush1.msra.mxu0 0.0
        %3630 = vmatprep.subr.mxu0 0.0
        %3631 = vmatpush1.msra.mxu0 0.0
        %3632 = vmatprep.subr.mxu0 0.0
        %3633 = vmatpush1.msra.mxu0 0.0
        %3634 = vmatprep.subr.mxu0 0.0
        %3635 = vmatpush1.msra.mxu0 0.0
        %3636 = vmatprep.subr.mxu0 0.0
        %3637 = vmatpush1.msra.mxu0 0.0
        %3638 = vmatprep.subr.mxu0 0.0
        %3639 = vmatpush1.msra.mxu0 0.0
        %3640 = vmatprep.subr.mxu0 %v3180
        %3641 = vmatpush1.msra.mxu0 %v3179
        %3642 = vmatprep.subr.mxu0 %v3176
        %3643 = vmatpush1.msra.mxu0 %v3175
        %3644 = vmatprep.subr.mxu0 0.0
        %3645 = vmatpush2.msra.mxu0 0.0
        %3646 = vmatprep.subr.mxu0 0.0
        %3647 = vmatpush2.msra.mxu0 0.0
        %3648 = vmatprep.subr.mxu0 0.0
        %3649 = vmatpush2.msra.mxu0 0.0
        %3650 = vmatprep.subr.mxu0 0.0
        %3651 = vmatpush2.msra.mxu0 0.0
        %3652 = vmatprep.subr.mxu0 0.0
        %3653 = vmatpush2.msra.mxu0 0.0
        %3654 = vmatprep.subr.mxu0 0.0
        %3655 = vmatpush2.msra.mxu0 0.0
        %3656 = vmatprep.subr.mxu0 0.0
        %3657 = vmatpush2.msra.mxu0 0.0
        %3658 = vmatprep.subr.mxu0 0.0
        %3659 = vmatpush2.msra.mxu0 0.0
        %3660 = vmatprep.subr.mxu0 0.0
        %3661 = vmatpush2.msra.mxu0 0.0
        %3662 = vmatprep.subr.mxu0 0.0
        %3663 = vmatpush2.msra.mxu0 0.0
        %3664 = vmatprep.subr.mxu0 0.0
        %3665 = vmatpush2.msra.mxu0 0.0
        %3666 = vmatprep.subr.mxu0 0.0
        %3667 = vmatpush2.msra.mxu0 0.0
        %3668 = vmatprep.subr.mxu0 0.0
        %3669 = vmatpush2.msra.mxu0 0.0
        %3670 = vmatprep.subr.mxu0 0.0
        %3671 = vmatpush2.msra.mxu0 0.0
        %3672 = vmatprep.subr.mxu0 0.0
        %3673 = vmatpush2.msra.mxu0 0.0
        %3674 = vmatprep.subr.mxu0 0.0
        %3675 = vmatpush2.msra.mxu0 0.0
        %3676 = vmatprep.mubr.f32.mxu0 0.0
        %3677 = vmatmul.mubr.f32.gmra.mxu0 %v3184
        %v3678 = vpop.f32.mrf.mxu0
        %v3679 = vadd.f32 0.0, %v3678
        %v3680 = vpop.f32.mrf.mxu0
        %v3681 = vadd.f32 0.0, %v3680
        %3682 = vdwg.mxu0
        %3683 = vmatprep.subr.mxu0 0.0
        %3684 = vmatpush1.msra.mxu0 0.0
        %3685 = vmatprep.subr.mxu0 0.0
        %3686 = vmatpush1.msra.mxu0 0.0
        %3687 = vmatprep.subr.mxu0 0.0
        %3688 = vmatpush1.msra.mxu0 0.0
        %3689 = vmatprep.subr.mxu0 0.0
        %3690 = vmatpush1.msra.mxu0 0.0
        %3691 = vmatprep.subr.mxu0 0.0
        %3692 = vmatpush1.msra.mxu0 0.0
        %3693 = vmatprep.subr.mxu0 0.0
        %3694 = vmatpush1.msra.mxu0 0.0
        %3695 = vmatprep.subr.mxu0 0.0
        %3696 = vmatpush1.msra.mxu0 0.0
        %3697 = vmatprep.subr.mxu0 0.0
        %3698 = vmatpush1.msra.mxu0 0.0
        %3699 = vmatprep.subr.mxu0 0.0
        %3700 = vmatpush1.msra.mxu0 0.0
        %3701 = vmatprep.subr.mxu0 0.0
        %3702 = vmatpush1.msra.mxu0 0.0
        %3703 = vmatprep.subr.mxu0 0.0
        %3704 = vmatpush1.msra.mxu0 0.0
        %3705 = vmatprep.subr.mxu0 0.0
        %3706 = vmatpush1.msra.mxu0 0.0
        %3707 = vmatprep.subr.mxu0 0.0
        %3708 = vmatpush1.msra.mxu0 0.0
        %3709 = vmatprep.subr.mxu0 0.0
        %3710 = vmatpush1.msra.mxu0 0.0
        %3711 = vmatprep.subr.mxu0 %v3182
        %3712 = vmatpush1.msra.mxu0 %v3181
        %3713 = vmatprep.subr.mxu0 %v3178
        %3714 = vmatpush1.msra.mxu0 %v3177
        %3715 = vmatprep.subr.mxu0 0.0
        %3716 = vmatpush2.msra.mxu0 0.0
        %3717 = vmatprep.subr.mxu0 0.0
        %3718 = vmatpush2.msra.mxu0 0.0
        %3719 = vmatprep.subr.mxu0 0.0
        %3720 = vmatpush2.msra.mxu0 0.0
        %3721 = vmatprep.subr.mxu0 0.0
        %3722 = vmatpush2.msra.mxu0 0.0
        %3723 = vmatprep.subr.mxu0 0.0
        %3724 = vmatpush2.msra.mxu0 0.0
        %3725 = vmatprep.subr.mxu0 0.0
        %3726 = vmatpush2.msra.mxu0 0.0
        %3727 = vmatprep.subr.mxu0 0.0
        %3728 = vmatpush2.msra.mxu0 0.0
        %3729 = vmatprep.subr.mxu0 0.0
        %3730 = vmatpush2.msra.mxu0 0.0
        %3731 = vmatprep.subr.mxu0 0.0
        %3732 = vmatpush2.msra.mxu0 0.0
        %3733 = vmatprep.subr.mxu0 0.0
        %3734 = vmatpush2.msra.mxu0 0.0
        %3735 = vmatprep.subr.mxu0 0.0
        %3736 = vmatpush2.msra.mxu0 0.0
        %3737 = vmatprep.subr.mxu0 0.0
        %3738 = vmatpush2.msra.mxu0 0.0
        %3739 = vmatprep.subr.mxu0 0.0
        %3740 = vmatpush2.msra.mxu0 0.0
        %3741 = vmatprep.subr.mxu0 0.0
        %3742 = vmatpush2.msra.mxu0 0.0
        %3743 = vmatprep.subr.mxu0 0.0
        %3744 = vmatpush2.msra.mxu0 0.0
        %3745 = vmatprep.subr.mxu0 0.0
        %3746 = vmatpush2.msra.mxu0 0.0
        %3747 = vmatprep.mubr.f32.mxu0 0.0
        %3748 = vmatmul.mubr.f32.gmra.mxu0 %v3184
        %v3749 = vpop.f32.mrf.mxu0
        %v3750 = vadd.f32 0.0, %v3749
        %v3751 = vpop.f32.mrf.mxu0
        %v3752 = vadd.f32 0.0, %v3751
        %3753 = vdwg.mxu0
        %v3755 = vsel %vm753, %v3140, 0
        %3757 = vmatprep.subr.mxu0 0.0
        %3758 = vmatpush1.msra.mxu0 0.0
        %3759 = vmatprep.subr.mxu0 0.0
        %3760 = vmatpush1.msra.mxu0 0.0
        %3761 = vmatprep.subr.mxu0 0.0
        %3762 = vmatpush1.msra.mxu0 0.0
        %3763 = vmatprep.subr.mxu0 0.0
        %3764 = vmatpush1.msra.mxu0 0.0
        %3765 = vmatprep.subr.mxu0 0.0
        %3766 = vmatpush1.msra.mxu0 0.0
        %3767 = vmatprep.subr.mxu0 0.0
        %3768 = vmatpush1.msra.mxu0 0.0
        %3769 = vmatprep.subr.mxu0 0.0
        %3770 = vmatpush1.msra.mxu0 0.0
        %3771 = vmatprep.subr.mxu0 0.0
        %3772 = vmatpush1.msra.mxu0 0.0
        %3773 = vmatprep.subr.mxu0 0.0
        %3774 = vmatpush1.msra.mxu0 0.0
        %3775 = vmatprep.subr.mxu0 0.0
        %3776 = vmatpush1.msra.mxu0 0.0
        %3777 = vmatprep.subr.mxu0 0.0
        %3778 = vmatpush1.msra.mxu0 0.0
        %3779 = vmatprep.subr.mxu0 0.0
        %3780 = vmatpush1.msra.mxu0 0.0
        %3781 = vmatprep.subr.mxu0 0.0
        %3782 = vmatpush1.msra.mxu0 0.0
        %3783 = vmatprep.subr.mxu0 0.0
        %3784 = vmatpush1.msra.mxu0 0.0
        %3785 = vmatprep.subr.mxu0 %v3158
        %3786 = vmatpush1.msra.mxu0 %v3157
        %3787 = vmatprep.subr.mxu0 %v3142
        %3788 = vmatpush1.msra.mxu0 %v3141
        %3789 = vmatprep.subr.mxu0 0.0
        %3790 = vmatpush2.msra.mxu0 0.0
        %3791 = vmatprep.subr.mxu0 0.0
        %3792 = vmatpush2.msra.mxu0 0.0
        %3793 = vmatprep.subr.mxu0 0.0
        %3794 = vmatpush2.msra.mxu0 0.0
        %3795 = vmatprep.subr.mxu0 0.0
        %3796 = vmatpush2.msra.mxu0 0.0
        %3797 = vmatprep.subr.mxu0 0.0
        %3798 = vmatpush2.msra.mxu0 0.0
        %3799 = vmatprep.subr.mxu0 0.0
        %3800 = vmatpush2.msra.mxu0 0.0
        %3801 = vmatprep.subr.mxu0 0.0
        %3802 = vmatpush2.msra.mxu0 0.0
        %3803 = vmatprep.subr.mxu0 0.0
        %3804 = vmatpush2.msra.mxu0 0.0
        %3805 = vmatprep.subr.mxu0 0.0
        %3806 = vmatpush2.msra.mxu0 0.0
        %3807 = vmatprep.subr.mxu0 0.0
        %3808 = vmatpush2.msra.mxu0 0.0
        %3809 = vmatprep.subr.mxu0 0.0
        %3810 = vmatpush2.msra.mxu0 0.0
        %3811 = vmatprep.subr.mxu0 0.0
        %3812 = vmatpush2.msra.mxu0 0.0
        %3813 = vmatprep.subr.mxu0 0.0
        %3814 = vmatpush2.msra.mxu0 0.0
        %3815 = vmatprep.subr.mxu0 0.0
        %3816 = vmatpush2.msra.mxu0 0.0
        %3817 = vmatprep.subr.mxu0 0.0
        %3818 = vmatpush2.msra.mxu0 0.0
        %3819 = vmatprep.subr.mxu0 0.0
        %3820 = vmatpush2.msra.mxu0 0.0
        %3821 = vmatprep.mubr.f32.mxu0 0.0
        %3822 = vmatmul.mubr.f32.gmra.mxu0 %v3755
        %v3823 = vpop.f32.mrf.mxu0
        %v3824 = vadd.f32 %v3253, %v3823
        %v3825 = vpop.f32.mrf.mxu0
        %v3826 = vadd.f32 %v3255, %v3825
        %3827 = vdwg.mxu0
        %3828 = vmatprep.subr.mxu0 0.0
        %3829 = vmatpush1.msra.mxu0 0.0
        %3830 = vmatprep.subr.mxu0 0.0
        %3831 = vmatpush1.msra.mxu0 0.0
        %3832 = vmatprep.subr.mxu0 0.0
        %3833 = vmatpush1.msra.mxu0 0.0
        %3834 = vmatprep.subr.mxu0 0.0
        %3835 = vmatpush1.msra.mxu0 0.0
        %3836 = vmatprep.subr.mxu0 0.0
        %3837 = vmatpush1.msra.mxu0 0.0
        %3838 = vmatprep.subr.mxu0 0.0
        %3839 = vmatpush1.msra.mxu0 0.0
        %3840 = vmatprep.subr.mxu0 0.0
        %3841 = vmatpush1.msra.mxu0 0.0
        %3842 = vmatprep.subr.mxu0 0.0
        %3843 = vmatpush1.msra.mxu0 0.0
        %3844 = vmatprep.subr.mxu0 0.0
        %3845 = vmatpush1.msra.mxu0 0.0
        %3846 = vmatprep.subr.mxu0 0.0
        %3847 = vmatpush1.msra.mxu0 0.0
        %3848 = vmatprep.subr.mxu0 0.0
        %3849 = vmatpush1.msra.mxu0 0.0
        %3850 = vmatprep.subr.mxu0 0.0
        %3851 = vmatpush1.msra.mxu0 0.0
        %3852 = vmatprep.subr.mxu0 0.0
        %3853 = vmatpush1.msra.mxu0 0.0
        %3854 = vmatprep.subr.mxu0 0.0
        %3855 = vmatpush1.msra.mxu0 0.0
        %3856 = vmatprep.subr.mxu0 %v3160
        %3857 = vmatpush1.msra.mxu0 %v3159
        %3858 = vmatprep.subr.mxu0 %v3144
        %3859 = vmatpush1.msra.mxu0 %v3143
        %3860 = vmatprep.subr.mxu0 0.0
        %3861 = vmatpush2.msra.mxu0 0.0
        %3862 = vmatprep.subr.mxu0 0.0
        %3863 = vmatpush2.msra.mxu0 0.0
        %3864 = vmatprep.subr.mxu0 0.0
        %3865 = vmatpush2.msra.mxu0 0.0
        %3866 = vmatprep.subr.mxu0 0.0
        %3867 = vmatpush2.msra.mxu0 0.0
        %3868 = vmatprep.subr.mxu0 0.0
        %3869 = vmatpush2.msra.mxu0 0.0
        %3870 = vmatprep.subr.mxu0 0.0
        %3871 = vmatpush2.msra.mxu0 0.0
        %3872 = vmatprep.subr.mxu0 0.0
        %3873 = vmatpush2.msra.mxu0 0.0
        %3874 = vmatprep.subr.mxu0 0.0
        %3875 = vmatpush2.msra.mxu0 0.0
        %3876 = vmatprep.subr.mxu0 0.0
        %3877 = vmatpush2.msra.mxu0 0.0
        %3878 = vmatprep.subr.mxu0 0.0
        %3879 = vmatpush2.msra.mxu0 0.0
        %3880 = vmatprep.subr.mxu0 0.0
        %3881 = vmatpush2.msra.mxu0 0.0
        %3882 = vmatprep.subr.mxu0 0.0
        %3883 = vmatpush2.msra.mxu0 0.0
        %3884 = vmatprep.subr.mxu0 0.0
        %3885 = vmatpush2.msra.mxu0 0.0
        %3886 = vmatprep.subr.mxu0 0.0
        %3887 = vmatpush2.msra.mxu0 0.0
        %3888 = vmatprep.subr.mxu0 0.0
        %3889 = vmatpush2.msra.mxu0 0.0
        %3890 = vmatprep.subr.mxu0 0.0
        %3891 = vmatpush2.msra.mxu0 0.0
        %3892 = vmatprep.mubr.f32.mxu0 0.0
        %3893 = vmatmul.mubr.f32.gmra.mxu0 %v3755
        %v3894 = vpop.f32.mrf.mxu0
        %v3895 = vadd.f32 %v3324, %v3894
        %v3896 = vpop.f32.mrf.mxu0
        %v3897 = vadd.f32 %v3326, %v3896
        %3898 = vdwg.mxu0
        %3899 = vmatprep.subr.mxu0 0.0
        %3900 = vmatpush1.msra.mxu0 0.0
        %3901 = vmatprep.subr.mxu0 0.0
        %3902 = vmatpush1.msra.mxu0 0.0
        %3903 = vmatprep.subr.mxu0 0.0
        %3904 = vmatpush1.msra.mxu0 0.0
        %3905 = vmatprep.subr.mxu0 0.0
        %3906 = vmatpush1.msra.mxu0 0.0
        %3907 = vmatprep.subr.mxu0 0.0
        %3908 = vmatpush1.msra.mxu0 0.0
        %3909 = vmatprep.subr.mxu0 0.0
        %3910 = vmatpush1.msra.mxu0 0.0
        %3911 = vmatprep.subr.mxu0 0.0
        %3912 = vmatpush1.msra.mxu0 0.0
        %3913 = vmatprep.subr.mxu0 0.0
        %3914 = vmatpush1.msra.mxu0 0.0
        %3915 = vmatprep.subr.mxu0 0.0
        %3916 = vmatpush1.msra.mxu0 0.0
        %3917 = vmatprep.subr.mxu0 0.0
        %3918 = vmatpush1.msra.mxu0 0.0
        %3919 = vmatprep.subr.mxu0 0.0
        %3920 = vmatpush1.msra.mxu0 0.0
        %3921 = vmatprep.subr.mxu0 0.0
        %3922 = vmatpush1.msra.mxu0 0.0
        %3923 = vmatprep.subr.mxu0 0.0
        %3924 = vmatpush1.msra.mxu0 0.0
        %3925 = vmatprep.subr.mxu0 0.0
        %3926 = vmatpush1.msra.mxu0 0.0
        %3927 = vmatprep.subr.mxu0 %v3162
        %3928 = vmatpush1.msra.mxu0 %v3161
        %3929 = vmatprep.subr.mxu0 %v3146
        %3930 = vmatpush1.msra.mxu0 %v3145
        %3931 = vmatprep.subr.mxu0 0.0
        %3932 = vmatpush2.msra.mxu0 0.0
        %3933 = vmatprep.subr.mxu0 0.0
        %3934 = vmatpush2.msra.mxu0 0.0
        %3935 = vmatprep.subr.mxu0 0.0
        %3936 = vmatpush2.msra.mxu0 0.0
        %3937 = vmatprep.subr.mxu0 0.0
        %3938 = vmatpush2.msra.mxu0 0.0
        %3939 = vmatprep.subr.mxu0 0.0
        %3940 = vmatpush2.msra.mxu0 0.0
        %3941 = vmatprep.subr.mxu0 0.0
        %3942 = vmatpush2.msra.mxu0 0.0
        %3943 = vmatprep.subr.mxu0 0.0
        %3944 = vmatpush2.msra.mxu0 0.0
        %3945 = vmatprep.subr.mxu0 0.0
        %3946 = vmatpush2.msra.mxu0 0.0
        %3947 = vmatprep.subr.mxu0 0.0
        %3948 = vmatpush2.msra.mxu0 0.0
        %3949 = vmatprep.subr.mxu0 0.0
        %3950 = vmatpush2.msra.mxu0 0.0
        %3951 = vmatprep.subr.mxu0 0.0
        %3952 = vmatpush2.msra.mxu0 0.0
        %3953 = vmatprep.subr.mxu0 0.0
        %3954 = vmatpush2.msra.mxu0 0.0
        %3955 = vmatprep.subr.mxu0 0.0
        %3956 = vmatpush2.msra.mxu0 0.0
        %3957 = vmatprep.subr.mxu0 0.0
        %3958 = vmatpush2.msra.mxu0 0.0
        %3959 = vmatprep.subr.mxu0 0.0
        %3960 = vmatpush2.msra.mxu0 0.0
        %3961 = vmatprep.subr.mxu0 0.0
        %3962 = vmatpush2.msra.mxu0 0.0
        %3963 = vmatprep.mubr.f32.mxu0 0.0
        %3964 = vmatmul.mubr.f32.gmra.mxu0 %v3755
        %v3965 = vpop.f32.mrf.mxu0
        %v3966 = vadd.f32 %v3395, %v3965
        %v3967 = vpop.f32.mrf.mxu0
        %v3968 = vadd.f32 %v3397, %v3967
        %3969 = vdwg.mxu0
        %3970 = vmatprep.subr.mxu0 0.0
        %3971 = vmatpush1.msra.mxu0 0.0
        %3972 = vmatprep.subr.mxu0 0.0
        %3973 = vmatpush1.msra.mxu0 0.0
        %3974 = vmatprep.subr.mxu0 0.0
        %3975 = vmatpush1.msra.mxu0 0.0
        %3976 = vmatprep.subr.mxu0 0.0
        %3977 = vmatpush1.msra.mxu0 0.0
        %3978 = vmatprep.subr.mxu0 0.0
        %3979 = vmatpush1.msra.mxu0 0.0
        %3980 = vmatprep.subr.mxu0 0.0
        %3981 = vmatpush1.msra.mxu0 0.0
        %3982 = vmatprep.subr.mxu0 0.0
        %3983 = vmatpush1.msra.mxu0 0.0
        %3984 = vmatprep.subr.mxu0 0.0
        %3985 = vmatpush1.msra.mxu0 0.0
        %3986 = vmatprep.subr.mxu0 0.0
        %3987 = vmatpush1.msra.mxu0 0.0
        %3988 = vmatprep.subr.mxu0 0.0
        %3989 = vmatpush1.msra.mxu0 0.0
        %3990 = vmatprep.subr.mxu0 0.0
        %3991 = vmatpush1.msra.mxu0 0.0
        %3992 = vmatprep.subr.mxu0 0.0
        %3993 = vmatpush1.msra.mxu0 0.0
        %3994 = vmatprep.subr.mxu0 0.0
        %3995 = vmatpush1.msra.mxu0 0.0
        %3996 = vmatprep.subr.mxu0 0.0
        %3997 = vmatpush1.msra.mxu0 0.0
        %3998 = vmatprep.subr.mxu0 %v3164
        %3999 = vmatpush1.msra.mxu0 %v3163
        %4000 = vmatprep.subr.mxu0 %v3148
        %4001 = vmatpush1.msra.mxu0 %v3147
        %4002 = vmatprep.subr.mxu0 0.0
        %4003 = vmatpush2.msra.mxu0 0.0
        %4004 = vmatprep.subr.mxu0 0.0
        %4005 = vmatpush2.msra.mxu0 0.0
        %4006 = vmatprep.subr.mxu0 0.0
        %4007 = vmatpush2.msra.mxu0 0.0
        %4008 = vmatprep.subr.mxu0 0.0
        %4009 = vmatpush2.msra.mxu0 0.0
        %4010 = vmatprep.subr.mxu0 0.0
        %4011 = vmatpush2.msra.mxu0 0.0
        %4012 = vmatprep.subr.mxu0 0.0
        %4013 = vmatpush2.msra.mxu0 0.0
        %4014 = vmatprep.subr.mxu0 0.0
        %4015 = vmatpush2.msra.mxu0 0.0
        %4016 = vmatprep.subr.mxu0 0.0
        %4017 = vmatpush2.msra.mxu0 0.0
        %4018 = vmatprep.subr.mxu0 0.0
        %4019 = vmatpush2.msra.mxu0 0.0
        %4020 = vmatprep.subr.mxu0 0.0
        %4021 = vmatpush2.msra.mxu0 0.0
        %4022 = vmatprep.subr.mxu0 0.0
        %4023 = vmatpush2.msra.mxu0 0.0
        %4024 = vmatprep.subr.mxu0 0.0
        %4025 = vmatpush2.msra.mxu0 0.0
        %4026 = vmatprep.subr.mxu0 0.0
        %4027 = vmatpush2.msra.mxu0 0.0
        %4028 = vmatprep.subr.mxu0 0.0
        %4029 = vmatpush2.msra.mxu0 0.0
        %4030 = vmatprep.subr.mxu0 0.0
        %4031 = vmatpush2.msra.mxu0 0.0
        %4032 = vmatprep.subr.mxu0 0.0
        %4033 = vmatpush2.msra.mxu0 0.0
        %4034 = vmatprep.mubr.f32.mxu0 0.0
        %4035 = vmatmul.mubr.f32.gmra.mxu0 %v3755
        %v4036 = vpop.f32.mrf.mxu0
        %v4037 = vadd.f32 %v3466, %v4036
        %v4038 = vpop.f32.mrf.mxu0
        %v4039 = vadd.f32 %v3468, %v4038
        %4040 = vdwg.mxu0
        %4041 = vmatprep.subr.mxu0 0.0
        %4042 = vmatpush1.msra.mxu0 0.0
        %4043 = vmatprep.subr.mxu0 0.0
        %4044 = vmatpush1.msra.mxu0 0.0
        %4045 = vmatprep.subr.mxu0 0.0
        %4046 = vmatpush1.msra.mxu0 0.0
        %4047 = vmatprep.subr.mxu0 0.0
        %4048 = vmatpush1.msra.mxu0 0.0
        %4049 = vmatprep.subr.mxu0 0.0
        %4050 = vmatpush1.msra.mxu0 0.0
        %4051 = vmatprep.subr.mxu0 0.0
        %4052 = vmatpush1.msra.mxu0 0.0
        %4053 = vmatprep.subr.mxu0 0.0
        %4054 = vmatpush1.msra.mxu0 0.0
        %4055 = vmatprep.subr.mxu0 0.0
        %4056 = vmatpush1.msra.mxu0 0.0
        %4057 = vmatprep.subr.mxu0 0.0
        %4058 = vmatpush1.msra.mxu0 0.0
        %4059 = vmatprep.subr.mxu0 0.0
        %4060 = vmatpush1.msra.mxu0 0.0
        %4061 = vmatprep.subr.mxu0 0.0
        %4062 = vmatpush1.msra.mxu0 0.0
        %4063 = vmatprep.subr.mxu0 0.0
        %4064 = vmatpush1.msra.mxu0 0.0
        %4065 = vmatprep.subr.mxu0 0.0
        %4066 = vmatpush1.msra.mxu0 0.0
        %4067 = vmatprep.subr.mxu0 0.0
        %4068 = vmatpush1.msra.mxu0 0.0
        %4069 = vmatprep.subr.mxu0 %v3166
        %4070 = vmatpush1.msra.mxu0 %v3165
        %4071 = vmatprep.subr.mxu0 %v3150
        %4072 = vmatpush1.msra.mxu0 %v3149
        %4073 = vmatprep.subr.mxu0 0.0
        %4074 = vmatpush2.msra.mxu0 0.0
        %4075 = vmatprep.subr.mxu0 0.0
        %4076 = vmatpush2.msra.mxu0 0.0
        %4077 = vmatprep.subr.mxu0 0.0
        %4078 = vmatpush2.msra.mxu0 0.0
        %4079 = vmatprep.subr.mxu0 0.0
        %4080 = vmatpush2.msra.mxu0 0.0
        %4081 = vmatprep.subr.mxu0 0.0
        %4082 = vmatpush2.msra.mxu0 0.0
        %4083 = vmatprep.subr.mxu0 0.0
        %4084 = vmatpush2.msra.mxu0 0.0
        %4085 = vmatprep.subr.mxu0 0.0
        %4086 = vmatpush2.msra.mxu0 0.0
        %4087 = vmatprep.subr.mxu0 0.0
        %4088 = vmatpush2.msra.mxu0 0.0
        %4089 = vmatprep.subr.mxu0 0.0
        %4090 = vmatpush2.msra.mxu0 0.0
        %4091 = vmatprep.subr.mxu0 0.0
        %4092 = vmatpush2.msra.mxu0 0.0
        %4093 = vmatprep.subr.mxu0 0.0
        %4094 = vmatpush2.msra.mxu0 0.0
        %4095 = vmatprep.subr.mxu0 0.0
        %4096 = vmatpush2.msra.mxu0 0.0
        %4097 = vmatprep.subr.mxu0 0.0
        %4098 = vmatpush2.msra.mxu0 0.0
        %4099 = vmatprep.subr.mxu0 0.0
        %4100 = vmatpush2.msra.mxu0 0.0
        %4101 = vmatprep.subr.mxu0 0.0
        %4102 = vmatpush2.msra.mxu0 0.0
        %4103 = vmatprep.subr.mxu0 0.0
        %4104 = vmatpush2.msra.mxu0 0.0
        %4105 = vmatprep.mubr.f32.mxu0 0.0
        %4106 = vmatmul.mubr.f32.gmra.mxu0 %v3755
        %v4107 = vpop.f32.mrf.mxu0
        %v4108 = vadd.f32 %v3537, %v4107
        %v4109 = vpop.f32.mrf.mxu0
        %v4110 = vadd.f32 %v3539, %v4109
        %4111 = vdwg.mxu0
        %4112 = vmatprep.subr.mxu0 0.0
        %4113 = vmatpush1.msra.mxu0 0.0
        %4114 = vmatprep.subr.mxu0 0.0
        %4115 = vmatpush1.msra.mxu0 0.0
        %4116 = vmatprep.subr.mxu0 0.0
        %4117 = vmatpush1.msra.mxu0 0.0
        %4118 = vmatprep.subr.mxu0 0.0
        %4119 = vmatpush1.msra.mxu0 0.0
        %4120 = vmatprep.subr.mxu0 0.0
        %4121 = vmatpush1.msra.mxu0 0.0
        %4122 = vmatprep.subr.mxu0 0.0
        %4123 = vmatpush1.msra.mxu0 0.0
        %4124 = vmatprep.subr.mxu0 0.0
        %4125 = vmatpush1.msra.mxu0 0.0
        %4126 = vmatprep.subr.mxu0 0.0
        %4127 = vmatpush1.msra.mxu0 0.0
        %4128 = vmatprep.subr.mxu0 0.0
        %4129 = vmatpush1.msra.mxu0 0.0
        %4130 = vmatprep.subr.mxu0 0.0
        %4131 = vmatpush1.msra.mxu0 0.0
        %4132 = vmatprep.subr.mxu0 0.0
        %4133 = vmatpush1.msra.mxu0 0.0
        %4134 = vmatprep.subr.mxu0 0.0
        %4135 = vmatpush1.msra.mxu0 0.0
        %4136 = vmatprep.subr.mxu0 0.0
        %4137 = vmatpush1.msra.mxu0 0.0
        %4138 = vmatprep.subr.mxu0 0.0
        %4139 = vmatpush1.msra.mxu0 0.0
        %4140 = vmatprep.subr.mxu0 %v3168
        %4141 = vmatpush1.msra.mxu0 %v3167
        %4142 = vmatprep.subr.mxu0 %v3152
        %4143 = vmatpush1.msra.mxu0 %v3151
        %4144 = vmatprep.subr.mxu0 0.0
        %4145 = vmatpush2.msra.mxu0 0.0
        %4146 = vmatprep.subr.mxu0 0.0
        %4147 = vmatpush2.msra.mxu0 0.0
        %4148 = vmatprep.subr.mxu0 0.0
        %4149 = vmatpush2.msra.mxu0 0.0
        %4150 = vmatprep.subr.mxu0 0.0
        %4151 = vmatpush2.msra.mxu0 0.0
        %4152 = vmatprep.subr.mxu0 0.0
        %4153 = vmatpush2.msra.mxu0 0.0
        %4154 = vmatprep.subr.mxu0 0.0
        %4155 = vmatpush2.msra.mxu0 0.0
        %4156 = vmatprep.subr.mxu0 0.0
        %4157 = vmatpush2.msra.mxu0 0.0
        %4158 = vmatprep.subr.mxu0 0.0
        %4159 = vmatpush2.msra.mxu0 0.0
        %4160 = vmatprep.subr.mxu0 0.0
        %4161 = vmatpush2.msra.mxu0 0.0
        %4162 = vmatprep.subr.mxu0 0.0
        %4163 = vmatpush2.msra.mxu0 0.0
        %4164 = vmatprep.subr.mxu0 0.0
        %4165 = vmatpush2.msra.mxu0 0.0
        %4166 = vmatprep.subr.mxu0 0.0
        %4167 = vmatpush2.msra.mxu0 0.0
        %4168 = vmatprep.subr.mxu0 0.0
        %4169 = vmatpush2.msra.mxu0 0.0
        %4170 = vmatprep.subr.mxu0 0.0
        %4171 = vmatpush2.msra.mxu0 0.0
        %4172 = vmatprep.subr.mxu0 0.0
        %4173 = vmatpush2.msra.mxu0 0.0
        %4174 = vmatprep.subr.mxu0 0.0
        %4175 = vmatpush2.msra.mxu0 0.0
        %4176 = vmatprep.mubr.f32.mxu0 0.0
        %4177 = vmatmul.mubr.f32.gmra.mxu0 %v3755
        %v4178 = vpop.f32.mrf.mxu0
        %v4179 = vadd.f32 %v3608, %v4178
        %v4180 = vpop.f32.mrf.mxu0
        %v4181 = vadd.f32 %v3610, %v4180
        %4182 = vdwg.mxu0
        %4183 = vmatprep.subr.mxu0 0.0
        %4184 = vmatpush1.msra.mxu0 0.0
        %4185 = vmatprep.subr.mxu0 0.0
        %4186 = vmatpush1.msra.mxu0 0.0
        %4187 = vmatprep.subr.mxu0 0.0
        %4188 = vmatpush1.msra.mxu0 0.0
        %4189 = vmatprep.subr.mxu0 0.0
        %4190 = vmatpush1.msra.mxu0 0.0
        %4191 = vmatprep.subr.mxu0 0.0
        %4192 = vmatpush1.msra.mxu0 0.0
        %4193 = vmatprep.subr.mxu0 0.0
        %4194 = vmatpush1.msra.mxu0 0.0
        %4195 = vmatprep.subr.mxu0 0.0
        %4196 = vmatpush1.msra.mxu0 0.0
        %4197 = vmatprep.subr.mxu0 0.0
        %4198 = vmatpush1.msra.mxu0 0.0
        %4199 = vmatprep.subr.mxu0 0.0
        %4200 = vmatpush1.msra.mxu0 0.0
        %4201 = vmatprep.subr.mxu0 0.0
        %4202 = vmatpush1.msra.mxu0 0.0
        %4203 = vmatprep.subr.mxu0 0.0
        %4204 = vmatpush1.msra.mxu0 0.0
        %4205 = vmatprep.subr.mxu0 0.0
        %4206 = vmatpush1.msra.mxu0 0.0
        %4207 = vmatprep.subr.mxu0 0.0
        %4208 = vmatpush1.msra.mxu0 0.0
        %4209 = vmatprep.subr.mxu0 0.0
        %4210 = vmatpush1.msra.mxu0 0.0
        %4211 = vmatprep.subr.mxu0 %v3170
        %4212 = vmatpush1.msra.mxu0 %v3169
        %4213 = vmatprep.subr.mxu0 %v3154
        %4214 = vmatpush1.msra.mxu0 %v3153
        %4215 = vmatprep.subr.mxu0 0.0
        %4216 = vmatpush2.msra.mxu0 0.0
        %4217 = vmatprep.subr.mxu0 0.0
        %4218 = vmatpush2.msra.mxu0 0.0
        %4219 = vmatprep.subr.mxu0 0.0
        %4220 = vmatpush2.msra.mxu0 0.0
        %4221 = vmatprep.subr.mxu0 0.0
        %4222 = vmatpush2.msra.mxu0 0.0
        %4223 = vmatprep.subr.mxu0 0.0
        %4224 = vmatpush2.msra.mxu0 0.0
        %4225 = vmatprep.subr.mxu0 0.0
        %4226 = vmatpush2.msra.mxu0 0.0
        %4227 = vmatprep.subr.mxu0 0.0
        %4228 = vmatpush2.msra.mxu0 0.0
        %4229 = vmatprep.subr.mxu0 0.0
        %4230 = vmatpush2.msra.mxu0 0.0
        %4231 = vmatprep.subr.mxu0 0.0
        %4232 = vmatpush2.msra.mxu0 0.0
        %4233 = vmatprep.subr.mxu0 0.0
        %4234 = vmatpush2.msra.mxu0 0.0
        %4235 = vmatprep.subr.mxu0 0.0
        %4236 = vmatpush2.msra.mxu0 0.0
        %4237 = vmatprep.subr.mxu0 0.0
        %4238 = vmatpush2.msra.mxu0 0.0
        %4239 = vmatprep.subr.mxu0 0.0
        %4240 = vmatpush2.msra.mxu0 0.0
        %4241 = vmatprep.subr.mxu0 0.0
        %4242 = vmatpush2.msra.mxu0 0.0
        %4243 = vmatprep.subr.mxu0 0.0
        %4244 = vmatpush2.msra.mxu0 0.0
        %4245 = vmatprep.subr.mxu0 0.0
        %4246 = vmatpush2.msra.mxu0 0.0
        %4247 = vmatprep.mubr.f32.mxu0 0.0
        %4248 = vmatmul.mubr.f32.gmra.mxu0 %v3755
        %v4249 = vpop.f32.mrf.mxu0
        %v4250 = vadd.f32 %v3679, %v4249
        %v4251 = vpop.f32.mrf.mxu0
        %v4252 = vadd.f32 %v3681, %v4251
        %4253 = vdwg.mxu0
        %4254 = vmatprep.subr.mxu0 0.0
        %4255 = vmatpush1.msra.mxu0 0.0
        %4256 = vmatprep.subr.mxu0 0.0
        %4257 = vmatpush1.msra.mxu0 0.0
        %4258 = vmatprep.subr.mxu0 0.0
        %4259 = vmatpush1.msra.mxu0 0.0
        %4260 = vmatprep.subr.mxu0 0.0
        %4261 = vmatpush1.msra.mxu0 0.0
        %4262 = vmatprep.subr.mxu0 0.0
        %4263 = vmatpush1.msra.mxu0 0.0
        %4264 = vmatprep.subr.mxu0 0.0
        %4265 = vmatpush1.msra.mxu0 0.0
        %4266 = vmatprep.subr.mxu0 0.0
        %4267 = vmatpush1.msra.mxu0 0.0
        %4268 = vmatprep.subr.mxu0 0.0
        %4269 = vmatpush1.msra.mxu0 0.0
        %4270 = vmatprep.subr.mxu0 0.0
        %4271 = vmatpush1.msra.mxu0 0.0
        %4272 = vmatprep.subr.mxu0 0.0
        %4273 = vmatpush1.msra.mxu0 0.0
        %4274 = vmatprep.subr.mxu0 0.0
        %4275 = vmatpush1.msra.mxu0 0.0
        %4276 = vmatprep.subr.mxu0 0.0
        %4277 = vmatpush1.msra.mxu0 0.0
        %4278 = vmatprep.subr.mxu0 0.0
        %4279 = vmatpush1.msra.mxu0 0.0
        %4280 = vmatprep.subr.mxu0 0.0
        %4281 = vmatpush1.msra.mxu0 0.0
        %4282 = vmatprep.subr.mxu0 %v3172
        %4283 = vmatpush1.msra.mxu0 %v3171
        %4284 = vmatprep.subr.mxu0 %v3156
        %4285 = vmatpush1.msra.mxu0 %v3155
        %4286 = vmatprep.subr.mxu0 0.0
        %4287 = vmatpush2.msra.mxu0 0.0
        %4288 = vmatprep.subr.mxu0 0.0
        %4289 = vmatpush2.msra.mxu0 0.0
        %4290 = vmatprep.subr.mxu0 0.0
        %4291 = vmatpush2.msra.mxu0 0.0
        %4292 = vmatprep.subr.mxu0 0.0
        %4293 = vmatpush2.msra.mxu0 0.0
        %4294 = vmatprep.subr.mxu0 0.0
        %4295 = vmatpush2.msra.mxu0 0.0
        %4296 = vmatprep.subr.mxu0 0.0
        %4297 = vmatpush2.msra.mxu0 0.0
        %4298 = vmatprep.subr.mxu0 0.0
        %4299 = vmatpush2.msra.mxu0 0.0
        %4300 = vmatprep.subr.mxu0 0.0
        %4301 = vmatpush2.msra.mxu0 0.0
        %4302 = vmatprep.subr.mxu0 0.0
        %4303 = vmatpush2.msra.mxu0 0.0
        %4304 = vmatprep.subr.mxu0 0.0
        %4305 = vmatpush2.msra.mxu0 0.0
        %4306 = vmatprep.subr.mxu0 0.0
        %4307 = vmatpush2.msra.mxu0 0.0
        %4308 = vmatprep.subr.mxu0 0.0
        %4309 = vmatpush2.msra.mxu0 0.0
        %4310 = vmatprep.subr.mxu0 0.0
        %4311 = vmatpush2.msra.mxu0 0.0
        %4312 = vmatprep.subr.mxu0 0.0
        %4313 = vmatpush2.msra.mxu0 0.0
        %4314 = vmatprep.subr.mxu0 0.0
        %4315 = vmatpush2.msra.mxu0 0.0
        %4316 = vmatprep.subr.mxu0 0.0
        %4317 = vmatpush2.msra.mxu0 0.0
        %4318 = vmatprep.mubr.f32.mxu0 0.0
        %4319 = vmatmul.mubr.f32.gmra.mxu0 %v3755
        %v4320 = vpop.f32.mrf.mxu0
        %v4321 = vadd.f32 %v3750, %v4320
        %v4322 = vpop.f32.mrf.mxu0
        %v4323 = vadd.f32 %v3752, %v4322
        %4324 = vdwg.mxu0
        %s4325 = scalar_lea.vmem [#allocation10], 16
        %v4326 = vld [vmem:[%s4325] sm:$0xff]
        %v4327 = vld [vmem:[#allocation4 + $0x40] sm:$0xff]
        %v4328 = vld [vmem:[#allocation4 + $0x48] sm:$0xff]
        %v4329 = vld [vmem:[#allocation4 + $0x50] sm:$0xff]
        %v4330 = vld [vmem:[#allocation4 + $0x58] sm:$0xff]
        %v4331 = vld [vmem:[#allocation4 + $0x60] sm:$0xff]
        %v4332 = vld [vmem:[#allocation4 + $0x68] sm:$0xff]
        %v4333 = vld [vmem:[#allocation4 + $0x70] sm:$0xff]
        %v4334 = vld [vmem:[#allocation4 + $0x78] sm:$0xff]
        %v4335 = vld [vmem:[#allocation4 + $0x80] sm:$0xff]
        %v4336 = vld [vmem:[#allocation4 + $0x88] sm:$0xff]
        %v4337 = vld [vmem:[#allocation4 + $0x90] sm:$0xff]
        %v4338 = vld [vmem:[#allocation4 + $0x98] sm:$0xff]
        %v4339 = vld [vmem:[#allocation4 + $0xa0] sm:$0xff]
        %v4340 = vld [vmem:[#allocation4 + $0xa8] sm:$0xff]
        %v4341 = vld [vmem:[#allocation4 + $0xb0] sm:$0xff]
        %v4342 = vld [vmem:[#allocation4 + $0xb8] sm:$0xff]
        %v4343 = vld [vmem:[#allocation4 + $0x100] sm:$0xff]
        %v4344 = vld [vmem:[#allocation4 + $0x108] sm:$0xff]
        %v4345 = vld [vmem:[#allocation4 + $0x110] sm:$0xff]
        %v4346 = vld [vmem:[#allocation4 + $0x118] sm:$0xff]
        %v4347 = vld [vmem:[#allocation4 + $0x120] sm:$0xff]
        %v4348 = vld [vmem:[#allocation4 + $0x128] sm:$0xff]
        %v4349 = vld [vmem:[#allocation4 + $0x130] sm:$0xff]
        %v4350 = vld [vmem:[#allocation4 + $0x138] sm:$0xff]
        %v4351 = vld [vmem:[#allocation4 + $0x140] sm:$0xff]
        %v4352 = vld [vmem:[#allocation4 + $0x148] sm:$0xff]
        %v4353 = vld [vmem:[#allocation4 + $0x150] sm:$0xff]
        %v4354 = vld [vmem:[#allocation4 + $0x158] sm:$0xff]
        %v4355 = vld [vmem:[#allocation4 + $0x160] sm:$0xff]
        %v4356 = vld [vmem:[#allocation4 + $0x168] sm:$0xff]
        %v4357 = vld [vmem:[#allocation4 + $0x170] sm:$0xff]
        %v4358 = vld [vmem:[#allocation4 + $0x178] sm:$0xff]
        %v4360 = vsel %vm753, %v4326, 0
        %4362 = vmatprep.subr.mxu0 0.0
        %4363 = vmatpush1.msra.mxu0 0.0
        %4364 = vmatprep.subr.mxu0 0.0
        %4365 = vmatpush1.msra.mxu0 0.0
        %4366 = vmatprep.subr.mxu0 0.0
        %4367 = vmatpush1.msra.mxu0 0.0
        %4368 = vmatprep.subr.mxu0 0.0
        %4369 = vmatpush1.msra.mxu0 0.0
        %4370 = vmatprep.subr.mxu0 0.0
        %4371 = vmatpush1.msra.mxu0 0.0
        %4372 = vmatprep.subr.mxu0 0.0
        %4373 = vmatpush1.msra.mxu0 0.0
        %4374 = vmatprep.subr.mxu0 0.0
        %4375 = vmatpush1.msra.mxu0 0.0
        %4376 = vmatprep.subr.mxu0 0.0
        %4377 = vmatpush1.msra.mxu0 0.0
        %4378 = vmatprep.subr.mxu0 0.0
        %4379 = vmatpush1.msra.mxu0 0.0
        %4380 = vmatprep.subr.mxu0 0.0
        %4381 = vmatpush1.msra.mxu0 0.0
        %4382 = vmatprep.subr.mxu0 0.0
        %4383 = vmatpush1.msra.mxu0 0.0
        %4384 = vmatprep.subr.mxu0 0.0
        %4385 = vmatpush1.msra.mxu0 0.0
        %4386 = vmatprep.subr.mxu0 0.0
        %4387 = vmatpush1.msra.mxu0 0.0
        %4388 = vmatprep.subr.mxu0 0.0
        %4389 = vmatpush1.msra.mxu0 0.0
        %4390 = vmatprep.subr.mxu0 %v4344
        %4391 = vmatpush1.msra.mxu0 %v4343
        %4392 = vmatprep.subr.mxu0 %v4328
        %4393 = vmatpush1.msra.mxu0 %v4327
        %4394 = vmatprep.subr.mxu0 0.0
        %4395 = vmatpush2.msra.mxu0 0.0
        %4396 = vmatprep.subr.mxu0 0.0
        %4397 = vmatpush2.msra.mxu0 0.0
        %4398 = vmatprep.subr.mxu0 0.0
        %4399 = vmatpush2.msra.mxu0 0.0
        %4400 = vmatprep.subr.mxu0 0.0
        %4401 = vmatpush2.msra.mxu0 0.0
        %4402 = vmatprep.subr.mxu0 0.0
        %4403 = vmatpush2.msra.mxu0 0.0
        %4404 = vmatprep.subr.mxu0 0.0
        %4405 = vmatpush2.msra.mxu0 0.0
        %4406 = vmatprep.subr.mxu0 0.0
        %4407 = vmatpush2.msra.mxu0 0.0
        %4408 = vmatprep.subr.mxu0 0.0
        %4409 = vmatpush2.msra.mxu0 0.0
        %4410 = vmatprep.subr.mxu0 0.0
        %4411 = vmatpush2.msra.mxu0 0.0
        %4412 = vmatprep.subr.mxu0 0.0
        %4413 = vmatpush2.msra.mxu0 0.0
        %4414 = vmatprep.subr.mxu0 0.0
        %4415 = vmatpush2.msra.mxu0 0.0
        %4416 = vmatprep.subr.mxu0 0.0
        %4417 = vmatpush2.msra.mxu0 0.0
        %4418 = vmatprep.subr.mxu0 0.0
        %4419 = vmatpush2.msra.mxu0 0.0
        %4420 = vmatprep.subr.mxu0 0.0
        %4421 = vmatpush2.msra.mxu0 0.0
        %4422 = vmatprep.subr.mxu0 0.0
        %4423 = vmatpush2.msra.mxu0 0.0
        %4424 = vmatprep.subr.mxu0 0.0
        %4425 = vmatpush2.msra.mxu0 0.0
        %4426 = vmatprep.mubr.f32.mxu0 0.0
        %4427 = vmatmul.mubr.f32.gmra.mxu0 %v4360
        %v4428 = vpop.f32.mrf.mxu0
        %v4429 = vadd.f32 0.0, %v4428
        %v4430 = vpop.f32.mrf.mxu0
        %v4431 = vadd.f32 0.0, %v4430
        %4432 = vdwg.mxu0
        %4433 = vmatprep.subr.mxu0 0.0
        %4434 = vmatpush1.msra.mxu0 0.0
        %4435 = vmatprep.subr.mxu0 0.0
        %4436 = vmatpush1.msra.mxu0 0.0
        %4437 = vmatprep.subr.mxu0 0.0
        %4438 = vmatpush1.msra.mxu0 0.0
        %4439 = vmatprep.subr.mxu0 0.0
        %4440 = vmatpush1.msra.mxu0 0.0
        %4441 = vmatprep.subr.mxu0 0.0
        %4442 = vmatpush1.msra.mxu0 0.0
        %4443 = vmatprep.subr.mxu0 0.0
        %4444 = vmatpush1.msra.mxu0 0.0
        %4445 = vmatprep.subr.mxu0 0.0
        %4446 = vmatpush1.msra.mxu0 0.0
        %4447 = vmatprep.subr.mxu0 0.0
        %4448 = vmatpush1.msra.mxu0 0.0
        %4449 = vmatprep.subr.mxu0 0.0
        %4450 = vmatpush1.msra.mxu0 0.0
        %4451 = vmatprep.subr.mxu0 0.0
        %4452 = vmatpush1.msra.mxu0 0.0
        %4453 = vmatprep.subr.mxu0 0.0
        %4454 = vmatpush1.msra.mxu0 0.0
        %4455 = vmatprep.subr.mxu0 0.0
        %4456 = vmatpush1.msra.mxu0 0.0
        %4457 = vmatprep.subr.mxu0 0.0
        %4458 = vmatpush1.msra.mxu0 0.0
        %4459 = vmatprep.subr.mxu0 0.0
        %4460 = vmatpush1.msra.mxu0 0.0
        %4461 = vmatprep.subr.mxu0 %v4346
        %4462 = vmatpush1.msra.mxu0 %v4345
        %4463 = vmatprep.subr.mxu0 %v4330
        %4464 = vmatpush1.msra.mxu0 %v4329
        %4465 = vmatprep.subr.mxu0 0.0
        %4466 = vmatpush2.msra.mxu0 0.0
        %4467 = vmatprep.subr.mxu0 0.0
        %4468 = vmatpush2.msra.mxu0 0.0
        %4469 = vmatprep.subr.mxu0 0.0
        %4470 = vmatpush2.msra.mxu0 0.0
        %4471 = vmatprep.subr.mxu0 0.0
        %4472 = vmatpush2.msra.mxu0 0.0
        %4473 = vmatprep.subr.mxu0 0.0
        %4474 = vmatpush2.msra.mxu0 0.0
        %4475 = vmatprep.subr.mxu0 0.0
        %4476 = vmatpush2.msra.mxu0 0.0
        %4477 = vmatprep.subr.mxu0 0.0
        %4478 = vmatpush2.msra.mxu0 0.0
        %4479 = vmatprep.subr.mxu0 0.0
        %4480 = vmatpush2.msra.mxu0 0.0
        %4481 = vmatprep.subr.mxu0 0.0
        %4482 = vmatpush2.msra.mxu0 0.0
        %4483 = vmatprep.subr.mxu0 0.0
        %4484 = vmatpush2.msra.mxu0 0.0
        %4485 = vmatprep.subr.mxu0 0.0
        %4486 = vmatpush2.msra.mxu0 0.0
        %4487 = vmatprep.subr.mxu0 0.0
        %4488 = vmatpush2.msra.mxu0 0.0
        %4489 = vmatprep.subr.mxu0 0.0
        %4490 = vmatpush2.msra.mxu0 0.0
        %4491 = vmatprep.subr.mxu0 0.0
        %4492 = vmatpush2.msra.mxu0 0.0
        %4493 = vmatprep.subr.mxu0 0.0
        %4494 = vmatpush2.msra.mxu0 0.0
        %4495 = vmatprep.subr.mxu0 0.0
        %4496 = vmatpush2.msra.mxu0 0.0
        %4497 = vmatprep.mubr.f32.mxu0 0.0
        %4498 = vmatmul.mubr.f32.gmra.mxu0 %v4360
        %v4499 = vpop.f32.mrf.mxu0
        %v4500 = vadd.f32 0.0, %v4499
        %v4501 = vpop.f32.mrf.mxu0
        %v4502 = vadd.f32 0.0, %v4501
        %4503 = vdwg.mxu0
        %4504 = vmatprep.subr.mxu0 0.0
        %4505 = vmatpush1.msra.mxu0 0.0
        %4506 = vmatprep.subr.mxu0 0.0
        %4507 = vmatpush1.msra.mxu0 0.0
        %4508 = vmatprep.subr.mxu0 0.0
        %4509 = vmatpush1.msra.mxu0 0.0
        %4510 = vmatprep.subr.mxu0 0.0
        %4511 = vmatpush1.msra.mxu0 0.0
        %4512 = vmatprep.subr.mxu0 0.0
        %4513 = vmatpush1.msra.mxu0 0.0
        %4514 = vmatprep.subr.mxu0 0.0
        %4515 = vmatpush1.msra.mxu0 0.0
        %4516 = vmatprep.subr.mxu0 0.0
        %4517 = vmatpush1.msra.mxu0 0.0
        %4518 = vmatprep.subr.mxu0 0.0
        %4519 = vmatpush1.msra.mxu0 0.0
        %4520 = vmatprep.subr.mxu0 0.0
        %4521 = vmatpush1.msra.mxu0 0.0
        %4522 = vmatprep.subr.mxu0 0.0
        %4523 = vmatpush1.msra.mxu0 0.0
        %4524 = vmatprep.subr.mxu0 0.0
        %4525 = vmatpush1.msra.mxu0 0.0
        %4526 = vmatprep.subr.mxu0 0.0
        %4527 = vmatpush1.msra.mxu0 0.0
        %4528 = vmatprep.subr.mxu0 0.0
        %4529 = vmatpush1.msra.mxu0 0.0
        %4530 = vmatprep.subr.mxu0 0.0
        %4531 = vmatpush1.msra.mxu0 0.0
        %4532 = vmatprep.subr.mxu0 %v4348
        %4533 = vmatpush1.msra.mxu0 %v4347
        %4534 = vmatprep.subr.mxu0 %v4332
        %4535 = vmatpush1.msra.mxu0 %v4331
        %4536 = vmatprep.subr.mxu0 0.0
        %4537 = vmatpush2.msra.mxu0 0.0
        %4538 = vmatprep.subr.mxu0 0.0
        %4539 = vmatpush2.msra.mxu0 0.0
        %4540 = vmatprep.subr.mxu0 0.0
        %4541 = vmatpush2.msra.mxu0 0.0
        %4542 = vmatprep.subr.mxu0 0.0
        %4543 = vmatpush2.msra.mxu0 0.0
        %4544 = vmatprep.subr.mxu0 0.0
        %4545 = vmatpush2.msra.mxu0 0.0
        %4546 = vmatprep.subr.mxu0 0.0
        %4547 = vmatpush2.msra.mxu0 0.0
        %4548 = vmatprep.subr.mxu0 0.0
        %4549 = vmatpush2.msra.mxu0 0.0
        %4550 = vmatprep.subr.mxu0 0.0
        %4551 = vmatpush2.msra.mxu0 0.0
        %4552 = vmatprep.subr.mxu0 0.0
        %4553 = vmatpush2.msra.mxu0 0.0
        %4554 = vmatprep.subr.mxu0 0.0
        %4555 = vmatpush2.msra.mxu0 0.0
        %4556 = vmatprep.subr.mxu0 0.0
        %4557 = vmatpush2.msra.mxu0 0.0
        %4558 = vmatprep.subr.mxu0 0.0
        %4559 = vmatpush2.msra.mxu0 0.0
        %4560 = vmatprep.subr.mxu0 0.0
        %4561 = vmatpush2.msra.mxu0 0.0
        %4562 = vmatprep.subr.mxu0 0.0
        %4563 = vmatpush2.msra.mxu0 0.0
        %4564 = vmatprep.subr.mxu0 0.0
        %4565 = vmatpush2.msra.mxu0 0.0
        %4566 = vmatprep.subr.mxu0 0.0
        %4567 = vmatpush2.msra.mxu0 0.0
        %4568 = vmatprep.mubr.f32.mxu0 0.0
        %4569 = vmatmul.mubr.f32.gmra.mxu0 %v4360
        %v4570 = vpop.f32.mrf.mxu0
        %v4571 = vadd.f32 0.0, %v4570
        %v4572 = vpop.f32.mrf.mxu0
        %v4573 = vadd.f32 0.0, %v4572
        %4574 = vdwg.mxu0
        %4575 = vmatprep.subr.mxu0 0.0
        %4576 = vmatpush1.msra.mxu0 0.0
        %4577 = vmatprep.subr.mxu0 0.0
        %4578 = vmatpush1.msra.mxu0 0.0
        %4579 = vmatprep.subr.mxu0 0.0
        %4580 = vmatpush1.msra.mxu0 0.0
        %4581 = vmatprep.subr.mxu0 0.0
        %4582 = vmatpush1.msra.mxu0 0.0
        %4583 = vmatprep.subr.mxu0 0.0
        %4584 = vmatpush1.msra.mxu0 0.0
        %4585 = vmatprep.subr.mxu0 0.0
        %4586 = vmatpush1.msra.mxu0 0.0
        %4587 = vmatprep.subr.mxu0 0.0
        %4588 = vmatpush1.msra.mxu0 0.0
        %4589 = vmatprep.subr.mxu0 0.0
        %4590 = vmatpush1.msra.mxu0 0.0
        %4591 = vmatprep.subr.mxu0 0.0
        %4592 = vmatpush1.msra.mxu0 0.0
        %4593 = vmatprep.subr.mxu0 0.0
        %4594 = vmatpush1.msra.mxu0 0.0
        %4595 = vmatprep.subr.mxu0 0.0
        %4596 = vmatpush1.msra.mxu0 0.0
        %4597 = vmatprep.subr.mxu0 0.0
        %4598 = vmatpush1.msra.mxu0 0.0
        %4599 = vmatprep.subr.mxu0 0.0
        %4600 = vmatpush1.msra.mxu0 0.0
        %4601 = vmatprep.subr.mxu0 0.0
        %4602 = vmatpush1.msra.mxu0 0.0
        %4603 = vmatprep.subr.mxu0 %v4350
        %4604 = vmatpush1.msra.mxu0 %v4349
        %4605 = vmatprep.subr.mxu0 %v4334
        %4606 = vmatpush1.msra.mxu0 %v4333
        %4607 = vmatprep.subr.mxu0 0.0
        %4608 = vmatpush2.msra.mxu0 0.0
        %4609 = vmatprep.subr.mxu0 0.0
        %4610 = vmatpush2.msra.mxu0 0.0
        %4611 = vmatprep.subr.mxu0 0.0
        %4612 = vmatpush2.msra.mxu0 0.0
        %4613 = vmatprep.subr.mxu0 0.0
        %4614 = vmatpush2.msra.mxu0 0.0
        %4615 = vmatprep.subr.mxu0 0.0
        %4616 = vmatpush2.msra.mxu0 0.0
        %4617 = vmatprep.subr.mxu0 0.0
        %4618 = vmatpush2.msra.mxu0 0.0
        %4619 = vmatprep.subr.mxu0 0.0
        %4620 = vmatpush2.msra.mxu0 0.0
        %4621 = vmatprep.subr.mxu0 0.0
        %4622 = vmatpush2.msra.mxu0 0.0
        %4623 = vmatprep.subr.mxu0 0.0
        %4624 = vmatpush2.msra.mxu0 0.0
        %4625 = vmatprep.subr.mxu0 0.0
        %4626 = vmatpush2.msra.mxu0 0.0
        %4627 = vmatprep.subr.mxu0 0.0
        %4628 = vmatpush2.msra.mxu0 0.0
        %4629 = vmatprep.subr.mxu0 0.0
        %4630 = vmatpush2.msra.mxu0 0.0
        %4631 = vmatprep.subr.mxu0 0.0
        %4632 = vmatpush2.msra.mxu0 0.0
        %4633 = vmatprep.subr.mxu0 0.0
        %4634 = vmatpush2.msra.mxu0 0.0
        %4635 = vmatprep.subr.mxu0 0.0
        %4636 = vmatpush2.msra.mxu0 0.0
        %4637 = vmatprep.subr.mxu0 0.0
        %4638 = vmatpush2.msra.mxu0 0.0
        %4639 = vmatprep.mubr.f32.mxu0 0.0
        %4640 = vmatmul.mubr.f32.gmra.mxu0 %v4360
        %v4641 = vpop.f32.mrf.mxu0
        %v4642 = vadd.f32 0.0, %v4641
        %v4643 = vpop.f32.mrf.mxu0
        %v4644 = vadd.f32 0.0, %v4643
        %4645 = vdwg.mxu0
        %4646 = vmatprep.subr.mxu0 0.0
        %4647 = vmatpush1.msra.mxu0 0.0
        %4648 = vmatprep.subr.mxu0 0.0
        %4649 = vmatpush1.msra.mxu0 0.0
        %4650 = vmatprep.subr.mxu0 0.0
        %4651 = vmatpush1.msra.mxu0 0.0
        %4652 = vmatprep.subr.mxu0 0.0
        %4653 = vmatpush1.msra.mxu0 0.0
        %4654 = vmatprep.subr.mxu0 0.0
        %4655 = vmatpush1.msra.mxu0 0.0
        %4656 = vmatprep.subr.mxu0 0.0
        %4657 = vmatpush1.msra.mxu0 0.0
        %4658 = vmatprep.subr.mxu0 0.0
        %4659 = vmatpush1.msra.mxu0 0.0
        %4660 = vmatprep.subr.mxu0 0.0
        %4661 = vmatpush1.msra.mxu0 0.0
        %4662 = vmatprep.subr.mxu0 0.0
        %4663 = vmatpush1.msra.mxu0 0.0
        %4664 = vmatprep.subr.mxu0 0.0
        %4665 = vmatpush1.msra.mxu0 0.0
        %4666 = vmatprep.subr.mxu0 0.0
        %4667 = vmatpush1.msra.mxu0 0.0
        %4668 = vmatprep.subr.mxu0 0.0
        %4669 = vmatpush1.msra.mxu0 0.0
        %4670 = vmatprep.subr.mxu0 0.0
        %4671 = vmatpush1.msra.mxu0 0.0
        %4672 = vmatprep.subr.mxu0 0.0
        %4673 = vmatpush1.msra.mxu0 0.0
        %4674 = vmatprep.subr.mxu0 %v4352
        %4675 = vmatpush1.msra.mxu0 %v4351
        %4676 = vmatprep.subr.mxu0 %v4336
        %4677 = vmatpush1.msra.mxu0 %v4335
        %4678 = vmatprep.subr.mxu0 0.0
        %4679 = vmatpush2.msra.mxu0 0.0
        %4680 = vmatprep.subr.mxu0 0.0
        %4681 = vmatpush2.msra.mxu0 0.0
        %4682 = vmatprep.subr.mxu0 0.0
        %4683 = vmatpush2.msra.mxu0 0.0
        %4684 = vmatprep.subr.mxu0 0.0
        %4685 = vmatpush2.msra.mxu0 0.0
        %4686 = vmatprep.subr.mxu0 0.0
        %4687 = vmatpush2.msra.mxu0 0.0
        %4688 = vmatprep.subr.mxu0 0.0
        %4689 = vmatpush2.msra.mxu0 0.0
        %4690 = vmatprep.subr.mxu0 0.0
        %4691 = vmatpush2.msra.mxu0 0.0
        %4692 = vmatprep.subr.mxu0 0.0
        %4693 = vmatpush2.msra.mxu0 0.0
        %4694 = vmatprep.subr.mxu0 0.0
        %4695 = vmatpush2.msra.mxu0 0.0
        %4696 = vmatprep.subr.mxu0 0.0
        %4697 = vmatpush2.msra.mxu0 0.0
        %4698 = vmatprep.subr.mxu0 0.0
        %4699 = vmatpush2.msra.mxu0 0.0
        %4700 = vmatprep.subr.mxu0 0.0
        %4701 = vmatpush2.msra.mxu0 0.0
        %4702 = vmatprep.subr.mxu0 0.0
        %4703 = vmatpush2.msra.mxu0 0.0
        %4704 = vmatprep.subr.mxu0 0.0
        %4705 = vmatpush2.msra.mxu0 0.0
        %4706 = vmatprep.subr.mxu0 0.0
        %4707 = vmatpush2.msra.mxu0 0.0
        %4708 = vmatprep.subr.mxu0 0.0
        %4709 = vmatpush2.msra.mxu0 0.0
        %4710 = vmatprep.mubr.f32.mxu0 0.0
        %4711 = vmatmul.mubr.f32.gmra.mxu0 %v4360
        %v4712 = vpop.f32.mrf.mxu0
        %v4713 = vadd.f32 0.0, %v4712
        %v4714 = vpop.f32.mrf.mxu0
        %v4715 = vadd.f32 0.0, %v4714
        %4716 = vdwg.mxu0
        %4717 = vmatprep.subr.mxu0 0.0
        %4718 = vmatpush1.msra.mxu0 0.0
        %4719 = vmatprep.subr.mxu0 0.0
        %4720 = vmatpush1.msra.mxu0 0.0
        %4721 = vmatprep.subr.mxu0 0.0
        %4722 = vmatpush1.msra.mxu0 0.0
        %4723 = vmatprep.subr.mxu0 0.0
        %4724 = vmatpush1.msra.mxu0 0.0
        %4725 = vmatprep.subr.mxu0 0.0
        %4726 = vmatpush1.msra.mxu0 0.0
        %4727 = vmatprep.subr.mxu0 0.0
        %4728 = vmatpush1.msra.mxu0 0.0
        %4729 = vmatprep.subr.mxu0 0.0
        %4730 = vmatpush1.msra.mxu0 0.0
        %4731 = vmatprep.subr.mxu0 0.0
        %4732 = vmatpush1.msra.mxu0 0.0
        %4733 = vmatprep.subr.mxu0 0.0
        %4734 = vmatpush1.msra.mxu0 0.0
        %4735 = vmatprep.subr.mxu0 0.0
        %4736 = vmatpush1.msra.mxu0 0.0
        %4737 = vmatprep.subr.mxu0 0.0
        %4738 = vmatpush1.msra.mxu0 0.0
        %4739 = vmatprep.subr.mxu0 0.0
        %4740 = vmatpush1.msra.mxu0 0.0
        %4741 = vmatprep.subr.mxu0 0.0
        %4742 = vmatpush1.msra.mxu0 0.0
        %4743 = vmatprep.subr.mxu0 0.0
        %4744 = vmatpush1.msra.mxu0 0.0
        %4745 = vmatprep.subr.mxu0 %v4354
        %4746 = vmatpush1.msra.mxu0 %v4353
        %4747 = vmatprep.subr.mxu0 %v4338
        %4748 = vmatpush1.msra.mxu0 %v4337
        %4749 = vmatprep.subr.mxu0 0.0
        %4750 = vmatpush2.msra.mxu0 0.0
        %4751 = vmatprep.subr.mxu0 0.0
        %4752 = vmatpush2.msra.mxu0 0.0
        %4753 = vmatprep.subr.mxu0 0.0
        %4754 = vmatpush2.msra.mxu0 0.0
        %4755 = vmatprep.subr.mxu0 0.0
        %4756 = vmatpush2.msra.mxu0 0.0
        %4757 = vmatprep.subr.mxu0 0.0
        %4758 = vmatpush2.msra.mxu0 0.0
        %4759 = vmatprep.subr.mxu0 0.0
        %4760 = vmatpush2.msra.mxu0 0.0
        %4761 = vmatprep.subr.mxu0 0.0
        %4762 = vmatpush2.msra.mxu0 0.0
        %4763 = vmatprep.subr.mxu0 0.0
        %4764 = vmatpush2.msra.mxu0 0.0
        %4765 = vmatprep.subr.mxu0 0.0
        %4766 = vmatpush2.msra.mxu0 0.0
        %4767 = vmatprep.subr.mxu0 0.0
        %4768 = vmatpush2.msra.mxu0 0.0
        %4769 = vmatprep.subr.mxu0 0.0
        %4770 = vmatpush2.msra.mxu0 0.0
        %4771 = vmatprep.subr.mxu0 0.0
        %4772 = vmatpush2.msra.mxu0 0.0
        %4773 = vmatprep.subr.mxu0 0.0
        %4774 = vmatpush2.msra.mxu0 0.0
        %4775 = vmatprep.subr.mxu0 0.0
        %4776 = vmatpush2.msra.mxu0 0.0
        %4777 = vmatprep.subr.mxu0 0.0
        %4778 = vmatpush2.msra.mxu0 0.0
        %4779 = vmatprep.subr.mxu0 0.0
        %4780 = vmatpush2.msra.mxu0 0.0
        %4781 = vmatprep.mubr.f32.mxu0 0.0
        %4782 = vmatmul.mubr.f32.gmra.mxu0 %v4360
        %v4783 = vpop.f32.mrf.mxu0
        %v4784 = vadd.f32 0.0, %v4783
        %v4785 = vpop.f32.mrf.mxu0
        %v4786 = vadd.f32 0.0, %v4785
        %4787 = vdwg.mxu0
        %4788 = vmatprep.subr.mxu0 0.0
        %4789 = vmatpush1.msra.mxu0 0.0
        %4790 = vmatprep.subr.mxu0 0.0
        %4791 = vmatpush1.msra.mxu0 0.0
        %4792 = vmatprep.subr.mxu0 0.0
        %4793 = vmatpush1.msra.mxu0 0.0
        %4794 = vmatprep.subr.mxu0 0.0
        %4795 = vmatpush1.msra.mxu0 0.0
        %4796 = vmatprep.subr.mxu0 0.0
        %4797 = vmatpush1.msra.mxu0 0.0
        %4798 = vmatprep.subr.mxu0 0.0
        %4799 = vmatpush1.msra.mxu0 0.0
        %4800 = vmatprep.subr.mxu0 0.0
        %4801 = vmatpush1.msra.mxu0 0.0
        %4802 = vmatprep.subr.mxu0 0.0
        %4803 = vmatpush1.msra.mxu0 0.0
        %4804 = vmatprep.subr.mxu0 0.0
        %4805 = vmatpush1.msra.mxu0 0.0
        %4806 = vmatprep.subr.mxu0 0.0
        %4807 = vmatpush1.msra.mxu0 0.0
        %4808 = vmatprep.subr.mxu0 0.0
        %4809 = vmatpush1.msra.mxu0 0.0
        %4810 = vmatprep.subr.mxu0 0.0
        %4811 = vmatpush1.msra.mxu0 0.0
        %4812 = vmatprep.subr.mxu0 0.0
        %4813 = vmatpush1.msra.mxu0 0.0
        %4814 = vmatprep.subr.mxu0 0.0
        %4815 = vmatpush1.msra.mxu0 0.0
        %4816 = vmatprep.subr.mxu0 %v4356
        %4817 = vmatpush1.msra.mxu0 %v4355
        %4818 = vmatprep.subr.mxu0 %v4340
        %4819 = vmatpush1.msra.mxu0 %v4339
        %4820 = vmatprep.subr.mxu0 0.0
        %4821 = vmatpush2.msra.mxu0 0.0
        %4822 = vmatprep.subr.mxu0 0.0
        %4823 = vmatpush2.msra.mxu0 0.0
        %4824 = vmatprep.subr.mxu0 0.0
        %4825 = vmatpush2.msra.mxu0 0.0
        %4826 = vmatprep.subr.mxu0 0.0
        %4827 = vmatpush2.msra.mxu0 0.0
        %4828 = vmatprep.subr.mxu0 0.0
        %4829 = vmatpush2.msra.mxu0 0.0
        %4830 = vmatprep.subr.mxu0 0.0
        %4831 = vmatpush2.msra.mxu0 0.0
        %4832 = vmatprep.subr.mxu0 0.0
        %4833 = vmatpush2.msra.mxu0 0.0
        %4834 = vmatprep.subr.mxu0 0.0
        %4835 = vmatpush2.msra.mxu0 0.0
        %4836 = vmatprep.subr.mxu0 0.0
        %4837 = vmatpush2.msra.mxu0 0.0
        %4838 = vmatprep.subr.mxu0 0.0
        %4839 = vmatpush2.msra.mxu0 0.0
        %4840 = vmatprep.subr.mxu0 0.0
        %4841 = vmatpush2.msra.mxu0 0.0
        %4842 = vmatprep.subr.mxu0 0.0
        %4843 = vmatpush2.msra.mxu0 0.0
        %4844 = vmatprep.subr.mxu0 0.0
        %4845 = vmatpush2.msra.mxu0 0.0
        %4846 = vmatprep.subr.mxu0 0.0
        %4847 = vmatpush2.msra.mxu0 0.0
        %4848 = vmatprep.subr.mxu0 0.0
        %4849 = vmatpush2.msra.mxu0 0.0
        %4850 = vmatprep.subr.mxu0 0.0
        %4851 = vmatpush2.msra.mxu0 0.0
        %4852 = vmatprep.mubr.f32.mxu0 0.0
        %4853 = vmatmul.mubr.f32.gmra.mxu0 %v4360
        %v4854 = vpop.f32.mrf.mxu0
        %v4855 = vadd.f32 0.0, %v4854
        %v4856 = vpop.f32.mrf.mxu0
        %v4857 = vadd.f32 0.0, %v4856
        %4858 = vdwg.mxu0
        %4859 = vmatprep.subr.mxu0 0.0
        %4860 = vmatpush1.msra.mxu0 0.0
        %4861 = vmatprep.subr.mxu0 0.0
        %4862 = vmatpush1.msra.mxu0 0.0
        %4863 = vmatprep.subr.mxu0 0.0
        %4864 = vmatpush1.msra.mxu0 0.0
        %4865 = vmatprep.subr.mxu0 0.0
        %4866 = vmatpush1.msra.mxu0 0.0
        %4867 = vmatprep.subr.mxu0 0.0
        %4868 = vmatpush1.msra.mxu0 0.0
        %4869 = vmatprep.subr.mxu0 0.0
        %4870 = vmatpush1.msra.mxu0 0.0
        %4871 = vmatprep.subr.mxu0 0.0
        %4872 = vmatpush1.msra.mxu0 0.0
        %4873 = vmatprep.subr.mxu0 0.0
        %4874 = vmatpush1.msra.mxu0 0.0
        %4875 = vmatprep.subr.mxu0 0.0
        %4876 = vmatpush1.msra.mxu0 0.0
        %4877 = vmatprep.subr.mxu0 0.0
        %4878 = vmatpush1.msra.mxu0 0.0
        %4879 = vmatprep.subr.mxu0 0.0
        %4880 = vmatpush1.msra.mxu0 0.0
        %4881 = vmatprep.subr.mxu0 0.0
        %4882 = vmatpush1.msra.mxu0 0.0
        %4883 = vmatprep.subr.mxu0 0.0
        %4884 = vmatpush1.msra.mxu0 0.0
        %4885 = vmatprep.subr.mxu0 0.0
        %4886 = vmatpush1.msra.mxu0 0.0
        %4887 = vmatprep.subr.mxu0 %v4358
        %4888 = vmatpush1.msra.mxu0 %v4357
        %4889 = vmatprep.subr.mxu0 %v4342
        %4890 = vmatpush1.msra.mxu0 %v4341
        %4891 = vmatprep.subr.mxu0 0.0
        %4892 = vmatpush2.msra.mxu0 0.0
        %4893 = vmatprep.subr.mxu0 0.0
        %4894 = vmatpush2.msra.mxu0 0.0
        %4895 = vmatprep.subr.mxu0 0.0
        %4896 = vmatpush2.msra.mxu0 0.0
        %4897 = vmatprep.subr.mxu0 0.0
        %4898 = vmatpush2.msra.mxu0 0.0
        %4899 = vmatprep.subr.mxu0 0.0
        %4900 = vmatpush2.msra.mxu0 0.0
        %4901 = vmatprep.subr.mxu0 0.0
        %4902 = vmatpush2.msra.mxu0 0.0
        %4903 = vmatprep.subr.mxu0 0.0
        %4904 = vmatpush2.msra.mxu0 0.0
        %4905 = vmatprep.subr.mxu0 0.0
        %4906 = vmatpush2.msra.mxu0 0.0
        %4907 = vmatprep.subr.mxu0 0.0
        %4908 = vmatpush2.msra.mxu0 0.0
        %4909 = vmatprep.subr.mxu0 0.0
        %4910 = vmatpush2.msra.mxu0 0.0
        %4911 = vmatprep.subr.mxu0 0.0
        %4912 = vmatpush2.msra.mxu0 0.0
        %4913 = vmatprep.subr.mxu0 0.0
        %4914 = vmatpush2.msra.mxu0 0.0
        %4915 = vmatprep.subr.mxu0 0.0
        %4916 = vmatpush2.msra.mxu0 0.0
        %4917 = vmatprep.subr.mxu0 0.0
        %4918 = vmatpush2.msra.mxu0 0.0
        %4919 = vmatprep.subr.mxu0 0.0
        %4920 = vmatpush2.msra.mxu0 0.0
        %4921 = vmatprep.subr.mxu0 0.0
        %4922 = vmatpush2.msra.mxu0 0.0
        %4923 = vmatprep.mubr.f32.mxu0 0.0
        %4924 = vmatmul.mubr.f32.gmra.mxu0 %v4360
        %v4925 = vpop.f32.mrf.mxu0
        %v4926 = vadd.f32 0.0, %v4925
        %v4927 = vpop.f32.mrf.mxu0
        %v4928 = vadd.f32 0.0, %v4927
        %4929 = vdwg.mxu0
        %v4930 = vadd.f32 %v3824, %v4429
        %v4931 = vadd.f32 %v3826, %v4431
        %v4932 = vadd.f32 %v3895, %v4500
        %v4933 = vadd.f32 %v3897, %v4502
        %v4934 = vadd.f32 %v3966, %v4571
        %v4935 = vadd.f32 %v3968, %v4573
        %v4936 = vadd.f32 %v4037, %v4642
        %v4937 = vadd.f32 %v4039, %v4644
        %v4938 = vadd.f32 %v4108, %v4713
        %v4939 = vadd.f32 %v4110, %v4715
        %v4940 = vadd.f32 %v4179, %v4784
        %v4941 = vadd.f32 %v4181, %v4786
        %v4942 = vadd.f32 %v4250, %v4855
        %v4943 = vadd.f32 %v4252, %v4857
        %v4944 = vadd.f32 %v4321, %v4926
        %v4945 = vadd.f32 %v4323, %v4928
        %v4946 = vld [vmem:[%s3] sm:$0xff]
        %4948 = vset.pattern.permute.xlu0 0
        %4949 = vperm.xlu0 %4948, %v4946
        %v4950 = vpop.permute.xlu0 %4949
        %v4952 = vadd.f32 %v4930, %v4950
        %v4953 = vadd.f32 %v4931, %v4950
        %v4954 = vadd.f32 %v4932, %v4950
        %v4955 = vadd.f32 %v4933, %v4950
        %v4956 = vadd.f32 %v4934, %v4950
        %v4957 = vadd.f32 %v4935, %v4950
        %v4958 = vadd.f32 %v4936, %v4950
        %v4959 = vadd.f32 %v4937, %v4950
        %v4960 = vadd.f32 %v4938, %v4950
        %v4961 = vadd.f32 %v4939, %v4950
        %v4962 = vadd.f32 %v4940, %v4950
        %v4963 = vadd.f32 %v4941, %v4950
        %v4964 = vadd.f32 %v4942, %v4950
        %v4965 = vadd.f32 %v4943, %v4950
        %v4966 = vadd.f32 %v4944, %v4950
        %v4967 = vadd.f32 %v4945, %v4950
        %4968 = vst [vmem:[%s284] sm:$0xff] %v4952
        %4969 = vst [vmem:[%s284 + $0x8] sm:$0xff] %v4953
        %4970 = vst [vmem:[%s284 + $0x10] sm:$0xff] %v4954
        %4971 = vst [vmem:[%s284 + $0x18] sm:$0xff] %v4955
        %4972 = vst [vmem:[%s284 + $0x20] sm:$0xff] %v4956
        %4973 = vst [vmem:[%s284 + $0x28] sm:$0xff] %v4957
        %4974 = vst [vmem:[%s284 + $0x30] sm:$0xff] %v4958
        %4975 = vst [vmem:[%s284 + $0x38] sm:$0xff] %v4959
        %4976 = vst [vmem:[%s284 + $0x40] sm:$0xff] %v4960
        %4977 = vst [vmem:[%s284 + $0x48] sm:$0xff] %v4961
        %4978 = vst [vmem:[%s284 + $0x50] sm:$0xff] %v4962
        %4979 = vst [vmem:[%s284 + $0x58] sm:$0xff] %v4963
        %4980 = vst [vmem:[%s284 + $0x60] sm:$0xff] %v4964
        %4981 = vst [vmem:[%s284 + $0x68] sm:$0xff] %v4965
        %4982 = vst [vmem:[%s284 + $0x70] sm:$0xff] %v4966
        %4983 = vst [vmem:[%s284 + $0x78] sm:$0xff] %v4967
        %s4984 = sand.u32 %s142, 1
        %s4985 = scalar_lea.sflag [#allocation7], %s4984
        %s4986 = sand.u32 %s142, 1
        %s4987 = smul.addr %s4986, 128
        %s4988 = scalar_lea.vmem [#allocation13], %s4987
        // Predicated region
        $region57: #{tpu_custom_call.1} parent=39 // pred_check
          %p4989 = pneg %p152
        $region58: #{tpu_custom_call.1} parent=39 // pred_check_branch
          %4991 = sbr.rel (%p4989) target = $region60
        $region59: #{tpu_custom_call.1} parent=39 // pred_region
          %s4993 = ssub.s32 2048, 2048
          %4994 = vsyncadd %s4985, %s4993
          %s4995 = smul.addr %s24, 16
          %s4996 = smul.addr %s4995, 128
          %s4997 = scalar_lea.hbm %s5, %s4996
          %s4999 = sshll.u32 %s4988, 4
          %s5000 = int_to_ptr.vmem [resolvable:$true] %s4999
          %5002 = dma.vmem_to_hbm [thread:$0]  %s5000, 2048, %s4997, %s4985
        $region60: #{tpu_custom_call.1} parent=39 // pred_fallthru
          _
      $region40: #{tpu_custom_call.1} parent=5 // pred_fallthru
        _
      %p5003 = scmp.le.s32.totalorder 2, %s19
      // Predicated region
      $region61: #{tpu_custom_call.1} parent=5 // pred_check
        %p5004 = pneg %p5003
      $region62: #{tpu_custom_call.1} parent=5 // pred_check_branch
        %5006 = sbr.rel (%p5004) target = $region64
      $region63: #{tpu_custom_call.1} parent=5 // pred_region
        %s5007 = ssub.s32 %s19, 2
        // Predicated region
        $region65: #{tpu_custom_call.1} parent=63 // pred_check
          %p5008 = pneg %p158
        $region66: #{tpu_custom_call.1} parent=63 // pred_check_branch
          %5010 = sbr.rel (%p5008) target = $region68
        $region67: #{tpu_custom_call.1} parent=63 // pred_region
          %s5011 = sand.u32 %s143, 1
          %s5012 = scalar_lea.sflag [#allocation7], %s5011
          %s5013 = sand.u32 %s143, 1
          %s5014 = smul.addr %s5013, 128
          %s5015 = scalar_lea.vmem [#allocation13], %s5014
          %5016 = dma.done %s5012, 2048
        $region68: #{tpu_custom_call.1} parent=63 // pred_fallthru
          _
      $region64: #{tpu_custom_call.1} parent=5 // pred_fallthru
        _
    $region6: #{tpu_custom_call.1} parent=1 // loop_footer
      %s23 = sadd.s32 1, %s19
    $region7: #{tpu_custom_call.1} parent=1 // loop_footer_branch
      %18 = sbr.rel target = $region3
    $region8: #{tpu_custom_call.1} parent=1 // loop_exit
      _
    %5017 = vsyncpa [#allocation6], 1
    %s5018 = scalar_lea.sflag [#allocation6], 1
    %5019 = vsyncpa %s5018, 1
    %5020 = vsyncpa [#allocation9], 1
    %5021 = vsyncpa [#allocation12], 1
    %5022 = vsyncpa [#allocation7], 1
    %s5023 = scalar_lea.sflag [#allocation7], 1
    %5024 = vsyncpa %s5023, 1

</llo_original>
